<compile_context>
chip_gen: v5e
topology: v5e:2x2
jax: 0.10.0
libtpu: 0.0.40
codegen_flags: <defaults>
</compile_context>

<pallas_src>
import functools

import jax
import jax.numpy as jnp
from jax.experimental import pallas as pl
from jax.experimental.pallas import tpu as pltpu

_BN_EPS = 1e-5


# ----------------------------------------------------------------------------
# Fused STConv kernel: one grid step == one batch element, everything in VMEM.
# ----------------------------------------------------------------------------
def _stconv_kernel(x_ref, sprev_ref, snext_ref, w0_ref, w1_ref, w2_ref,
                   bns_ref, bnt_ref, w1bd_ref, b1bd_ref, w2bd_ref, b2bd_ref,
                   mmean_ref, mmax_ref, spb_ref, o_ref, *, C, HW):
    f32 = jnp.float32
    bf16 = jnp.bfloat16

    x = x_ref[...]                                   # (C, HW) f32, also the residual
    x_bf = x.astype(bf16)

    # ---- Conv2d(C, C, (1,3), padding=(0,1)) + folded eval-BN + ReLU ----------
    # Shifted copies are built on the MXU from 0/1 shift matrices (exact in bf16).
    x_prev = jnp.dot(x_bf, sprev_ref[...], preferred_element_type=f32).astype(bf16)
    x_next = jnp.dot(x_bf, snext_ref[...], preferred_element_type=f32).astype(bf16)
    y = (jnp.dot(w0_ref[...], x_prev, preferred_element_type=f32)
         + jnp.dot(w1_ref[...], x_bf, preferred_element_type=f32)
         + jnp.dot(w2_ref[...], x_next, preferred_element_type=f32))
    x_ca = jnp.maximum(bns_ref[...] * y + bnt_ref[...], 0.0)        # (C, HW) f32

    # ---- channel attention: avg/max pool -> block-diagonal 2-layer MLPs ------
    avg = jnp.sum(x_ca, axis=1, keepdims=True) * (1.0 / HW)          # (C, 1)
    mx = jnp.max(x_ca, axis=1, keepdims=True)                        # (C, 1)
    pooled = jnp.concatenate([avg, mx], axis=0)                      # (2C, 1)
    h = jnp.dot(w1bd_ref[...], pooled, preferred_element_type=f32) + b1bd_ref[...]
    g = jnp.dot(w2bd_ref[...], h, preferred_element_type=f32) + b2bd_ref[...]
    gate_c = jax.nn.sigmoid(g[:C, :] + g[C:, :])                     # (C, 1)
    x_ca = x_ca * gate_c

    # ---- spatial attention: Conv3d(T,T,(5,5,2),pad=(2,2,0)) as dense matmuls -
    mean_r = (jnp.sum(x_ca, axis=0, keepdims=True) * (1.0 / C)).astype(bf16)
    max_r = jnp.max(x_ca, axis=0, keepdims=True).astype(bf16)        # (1, HW)
    gate_pre = (jnp.dot(mean_r, mmean_ref[...], preferred_element_type=f32)
                + jnp.dot(max_r, mmax_ref[...], preferred_element_type=f32)
                + spb_ref[...])
    gate_s = jax.nn.sigmoid(gate_pre)                                # (1, HW)

    # ---- gate * x_ca + residual ----------------------------------------------
    o_ref[...] = x_ca * gate_s + x


def stconv_forward(prep, x_in):
    """x_in: (B, C, T, NO) float32 in PyTorch NCHW order -> same shape out."""
    B, C, T, NO = x_in.shape
    HW = T * NO
    x2 = x_in.reshape(B, C, HW)
    const = lambda shape: pl.BlockSpec(shape, lambda b: (0, 0))
    out = pl.pallas_call(
        functools.partial(_stconv_kernel, C=C, HW=HW),
        out_shape=jax.ShapeDtypeStruct((B, C, HW), jnp.float32),
        grid=(B,),
        in_specs=[
            pl.BlockSpec((None, C, HW), lambda b: (b, 0, 0)),        # x (per batch)
            const((HW, HW)), const((HW, HW)),                        # shift matrices
            const((C, C)), const((C, C)), const((C, C)),             # conv taps 0/1/2
            const((C, 1)), const((C, 1)),                            # folded BN s/t
            const(prep["w1bd"].shape), const(prep["b1bd"].shape),    # CA layer 1
            const(prep["w2bd"].shape), const(prep["b2bd"].shape),    # CA layer 2
            const((HW, HW)), const((HW, HW)),                        # conv3d as dense
            const((1, HW)),                                          # conv3d bias row
        ],
        out_specs=pl.BlockSpec((None, C, HW), lambda b: (b, 0, 0)),
        compiler_params=pltpu.CompilerParams(
            dimension_semantics=("parallel",)),
    )(x2, prep["s_prev"], prep["s_next"], prep["w0"], prep["w1"], prep["w2"],
      prep["bn_s"], prep["bn_t"], prep["w1bd"], prep["b1bd"], prep["w2bd"],
      prep["b2bd"], prep["m_mean"], prep["m_max"], prep["sp_bias"])
    return out.reshape(B, C, T, NO)


# ----------------------------------------------------------------------------
# One-time, weights-only preprocessing (no activation-dependent work).
# ----------------------------------------------------------------------------
def _conv3d_as_dense(w3d, T, NL, NH):
    """Fold Conv3d(T,T,(5,5,2),padding=(2,2,0)) into two (T*NL*NH, T*NL*NH)
    matrices acting on the channel-mean / channel-max rows (flat index t*NO+i*NH+j)."""
    P = NL * NH
    ii, jj = jnp.meshgrid(jnp.arange(NL), jnp.arange(NH), indexing="ij")
    pi, pj = ii.reshape(-1), jj.reshape(-1)                          # (P,)
    a = pi[:, None] - pi[None, :] + 2                                # (P_in, P_out)
    b = pj[:, None] - pj[None, :] + 2
    valid = (a >= 0) & (a < 5) & (b >= 0) & (b < 5)
    a_c, b_c = jnp.clip(a, 0, 4), jnp.clip(b, 0, 4)
    wg = w3d[:, :, a_c, b_c, :]                                      # (T_out,T_in,P_in,P_out,2)
    wg = jnp.where(valid[None, None, :, :, None], wg, 0.0)
    m = jnp.transpose(wg, (4, 1, 2, 0, 3)).reshape(2, T * P, T * P)
    return m[0].astype(jnp.bfloat16), m[1].astype(jnp.bfloat16)


def prepare_stconv(p, C, T, NL, NH):
    NO = NL * NH
    HW = T * NO
    w = p["conv_w"]                                                  # (C, C, 1, 3)
    idx = jnp.arange(HW)
    row, col = idx[:, None], idx[None, :]
    # (x @ s_prev)[:, w] = x[:, w-1] within a time row (zero at left edge), etc.
    s_prev = ((row == col - 1) & (col % NO != 0)).astype(jnp.bfloat16)
    s_next = ((row == col + 1) & (col % NO != NO - 1)).astype(jnp.bfloat16)
    # eval-mode BN (running mean=0, var=1) folded with the conv bias.
    bn_s = (p["bn_g"] / jnp.sqrt(1.0 + _BN_EPS))[:, None]
    bn_t = (bn_s[:, 0] * p["conv_b"] + p["bn_b"])[:, None]
    # channel-attention MLPs combined into block-diagonal weights.
    zh = jnp.zeros((NL, C), jnp.float32)
    zo = jnp.zeros((C, NL), jnp.float32)
    w1bd = jnp.concatenate(
        [jnp.concatenate([p["al1_w"], zh], axis=1),
         jnp.concatenate([zh, p["ml1_w"]], axis=1)], axis=0)         # (2NL, 2C)
    b1bd = jnp.concatenate([p["al1_b"], p["ml1_b"]])[:, None]
    w2bd = jnp.concatenate(
        [jnp.concatenate([p["al2_w"], zo], axis=1),
         jnp.concatenate([zo, p["ml2_w"]], axis=1)], axis=0)         # (2C, 2NL)
    b2bd = jnp.concatenate([p["al2_b"], p["ml2_b"]])[:, None]
    m_mean, m_max = _conv3d_as_dense(p["c3d_w"], T, NL, NH)
    sp_bias = jnp.repeat(p["c3d_b"], NO)[None, :]                    # (1, HW)
    return dict(
        s_prev=s_prev, s_next=s_next,
        w0=w[:, :, 0, 0].astype(jnp.bfloat16),
        w1=w[:, :, 0, 1].astype(jnp.bfloat16),
        w2=w[:, :, 0, 2].astype(jnp.bfloat16),
        bn_s=bn_s, bn_t=bn_t,
        w1bd=w1bd, b1bd=b1bd, w2bd=w2bd, b2bd=b2bd,
        m_mean=m_mean, m_max=m_max, sp_bias=sp_bias,
    )


# ----------------------------------------------------------------------------
# Pure-JAX float32 reference of STConv.forward (eval-mode BN), for validation.
# ----------------------------------------------------------------------------
def stconv_reference(p, x_in, T, NL, NH):
    B, C, _, NO = x_in.shape
    w = p["conv_w"]
    xpad = jnp.pad(x_in, ((0, 0), (0, 0), (0, 0), (1, 1)))
    y = (jnp.einsum("oi,bitw->botw", w[:, :, 0, 0], xpad[..., 0:NO])
         + jnp.einsum("oi,bitw->botw", w[:, :, 0, 1], xpad[..., 1:NO + 1])
         + jnp.einsum("oi,bitw->botw", w[:, :, 0, 2], xpad[..., 2:NO + 2]))
    y = y + p["conv_b"][None, :, None, None]
    s = p["bn_g"] / jnp.sqrt(1.0 + _BN_EPS)
    x_ca = jnp.maximum(y * s[None, :, None, None] + p["bn_b"][None, :, None, None], 0.0)
    avg = jnp.mean(x_ca, axis=(2, 3))
    mxp = jnp.max(x_ca, axis=(2, 3))
    ga = (avg @ p["al1_w"].T + p["al1_b"]) @ p["al2_w"].T + p["al2_b"]
    gm = (mxp @ p["ml1_w"].T + p["ml1_b"]) @ p["ml2_w"].T + p["ml2_b"]
    x_ca = x_ca * jax.nn.sigmoid(ga + gm)[:, :, None, None]
    x_mean = jnp.mean(x_ca, axis=1).reshape(B, T, NL, NH)
    x_max = jnp.max(x_ca, axis=1).reshape(B, T, NL, NH)
    xs = jnp.stack([x_mean, x_max], axis=-1)                         # (B, T, NL, NH, 2)
    xsp = jnp.pad(xs, ((0, 0), (0, 0), (2, 2), (2, 2), (0, 0)))
    w3 = p["c3d_w"]
    g = jnp.zeros((B, T, NL, NH), jnp.float32)
    for ka in range(5):
        for kb in range(5):
            for kk in range(2):
                g = g + jnp.einsum("ot,btij->boij", w3[:, :, ka, kb, kk],
                                   xsp[:, :, ka:ka + NL, kb:kb + NH, kk])
    g = g + p["c3d_b"][None, :, None, None]
    gate_s = jax.nn.sigmoid(g).reshape(B, 1, T, NO)
    return x_ca * gate_s + x_in


# ----------------------------------------------------------------------------
# Deterministic parameter initialization (mirrors the PyTorch module's params)
# ----------------------------------------------------------------------------
def init_stconv_params(key, C, T, NL, NH):
    ks = jax.random.split(key, 10)

    def lin(k, out_f, in_f, scale=0.1):
        k1, k2 = jax.random.split(k)
        return (scale * jax.random.normal(k1, (out_f, in_f), jnp.float32),
                scale * jax.random.normal(k2, (out_f,), jnp.float32))

    al1_w, al1_b = lin(ks[2], NL, C)
    al2_w, al2_b = lin(ks[3], C, NL)
    ml1_w, ml1_b = lin(ks[4], NL, C)
    ml2_w, ml2_b = lin(ks[5], C, NL)
    return dict(
        conv_w=0.1 * jax.random.normal(ks[0], (C, C, 1, 3), jnp.float32),
        conv_b=0.1 * jax.random.normal(ks[1], (C,), jnp.float32),
        al1_w=al1_w, al1_b=al1_b, al2_w=al2_w, al2_b=al2_b,
        ml1_w=ml1_w, ml1_b=ml1_b, ml2_w=ml2_w, ml2_b=ml2_b,
        bn_g=1.0 + 0.05 * jax.random.normal(ks[6], (C,), jnp.float32),
        bn_b=0.05 * jax.random.normal(ks[7], (C,), jnp.float32),
        c3d_w=0.05 * jax.random.normal(ks[8], (T, T, 5, 5, 2), jnp.float32),
        c3d_b=0.05 * jax.random.normal(ks[9], (T,), jnp.float32),
    )


# ----------------------------------------------------------------------------
# Main
# ----------------------------------------------------------------------------
if __name__ == "__main__":
    B = 2
    T = 12            # hard-coded by AvgPool/MaxPool kernel (12, NO) and Conv3d(12, 12, ...)
    NL, NH = 4, 8     # small spatial grid; NO = ND = NL*NH = 32 -> HW = T*NO = 384 = 3*128
    NO = NL * NH
    C = NO            # forward requires in_ch == out_ch == ND == NO (residual / MLP / reshape)

    key = jax.random.PRNGKey(0)
    kp, kx = jax.random.split(key)
    params = init_stconv_params(kp, C, T, NL, NH)
    x_in = jax.random.normal(kx, (B, C, T, NO), jnp.float32)

    prep = prepare_stconv(params, C, T, NL, NH)       # weights-only, done once
    fwd = jax.jit(stconv_forward)
    out = jax.block_until_ready(fwd(prep, x_in))

    assert out.shape == (B, C, T, NO), out.shape
    assert bool(jnp.all(jnp.isfinite(out)))

    ref = stconv_reference(params, x_in, T, NL, NH)
    err = float(jnp.max(jnp.abs(out - ref)))
    assert err < 1e-1, f"max abs err {err}"           # bf16-MXU vs f32 reference
    print("KERNEL_OK")
</pallas_src>

<mosaic_0001>
module attributes {stable_mosaic.version = 11 : i64} {
  func.func @_stconv_kernel(%arg0: i32, %arg1: memref<1x32x384xf32, #tpu.memory_space<vmem>>, %arg2: memref<384x384xbf16, #tpu.memory_space<vmem>>, %arg3: memref<384x384xbf16, #tpu.memory_space<vmem>>, %arg4: memref<32x32xbf16, #tpu.memory_space<vmem>>, %arg5: memref<32x32xbf16, #tpu.memory_space<vmem>>, %arg6: memref<32x32xbf16, #tpu.memory_space<vmem>>, %arg7: memref<32x1xf32, #tpu.memory_space<vmem>>, %arg8: memref<32x1xf32, #tpu.memory_space<vmem>>, %arg9: memref<8x64xf32, #tpu.memory_space<vmem>>, %arg10: memref<8x1xf32, #tpu.memory_space<vmem>>, %arg11: memref<64x8xf32, #tpu.memory_space<vmem>>, %arg12: memref<64x1xf32, #tpu.memory_space<vmem>>, %arg13: memref<384x384xbf16, #tpu.memory_space<vmem>>, %arg14: memref<384x384xbf16, #tpu.memory_space<vmem>>, %arg15: memref<1x384xf32, #tpu.memory_space<vmem>>, %arg16: memref<1x32x384xf32, #tpu.memory_space<vmem>>) attributes {dimension_semantics = [#tpu.dimension_semantics<parallel>], iteration_bounds = array<i64: 2>, scalar_prefetch = 0 : i64, scratch_operands = 0 : i64, tpu.core_type = #tpu.core_type<tc>, window_params = [{transform_indices = @transform_0, window_bounds = array<i64: 1, 32, 384>}, {pipeline_mode = #tpu.pipeline_mode<synchronous>, transform_indices = @transform_1, window_bounds = array<i64: 384, 384>}, {pipeline_mode = #tpu.pipeline_mode<synchronous>, transform_indices = @transform_2, window_bounds = array<i64: 384, 384>}, {pipeline_mode = #tpu.pipeline_mode<synchronous>, transform_indices = @transform_3, window_bounds = array<i64: 32, 32>}, {pipeline_mode = #tpu.pipeline_mode<synchronous>, transform_indices = @transform_4, window_bounds = array<i64: 32, 32>}, {pipeline_mode = #tpu.pipeline_mode<synchronous>, transform_indices = @transform_5, window_bounds = array<i64: 32, 32>}, {pipeline_mode = #tpu.pipeline_mode<synchronous>, transform_indices = @transform_6, window_bounds = array<i64: 32, 1>}, {pipeline_mode = #tpu.pipeline_mode<synchronous>, transform_indices = @transform_7, window_bounds = array<i64: 32, 1>}, {pipeline_mode = #tpu.pipeline_mode<synchronous>, transform_indices = @transform_8, window_bounds = array<i64: 8, 64>}, {pipeline_mode = #tpu.pipeline_mode<synchronous>, transform_indices = @transform_9, window_bounds = array<i64: 8, 1>}, {pipeline_mode = #tpu.pipeline_mode<synchronous>, transform_indices = @transform_10, window_bounds = array<i64: 64, 8>}, {pipeline_mode = #tpu.pipeline_mode<synchronous>, transform_indices = @transform_11, window_bounds = array<i64: 64, 1>}, {pipeline_mode = #tpu.pipeline_mode<synchronous>, transform_indices = @transform_12, window_bounds = array<i64: 384, 384>}, {pipeline_mode = #tpu.pipeline_mode<synchronous>, transform_indices = @transform_13, window_bounds = array<i64: 384, 384>}, {pipeline_mode = #tpu.pipeline_mode<synchronous>, transform_indices = @transform_14, window_bounds = array<i64: 1, 384>}, {transform_indices = @transform_15, window_bounds = array<i64: 1, 32, 384>}]} {
    %c0 = arith.constant 0 : index
    %c0_0 = arith.constant 0 : index
    %c0_1 = arith.constant 0 : index
    %0 = vector.load %arg1[%c0, %c0_0, %c0_1] : memref<1x32x384xf32, #tpu.memory_space<vmem>>, vector<1x32x384xf32>
    %1 = vector.shape_cast %0 : vector<1x32x384xf32> to vector<32x384xf32>
    %2 = arith.truncf %1 : vector<32x384xf32> to vector<32x384xbf16>
    %c0_2 = arith.constant 0 : index
    %c0_3 = arith.constant 0 : index
    %3 = vector.load %arg2[%c0_2, %c0_3] : memref<384x384xbf16, #tpu.memory_space<vmem>>, vector<384x384xbf16>
    %cst = arith.constant dense<0.000000e+00> : vector<32x384xf32>
    %4 = tpu.matmul %2, %3, %cst {dimension_numbers = #tpu.dot_dimension_numbers<[1], [0], [0], [1], [0, 0, 1, 1], [], []>} : vector<32x384xbf16>, vector<384x384xbf16>, vector<32x384xf32> -> vector<32x384xf32>
    %5 = arith.truncf %4 : vector<32x384xf32> to vector<32x384xbf16>
    %c0_4 = arith.constant 0 : index
    %c0_5 = arith.constant 0 : index
    %6 = vector.load %arg3[%c0_4, %c0_5] : memref<384x384xbf16, #tpu.memory_space<vmem>>, vector<384x384xbf16>
    %cst_6 = arith.constant dense<0.000000e+00> : vector<32x384xf32>
    %7 = tpu.matmul %2, %6, %cst_6 {dimension_numbers = #tpu.dot_dimension_numbers<[1], [0], [0], [1], [0, 0, 1, 1], [], []>} : vector<32x384xbf16>, vector<384x384xbf16>, vector<32x384xf32> -> vector<32x384xf32>
    %8 = arith.truncf %7 : vector<32x384xf32> to vector<32x384xbf16>
    %c0_7 = arith.constant 0 : index
    %c0_8 = arith.constant 0 : index
    %9 = vector.load %arg4[%c0_7, %c0_8] : memref<32x32xbf16, #tpu.memory_space<vmem>>, vector<32x32xbf16>
    %cst_9 = arith.constant dense<0.000000e+00> : vector<32x384xf32>
    %10 = tpu.matmul %9, %5, %cst_9 {dimension_numbers = #tpu.dot_dimension_numbers<[1], [0], [0], [1], [0, 0, 1, 1], [], []>} : vector<32x32xbf16>, vector<32x384xbf16>, vector<32x384xf32> -> vector<32x384xf32>
    %c0_10 = arith.constant 0 : index
    %c0_11 = arith.constant 0 : index
    %11 = vector.load %arg5[%c0_10, %c0_11] : memref<32x32xbf16, #tpu.memory_space<vmem>>, vector<32x32xbf16>
    %cst_12 = arith.constant dense<0.000000e+00> : vector<32x384xf32>
    %12 = tpu.matmul %11, %2, %cst_12 {dimension_numbers = #tpu.dot_dimension_numbers<[1], [0], [0], [1], [0, 0, 1, 1], [], []>} : vector<32x32xbf16>, vector<32x384xbf16>, vector<32x384xf32> -> vector<32x384xf32>
    %13 = arith.addf %10, %12 : vector<32x384xf32>
    %c0_13 = arith.constant 0 : index
    %c0_14 = arith.constant 0 : index
    %14 = vector.load %arg6[%c0_13, %c0_14] : memref<32x32xbf16, #tpu.memory_space<vmem>>, vector<32x32xbf16>
    %cst_15 = arith.constant dense<0.000000e+00> : vector<32x384xf32>
    %15 = tpu.matmul %14, %8, %cst_15 {dimension_numbers = #tpu.dot_dimension_numbers<[1], [0], [0], [1], [0, 0, 1, 1], [], []>} : vector<32x32xbf16>, vector<32x384xbf16>, vector<32x384xf32> -> vector<32x384xf32>
    %16 = arith.addf %13, %15 : vector<32x384xf32>
    %c0_16 = arith.constant 0 : index
    %c0_17 = arith.constant 0 : index
    %17 = vector.load %arg7[%c0_16, %c0_17] : memref<32x1xf32, #tpu.memory_space<vmem>>, vector<32x1xf32>
    %18 = vector.broadcast %17 : vector<32x1xf32> to vector<32x384xf32>
    %19 = arith.mulf %18, %16 : vector<32x384xf32>
    %c0_18 = arith.constant 0 : index
    %c0_19 = arith.constant 0 : index
    %20 = vector.load %arg8[%c0_18, %c0_19] : memref<32x1xf32, #tpu.memory_space<vmem>>, vector<32x1xf32>
    %21 = vector.broadcast %20 : vector<32x1xf32> to vector<32x384xf32>
    %22 = arith.addf %19, %21 : vector<32x384xf32>
    %cst_20 = arith.constant 0.000000e+00 : f32
    %23 = vector.broadcast %cst_20 : f32 to vector<32x384xf32>
    %24 = arith.maximumf %22, %23 : vector<32x384xf32>
    %cst_21 = arith.constant dense<0.000000e+00> : vector<32xf32>
    %25 = vector.multi_reduction <add>, %24, %cst_21 [1] : vector<32x384xf32> to vector<32xf32>
    %26 = vector.shape_cast %25 : vector<32xf32> to vector<32x1xf32>
    %cst_22 = arith.constant 0.00260416674 : f32
    %27 = vector.broadcast %cst_22 : f32 to vector<32x1xf32>
    %28 = arith.mulf %26, %27 : vector<32x1xf32>
    %cst_23 = arith.constant dense<0xFF800000> : vector<32xf32>
    %29 = vector.multi_reduction <maximumf>, %24, %cst_23 [1] : vector<32x384xf32> to vector<32xf32>
    %30 = vector.shape_cast %29 : vector<32xf32> to vector<32x1xf32>
    %31 = tpu.concatenate %28, %30 in 0 : vector<32x1xf32>, vector<32x1xf32> -> vector<64x1xf32>
    %c0_24 = arith.constant 0 : index
    %c0_25 = arith.constant 0 : index
    %32 = vector.load %arg9[%c0_24, %c0_25] : memref<8x64xf32, #tpu.memory_space<vmem>>, vector<8x64xf32>
    %cst_26 = arith.constant dense<0.000000e+00> : vector<8x1xf32>
    %33 = tpu.matmul %32, %31, %cst_26 {dimension_numbers = #tpu.dot_dimension_numbers<[1], [0], [0], [1], [0, 0, 1, 1], [], []>} : vector<8x64xf32>, vector<64x1xf32>, vector<8x1xf32> -> vector<8x1xf32>
    %c0_27 = arith.constant 0 : index
    %c0_28 = arith.constant 0 : index
    %34 = vector.load %arg10[%c0_27, %c0_28] : memref<8x1xf32, #tpu.memory_space<vmem>>, vector<8x1xf32>
    %35 = arith.addf %33, %34 : vector<8x1xf32>
    %c0_29 = arith.constant 0 : index
    %c0_30 = arith.constant 0 : index
    %36 = vector.load %arg11[%c0_29, %c0_30] : memref<64x8xf32, #tpu.memory_space<vmem>>, vector<64x8xf32>
    %cst_31 = arith.constant dense<0.000000e+00> : vector<64x1xf32>
    %37 = tpu.matmul %36, %35, %cst_31 {dimension_numbers = #tpu.dot_dimension_numbers<[1], [0], [0], [1], [0, 0, 1, 1], [], []>} : vector<64x8xf32>, vector<8x1xf32>, vector<64x1xf32> -> vector<64x1xf32>
    %c0_32 = arith.constant 0 : index
    %c0_33 = arith.constant 0 : index
    %38 = vector.load %arg12[%c0_32, %c0_33] : memref<64x1xf32, #tpu.memory_space<vmem>>, vector<64x1xf32>
    %39 = arith.addf %37, %38 : vector<64x1xf32>
    %40 = vector.extract_strided_slice %39 {offsets = [0, 0], sizes = [32, 1], strides = [1, 1]} : vector<64x1xf32> to vector<32x1xf32>
    %41 = vector.extract_strided_slice %39 {offsets = [32, 0], sizes = [32, 1], strides = [1, 1]} : vector<64x1xf32> to vector<32x1xf32>
    %42 = arith.addf %40, %41 : vector<32x1xf32>
    %43 = arith.negf %42 : vector<32x1xf32>
    %44 = math.exp %43 : vector<32x1xf32>
    %cst_34 = arith.constant 1.000000e+00 : f32
    %45 = vector.broadcast %cst_34 : f32 to vector<32x1xf32>
    %46 = arith.addf %45, %44 : vector<32x1xf32>
    %47 = arith.divf %45, %46 : vector<32x1xf32>
    %48 = vector.broadcast %47 : vector<32x1xf32> to vector<32x384xf32>
    %49 = arith.mulf %24, %48 : vector<32x384xf32>
    %cst_35 = arith.constant dense<0.000000e+00> : vector<384xf32>
    %50 = vector.multi_reduction <add>, %49, %cst_35 [0] : vector<32x384xf32> to vector<384xf32>
    %51 = vector.shape_cast %50 : vector<384xf32> to vector<1x384xf32>
    %cst_36 = arith.constant 3.125000e-02 : f32
    %52 = vector.broadcast %cst_36 : f32 to vector<1x384xf32>
    %53 = arith.mulf %51, %52 : vector<1x384xf32>
    %54 = arith.truncf %53 : vector<1x384xf32> to vector<1x384xbf16>
    %cst_37 = arith.constant dense<0xFF800000> : vector<384xf32>
    %55 = vector.multi_reduction <maximumf>, %49, %cst_37 [0] : vector<32x384xf32> to vector<384xf32>
    %56 = vector.shape_cast %55 : vector<384xf32> to vector<1x384xf32>
    %57 = arith.truncf %56 : vector<1x384xf32> to vector<1x384xbf16>
    %c0_38 = arith.constant 0 : index
    %c0_39 = arith.constant 0 : index
    %58 = vector.load %arg13[%c0_38, %c0_39] : memref<384x384xbf16, #tpu.memory_space<vmem>>, vector<384x384xbf16>
    %cst_40 = arith.constant dense<0.000000e+00> : vector<1x384xf32>
    %59 = tpu.matmul %54, %58, %cst_40 {dimension_numbers = #tpu.dot_dimension_numbers<[1], [0], [0], [1], [0, 0, 1, 1], [], []>} : vector<1x384xbf16>, vector<384x384xbf16>, vector<1x384xf32> -> vector<1x384xf32>
    %c0_41 = arith.constant 0 : index
    %c0_42 = arith.constant 0 : index
    %60 = vector.load %arg14[%c0_41, %c0_42] : memref<384x384xbf16, #tpu.memory_space<vmem>>, vector<384x384xbf16>
    %cst_43 = arith.constant dense<0.000000e+00> : vector<1x384xf32>
    %61 = tpu.matmul %57, %60, %cst_43 {dimension_numbers = #tpu.dot_dimension_numbers<[1], [0], [0], [1], [0, 0, 1, 1], [], []>} : vector<1x384xbf16>, vector<384x384xbf16>, vector<1x384xf32> -> vector<1x384xf32>
    %62 = arith.addf %59, %61 : vector<1x384xf32>
    %c0_44 = arith.constant 0 : index
    %c0_45 = arith.constant 0 : index
    %63 = vector.load %arg15[%c0_44, %c0_45] : memref<1x384xf32, #tpu.memory_space<vmem>>, vector<1x384xf32>
    %64 = arith.addf %62, %63 : vector<1x384xf32>
    %65 = arith.negf %64 : vector<1x384xf32>
    %66 = math.exp %65 : vector<1x384xf32>
    %cst_46 = arith.constant 1.000000e+00 : f32
    %67 = vector.broadcast %cst_46 : f32 to vector<1x384xf32>
    %68 = arith.addf %67, %66 : vector<1x384xf32>
    %69 = arith.divf %67, %68 : vector<1x384xf32>
    %70 = vector.broadcast %69 : vector<1x384xf32> to vector<32x384xf32>
    %71 = arith.mulf %49, %70 : vector<32x384xf32>
    %72 = arith.addf %71, %1 : vector<32x384xf32>
    %c0_47 = arith.constant 0 : index
    %c0_48 = arith.constant 0 : index
    %c0_49 = arith.constant 0 : index
    %73 = vector.load %arg16[%c0_47, %c0_48, %c0_49] : memref<1x32x384xf32, #tpu.memory_space<vmem>>, vector<1x32x384xf32>
    %74 = vector.shape_cast %73 : vector<1x32x384xf32> to vector<32x384xf32>
    %75 = vector.shape_cast %72 : vector<32x384xf32> to vector<1x32x384xf32>
    tpu.vector_store %arg16[%c0_47, %c0_48, %c0_49], %75 {strides = array<i32>} : memref<1x32x384xf32, #tpu.memory_space<vmem>>, vector<1x32x384xf32>,
    return
  }
  func.func @transform_0(%arg0: i32) -> (i32, i32, i32) {
    %c0_i32 = arith.constant 0 : i32
    %c0_i32_0 = arith.constant 0 : i32
    %c0_i32_1 = arith.constant 0 : i32
    return %arg0, %c0_i32, %c0_i32_0 : i32, i32, i32
  }
  func.func @transform_1(%arg0: i32) -> (i32, i32) {
    %c0_i32 = arith.constant 0 : i32
    %c0_i32_0 = arith.constant 0 : i32
    %c0_i32_1 = arith.constant 0 : i32
    return %c0_i32, %c0_i32_0 : i32, i32
  }
  func.func @transform_2(%arg0: i32) -> (i32, i32) {
    %c0_i32 = arith.constant 0 : i32
    %c0_i32_0 = arith.constant 0 : i32
    %c0_i32_1 = arith.constant 0 : i32
    return %c0_i32, %c0_i32_0 : i32, i32
  }
  func.func @transform_3(%arg0: i32) -> (i32, i32) {
    %c0_i32 = arith.constant 0 : i32
    %c0_i32_0 = arith.constant 0 : i32
    %c0_i32_1 = arith.constant 0 : i32
    return %c0_i32, %c0_i32_0 : i32, i32
  }
  func.func @transform_4(%arg0: i32) -> (i32, i32) {
    %c0_i32 = arith.constant 0 : i32
    %c0_i32_0 = arith.constant 0 : i32
    %c0_i32_1 = arith.constant 0 : i32
    return %c0_i32, %c0_i32_0 : i32, i32
  }
  func.func @transform_5(%arg0: i32) -> (i32, i32) {
    %c0_i32 = arith.constant 0 : i32
    %c0_i32_0 = arith.constant 0 : i32
    %c0_i32_1 = arith.constant 0 : i32
    return %c0_i32, %c0_i32_0 : i32, i32
  }
  func.func @transform_6(%arg0: i32) -> (i32, i32) {
    %c0_i32 = arith.constant 0 : i32
    %c0_i32_0 = arith.constant 0 : i32
    %c0_i32_1 = arith.constant 0 : i32
    return %c0_i32, %c0_i32_0 : i32, i32
  }
  func.func @transform_7(%arg0: i32) -> (i32, i32) {
    %c0_i32 = arith.constant 0 : i32
    %c0_i32_0 = arith.constant 0 : i32
    %c0_i32_1 = arith.constant 0 : i32
    return %c0_i32, %c0_i32_0 : i32, i32
  }
  func.func @transform_8(%arg0: i32) -> (i32, i32) {
    %c0_i32 = arith.constant 0 : i32
    %c0_i32_0 = arith.constant 0 : i32
    %c0_i32_1 = arith.constant 0 : i32
    return %c0_i32, %c0_i32_0 : i32, i32
  }
  func.func @transform_9(%arg0: i32) -> (i32, i32) {
    %c0_i32 = arith.constant 0 : i32
    %c0_i32_0 = arith.constant 0 : i32
    %c0_i32_1 = arith.constant 0 : i32
    return %c0_i32, %c0_i32_0 : i32, i32
  }
  func.func @transform_10(%arg0: i32) -> (i32, i32) {
    %c0_i32 = arith.constant 0 : i32
    %c0_i32_0 = arith.constant 0 : i32
    %c0_i32_1 = arith.constant 0 : i32
    return %c0_i32, %c0_i32_0 : i32, i32
  }
  func.func @transform_11(%arg0: i32) -> (i32, i32) {
    %c0_i32 = arith.constant 0 : i32
    %c0_i32_0 = arith.constant 0 : i32
    %c0_i32_1 = arith.constant 0 : i32
    return %c0_i32, %c0_i32_0 : i32, i32
  }
  func.func @transform_12(%arg0: i32) -> (i32, i32) {
    %c0_i32 = arith.constant 0 : i32
    %c0_i32_0 = arith.constant 0 : i32
    %c0_i32_1 = arith.constant 0 : i32
    return %c0_i32, %c0_i32_0 : i32, i32
  }
  func.func @transform_13(%arg0: i32) -> (i32, i32) {
    %c0_i32 = arith.constant 0 : i32
    %c0_i32_0 = arith.constant 0 : i32
    %c0_i32_1 = arith.constant 0 : i32
    return %c0_i32, %c0_i32_0 : i32, i32
  }
  func.func @transform_14(%arg0: i32) -> (i32, i32) {
    %c0_i32 = arith.constant 0 : i32
    %c0_i32_0 = arith.constant 0 : i32
    %c0_i32_1 = arith.constant 0 : i32
    return %c0_i32, %c0_i32_0 : i32, i32
  }
  func.func @transform_15(%arg0: i32) -> (i32, i32, i32) {
    %c0_i32 = arith.constant 0 : i32
    %c0_i32_0 = arith.constant 0 : i32
    %c0_i32_1 = arith.constant 0 : i32
    return %arg0, %c0_i32, %c0_i32_0 : i32, i32, i32
  }
}

</mosaic_0001>

<llo_original>
// kernel: stconv_forward.1
$region0: #{stconv_forward.1}
  #allocation0 [shape = 'u32[]', space=smem, size = 0x4, offset = 0x4, fixed_abs, tag = 'smem constant byte address 0x4 - core index']
  #allocation1 [shape = 'u32[72,128]{1,0:T(1,128)}', space=vmem, size = 0x9000, scoped, tag = 'internal scratch']
  %s0 = inlined_call_operand.vmem [shape: f32[2,32,384], index: 0, kind: input, shape index: {}]
  %s1 = inlined_call_operand.vmem [shape: bf16[384,384], index: 1, kind: input, shape index: {}]
  %s2 = inlined_call_operand.vmem [shape: bf16[384,384], index: 2, kind: input, shape index: {}]
  %s3 = inlined_call_operand.vmem [shape: bf16[32,32], index: 3, kind: input, shape index: {}]
  %s4 = inlined_call_operand.vmem [shape: bf16[32,32], index: 4, kind: input, shape index: {}]
  %s5 = inlined_call_operand.vmem [shape: bf16[32,32], index: 5, kind: input, shape index: {}]
  %s6 = inlined_call_operand.vmem [shape: f32[32,1], index: 6, kind: input, shape index: {}]
  %s7 = inlined_call_operand.vmem [shape: f32[32,1], index: 7, kind: input, shape index: {}]
  %s8 = inlined_call_operand.vmem [shape: f32[8,64], index: 8, kind: input, shape index: {}]
  %s9 = inlined_call_operand.vmem [shape: f32[8,1], index: 9, kind: input, shape index: {}]
  %s10 = inlined_call_operand.vmem [shape: f32[64,8], index: 10, kind: input, shape index: {}]
  %s11 = inlined_call_operand.vmem [shape: f32[64,1], index: 11, kind: input, shape index: {}]
  %s12 = inlined_call_operand.vmem [shape: bf16[384,384], index: 12, kind: input, shape index: {}]
  %s13 = inlined_call_operand.vmem [shape: bf16[384,384], index: 13, kind: input, shape index: {}]
  %s14 = inlined_call_operand.vmem [shape: f32[1,384], index: 14, kind: input, shape index: {}]
  %s15 = inlined_call_operand.vmem [shape: f32[2,32,384], index: 15, kind: output, shape index: {}]
  %s16 = sld [smem:[#allocation0]]
  $region93: #{stconv_forward.1} parent=0
    _
  %s18 = ssub.s32 1, %s16
  %s19 = scalar_select 0, %s18, %s16
  loop: start=0, step=1, limit=4
  $region2: #{stconv_forward.1} parent=0 // loop_pre_header
    _
  $region3: #{stconv_forward.1} parent=0 // loop_header
    %s21 = sphi 0, %s25
    %p22 = scmp.ge.s32.totalorder %s21, 4
    %s31 = sphi 0, %s33
    %s34 = sphi 0, %s31
    %s35 = sphi 0, %s34
    %s51 = sphi 0, %s35
    %s55 = sphi 0, %s55
    %s57 = sphi 0, %s55
    %s58 = sphi 0, %s57
    %s72 = sphi 0, %s58
    %s76 = sphi 0, %s76
    %s78 = sphi 0, %s76
    %s79 = sphi 0, %s78
    %s93 = sphi 0, %s79
    %s97 = sphi 0, %s97
    %s99 = sphi 0, %s97
    %s100 = sphi 0, %s99
    %s114 = sphi 0, %s100
    %s118 = sphi 0, %s118
    %s120 = sphi 0, %s118
    %s121 = sphi 0, %s120
    %s135 = sphi 0, %s121
    %s139 = sphi 0, %s139
    %s141 = sphi 0, %s139
    %s142 = sphi 0, %s141
    %s156 = sphi 0, %s142
    %s160 = sphi 0, %s160
    %s162 = sphi 0, %s160
    %s163 = sphi 0, %s162
    %s177 = sphi 0, %s163
    %s181 = sphi 0, %s181
    %s183 = sphi 0, %s181
    %s184 = sphi 0, %s183
    %s198 = sphi 0, %s184
    %s202 = sphi 0, %s202
    %s204 = sphi 0, %s202
    %s205 = sphi 0, %s204
    %s219 = sphi 0, %s205
    %s223 = sphi 0, %s223
    %s225 = sphi 0, %s223
    %s226 = sphi 0, %s225
    %s240 = sphi 0, %s226
    %s244 = sphi 0, %s244
    %s246 = sphi 0, %s244
    %s247 = sphi 0, %s246
    %s261 = sphi 0, %s247
    %s265 = sphi 0, %s265
    %s267 = sphi 0, %s265
    %s268 = sphi 0, %s267
    %s282 = sphi 0, %s268
    %s286 = sphi 0, %s286
    %s288 = sphi 0, %s286
    %s289 = sphi 0, %s288
    %s303 = sphi 0, %s289
    %s307 = sphi 0, %s307
    %s309 = sphi 0, %s307
    %s310 = sphi 0, %s309
    %s324 = sphi 0, %s310
    %s328 = sphi 0, %s328
    %s330 = sphi 0, %s328
    %s331 = sphi 0, %s330
    %s345 = sphi 0, %s331
    %s351 = sphi 0, %s353
    %s354 = sphi 0, %s351
    %s355 = sphi 0, %s354
    %s371 = sphi 0, %s355
  $region4: #{stconv_forward.1} parent=0 // loop_header_branch
    %24 = sbr.rel (%p22) target = $region8
  $region5: #{stconv_forward.1} parent=0 // loop_body
    %s26 = ssub.s32 %s21, 1
    %s27 = ssub.s32 %s21, 2
    %s28 = sadd.s32 %s21, 1
    %s29 = ssub.s32 %s21, %s28
    %p30 = scmp.eq.s32.totalorder %s29, 0
    %s32 = sadd.s32 %s31, 1
    %s33 = scalar_select %p30, %s31, %s32
    %p36 = pneg %p30
    %p37 = scmp.eq.s32.totalorder %s21, 1
    %p38 = por %p36, %p37
    %p39 = scmp.ne.s32.totalorder %s31, %s34
    %p40 = scmp.eq.s32.totalorder %s21, 0
    %p41 = por %p39, %p40
    %p42 = scmp.ne.s32.totalorder %s31, %s34
    %p43 = scmp.eq.s32.totalorder %s26, 1
    %p44 = por %p42, %p43
    %p45 = scmp.ne.s32.totalorder %s34, %s35
    %p46 = scmp.eq.s32.totalorder %s26, 0
    %p47 = por %p45, %p46
    %p48 = scmp.ne.s32.totalorder %s34, %s35
    %p49 = scmp.eq.s32.totalorder %s27, 1
    %p50 = por %p48, %p49
    %p52 = scmp.ne.s32.totalorder %s35, %s51
    %p53 = scmp.eq.s32.totalorder %s27, 0
    %p54 = por %p52, %p53
    %s56 = sadd.s32 %s55, 1
    %p59 = scmp.eq.s32.totalorder %s21, 1
    %p60 = scmp.ne.s32.totalorder %s55, %s57
    %p61 = scmp.eq.s32.totalorder %s21, 0
    %p62 = por %p60, %p61
    %p63 = scmp.ne.s32.totalorder %s55, %s57
    %p64 = scmp.eq.s32.totalorder %s26, 1
    %p65 = por %p63, %p64
    %p66 = scmp.ne.s32.totalorder %s57, %s58
    %p67 = scmp.eq.s32.totalorder %s26, 0
    %p68 = por %p66, %p67
    %p69 = scmp.ne.s32.totalorder %s57, %s58
    %p70 = scmp.eq.s32.totalorder %s27, 1
    %p71 = por %p69, %p70
    %p73 = scmp.ne.s32.totalorder %s58, %s72
    %p74 = scmp.eq.s32.totalorder %s27, 0
    %p75 = por %p73, %p74
    %s77 = sadd.s32 %s76, 1
    %p80 = scmp.eq.s32.totalorder %s21, 1
    %p81 = scmp.ne.s32.totalorder %s76, %s78
    %p82 = scmp.eq.s32.totalorder %s21, 0
    %p83 = por %p81, %p82
    %p84 = scmp.ne.s32.totalorder %s76, %s78
    %p85 = scmp.eq.s32.totalorder %s26, 1
    %p86 = por %p84, %p85
    %p87 = scmp.ne.s32.totalorder %s78, %s79
    %p88 = scmp.eq.s32.totalorder %s26, 0
    %p89 = por %p87, %p88
    %p90 = scmp.ne.s32.totalorder %s78, %s79
    %p91 = scmp.eq.s32.totalorder %s27, 1
    %p92 = por %p90, %p91
    %p94 = scmp.ne.s32.totalorder %s79, %s93
    %p95 = scmp.eq.s32.totalorder %s27, 0
    %p96 = por %p94, %p95
    %s98 = sadd.s32 %s97, 1
    %p101 = scmp.eq.s32.totalorder %s21, 1
    %p102 = scmp.ne.s32.totalorder %s97, %s99
    %p103 = scmp.eq.s32.totalorder %s21, 0
    %p104 = por %p102, %p103
    %p105 = scmp.ne.s32.totalorder %s97, %s99
    %p106 = scmp.eq.s32.totalorder %s26, 1
    %p107 = por %p105, %p106
    %p108 = scmp.ne.s32.totalorder %s99, %s100
    %p109 = scmp.eq.s32.totalorder %s26, 0
    %p110 = por %p108, %p109
    %p111 = scmp.ne.s32.totalorder %s99, %s100
    %p112 = scmp.eq.s32.totalorder %s27, 1
    %p113 = por %p111, %p112
    %p115 = scmp.ne.s32.totalorder %s100, %s114
    %p116 = scmp.eq.s32.totalorder %s27, 0
    %p117 = por %p115, %p116
    %s119 = sadd.s32 %s118, 1
    %p122 = scmp.eq.s32.totalorder %s21, 1
    %p123 = scmp.ne.s32.totalorder %s118, %s120
    %p124 = scmp.eq.s32.totalorder %s21, 0
    %p125 = por %p123, %p124
    %p126 = scmp.ne.s32.totalorder %s118, %s120
    %p127 = scmp.eq.s32.totalorder %s26, 1
    %p128 = por %p126, %p127
    %p129 = scmp.ne.s32.totalorder %s120, %s121
    %p130 = scmp.eq.s32.totalorder %s26, 0
    %p131 = por %p129, %p130
    %p132 = scmp.ne.s32.totalorder %s120, %s121
    %p133 = scmp.eq.s32.totalorder %s27, 1
    %p134 = por %p132, %p133
    %p136 = scmp.ne.s32.totalorder %s121, %s135
    %p137 = scmp.eq.s32.totalorder %s27, 0
    %p138 = por %p136, %p137
    %s140 = sadd.s32 %s139, 1
    %p143 = scmp.eq.s32.totalorder %s21, 1
    %p144 = scmp.ne.s32.totalorder %s139, %s141
    %p145 = scmp.eq.s32.totalorder %s21, 0
    %p146 = por %p144, %p145
    %p147 = scmp.ne.s32.totalorder %s139, %s141
    %p148 = scmp.eq.s32.totalorder %s26, 1
    %p149 = por %p147, %p148
    %p150 = scmp.ne.s32.totalorder %s141, %s142
    %p151 = scmp.eq.s32.totalorder %s26, 0
    %p152 = por %p150, %p151
    %p153 = scmp.ne.s32.totalorder %s141, %s142
    %p154 = scmp.eq.s32.totalorder %s27, 1
    %p155 = por %p153, %p154
    %p157 = scmp.ne.s32.totalorder %s142, %s156
    %p158 = scmp.eq.s32.totalorder %s27, 0
    %p159 = por %p157, %p158
    %s161 = sadd.s32 %s160, 1
    %p164 = scmp.eq.s32.totalorder %s21, 1
    %p165 = scmp.ne.s32.totalorder %s160, %s162
    %p166 = scmp.eq.s32.totalorder %s21, 0
    %p167 = por %p165, %p166
    %p168 = scmp.ne.s32.totalorder %s160, %s162
    %p169 = scmp.eq.s32.totalorder %s26, 1
    %p170 = por %p168, %p169
    %p171 = scmp.ne.s32.totalorder %s162, %s163
    %p172 = scmp.eq.s32.totalorder %s26, 0
    %p173 = por %p171, %p172
    %p174 = scmp.ne.s32.totalorder %s162, %s163
    %p175 = scmp.eq.s32.totalorder %s27, 1
    %p176 = por %p174, %p175
    %p178 = scmp.ne.s32.totalorder %s163, %s177
    %p179 = scmp.eq.s32.totalorder %s27, 0
    %p180 = por %p178, %p179
    %s182 = sadd.s32 %s181, 1
    %p185 = scmp.eq.s32.totalorder %s21, 1
    %p186 = scmp.ne.s32.totalorder %s181, %s183
    %p187 = scmp.eq.s32.totalorder %s21, 0
    %p188 = por %p186, %p187
    %p189 = scmp.ne.s32.totalorder %s181, %s183
    %p190 = scmp.eq.s32.totalorder %s26, 1
    %p191 = por %p189, %p190
    %p192 = scmp.ne.s32.totalorder %s183, %s184
    %p193 = scmp.eq.s32.totalorder %s26, 0
    %p194 = por %p192, %p193
    %p195 = scmp.ne.s32.totalorder %s183, %s184
    %p196 = scmp.eq.s32.totalorder %s27, 1
    %p197 = por %p195, %p196
    %p199 = scmp.ne.s32.totalorder %s184, %s198
    %p200 = scmp.eq.s32.totalorder %s27, 0
    %p201 = por %p199, %p200
    %s203 = sadd.s32 %s202, 1
    %p206 = scmp.eq.s32.totalorder %s21, 1
    %p207 = scmp.ne.s32.totalorder %s202, %s204
    %p208 = scmp.eq.s32.totalorder %s21, 0
    %p209 = por %p207, %p208
    %p210 = scmp.ne.s32.totalorder %s202, %s204
    %p211 = scmp.eq.s32.totalorder %s26, 1
    %p212 = por %p210, %p211
    %p213 = scmp.ne.s32.totalorder %s204, %s205
    %p214 = scmp.eq.s32.totalorder %s26, 0
    %p215 = por %p213, %p214
    %p216 = scmp.ne.s32.totalorder %s204, %s205
    %p217 = scmp.eq.s32.totalorder %s27, 1
    %p218 = por %p216, %p217
    %p220 = scmp.ne.s32.totalorder %s205, %s219
    %p221 = scmp.eq.s32.totalorder %s27, 0
    %p222 = por %p220, %p221
    %s224 = sadd.s32 %s223, 1
    %p227 = scmp.eq.s32.totalorder %s21, 1
    %p228 = scmp.ne.s32.totalorder %s223, %s225
    %p229 = scmp.eq.s32.totalorder %s21, 0
    %p230 = por %p228, %p229
    %p231 = scmp.ne.s32.totalorder %s223, %s225
    %p232 = scmp.eq.s32.totalorder %s26, 1
    %p233 = por %p231, %p232
    %p234 = scmp.ne.s32.totalorder %s225, %s226
    %p235 = scmp.eq.s32.totalorder %s26, 0
    %p236 = por %p234, %p235
    %p237 = scmp.ne.s32.totalorder %s225, %s226
    %p238 = scmp.eq.s32.totalorder %s27, 1
    %p239 = por %p237, %p238
    %p241 = scmp.ne.s32.totalorder %s226, %s240
    %p242 = scmp.eq.s32.totalorder %s27, 0
    %p243 = por %p241, %p242
    %s245 = sadd.s32 %s244, 1
    %p248 = scmp.eq.s32.totalorder %s21, 1
    %p249 = scmp.ne.s32.totalorder %s244, %s246
    %p250 = scmp.eq.s32.totalorder %s21, 0
    %p251 = por %p249, %p250
    %p252 = scmp.ne.s32.totalorder %s244, %s246
    %p253 = scmp.eq.s32.totalorder %s26, 1
    %p254 = por %p252, %p253
    %p255 = scmp.ne.s32.totalorder %s246, %s247
    %p256 = scmp.eq.s32.totalorder %s26, 0
    %p257 = por %p255, %p256
    %p258 = scmp.ne.s32.totalorder %s246, %s247
    %p259 = scmp.eq.s32.totalorder %s27, 1
    %p260 = por %p258, %p259
    %p262 = scmp.ne.s32.totalorder %s247, %s261
    %p263 = scmp.eq.s32.totalorder %s27, 0
    %p264 = por %p262, %p263
    %s266 = sadd.s32 %s265, 1
    %p269 = scmp.eq.s32.totalorder %s21, 1
    %p270 = scmp.ne.s32.totalorder %s265, %s267
    %p271 = scmp.eq.s32.totalorder %s21, 0
    %p272 = por %p270, %p271
    %p273 = scmp.ne.s32.totalorder %s265, %s267
    %p274 = scmp.eq.s32.totalorder %s26, 1
    %p275 = por %p273, %p274
    %p276 = scmp.ne.s32.totalorder %s267, %s268
    %p277 = scmp.eq.s32.totalorder %s26, 0
    %p278 = por %p276, %p277
    %p279 = scmp.ne.s32.totalorder %s267, %s268
    %p280 = scmp.eq.s32.totalorder %s27, 1
    %p281 = por %p279, %p280
    %p283 = scmp.ne.s32.totalorder %s268, %s282
    %p284 = scmp.eq.s32.totalorder %s27, 0
    %p285 = por %p283, %p284
    %s287 = sadd.s32 %s286, 1
    %p290 = scmp.eq.s32.totalorder %s21, 1
    %p291 = scmp.ne.s32.totalorder %s286, %s288
    %p292 = scmp.eq.s32.totalorder %s21, 0
    %p293 = por %p291, %p292
    %p294 = scmp.ne.s32.totalorder %s286, %s288
    %p295 = scmp.eq.s32.totalorder %s26, 1
    %p296 = por %p294, %p295
    %p297 = scmp.ne.s32.totalorder %s288, %s289
    %p298 = scmp.eq.s32.totalorder %s26, 0
    %p299 = por %p297, %p298
    %p300 = scmp.ne.s32.totalorder %s288, %s289
    %p301 = scmp.eq.s32.totalorder %s27, 1
    %p302 = por %p300, %p301
    %p304 = scmp.ne.s32.totalorder %s289, %s303
    %p305 = scmp.eq.s32.totalorder %s27, 0
    %p306 = por %p304, %p305
    %s308 = sadd.s32 %s307, 1
    %p311 = scmp.eq.s32.totalorder %s21, 1
    %p312 = scmp.ne.s32.totalorder %s307, %s309
    %p313 = scmp.eq.s32.totalorder %s21, 0
    %p314 = por %p312, %p313
    %p315 = scmp.ne.s32.totalorder %s307, %s309
    %p316 = scmp.eq.s32.totalorder %s26, 1
    %p317 = por %p315, %p316
    %p318 = scmp.ne.s32.totalorder %s309, %s310
    %p319 = scmp.eq.s32.totalorder %s26, 0
    %p320 = por %p318, %p319
    %p321 = scmp.ne.s32.totalorder %s309, %s310
    %p322 = scmp.eq.s32.totalorder %s27, 1
    %p323 = por %p321, %p322
    %p325 = scmp.ne.s32.totalorder %s310, %s324
    %p326 = scmp.eq.s32.totalorder %s27, 0
    %p327 = por %p325, %p326
    %s329 = sadd.s32 %s328, 1
    %p332 = scmp.eq.s32.totalorder %s21, 1
    %p333 = scmp.ne.s32.totalorder %s328, %s330
    %p334 = scmp.eq.s32.totalorder %s21, 0
    %p335 = por %p333, %p334
    %p336 = scmp.ne.s32.totalorder %s328, %s330
    %p337 = scmp.eq.s32.totalorder %s26, 1
    %p338 = por %p336, %p337
    %p339 = scmp.ne.s32.totalorder %s330, %s331
    %p340 = scmp.eq.s32.totalorder %s26, 0
    %p341 = por %p339, %p340
    %p342 = scmp.ne.s32.totalorder %s330, %s331
    %p343 = scmp.eq.s32.totalorder %s27, 1
    %p344 = por %p342, %p343
    %p346 = scmp.ne.s32.totalorder %s331, %s345
    %p347 = scmp.eq.s32.totalorder %s27, 0
    %p348 = por %p346, %p347
    %s349 = ssub.s32 %s21, %s28
    %p350 = scmp.eq.s32.totalorder %s349, 0
    %s352 = sadd.s32 %s351, 1
    %s353 = scalar_select %p350, %s351, %s352
    %p356 = pneg %p350
    %p357 = scmp.eq.s32.totalorder %s21, 1
    %p358 = por %p356, %p357
    %p359 = scmp.ne.s32.totalorder %s351, %s354
    %p360 = scmp.eq.s32.totalorder %s21, 0
    %p361 = por %p359, %p360
    %p362 = scmp.ne.s32.totalorder %s351, %s354
    %p363 = scmp.eq.s32.totalorder %s26, 1
    %p364 = por %p362, %p363
    %p365 = scmp.ne.s32.totalorder %s354, %s355
    %p366 = scmp.eq.s32.totalorder %s26, 0
    %p367 = por %p365, %p366
    %p368 = scmp.ne.s32.totalorder %s354, %s355
    %p369 = scmp.eq.s32.totalorder %s27, 1
    %p370 = por %p368, %p369
    %p372 = scmp.ne.s32.totalorder %s355, %s371
    %p373 = scmp.eq.s32.totalorder %s27, 0
    %p374 = por %p372, %p373
    %p375 = scmp.le.s32.totalorder 1, %s21
    %p376 = scmp.lt.s32.totalorder %s21, 3
    %p377 = pnand %p375, %p376
    %p378 = pneg %p377
    // Predicated region
    $region9: #{stconv_forward.1} parent=5 // pred_check
      _
    $region10: #{stconv_forward.1} parent=5 // pred_check_branch
      %380 = sbr.rel (%p377) target = $region12
    $region11: #{stconv_forward.1} parent=5 // pred_region
      %s381 = ssub.s32 %s21, 1
      // Predicated region
      $region13: #{stconv_forward.1} parent=11 // pred_check
        %p382 = pneg %p68
      $region14: #{stconv_forward.1} parent=11 // pred_check_branch
        %384 = sbr.rel (%p382) target = $region16
      $region15: #{stconv_forward.1} parent=11 // pred_region
        _
      $region16: #{stconv_forward.1} parent=11 // pred_fallthru
        _
      // Predicated region
      $region17: #{stconv_forward.1} parent=11 // pred_check
        %p385 = pneg %p89
      $region18: #{stconv_forward.1} parent=11 // pred_check_branch
        %387 = sbr.rel (%p385) target = $region20
      $region19: #{stconv_forward.1} parent=11 // pred_region
        _
      $region20: #{stconv_forward.1} parent=11 // pred_fallthru
        _
      // Predicated region
      $region21: #{stconv_forward.1} parent=11 // pred_check
        %p388 = pneg %p110
      $region22: #{stconv_forward.1} parent=11 // pred_check_branch
        %390 = sbr.rel (%p388) target = $region24
      $region23: #{stconv_forward.1} parent=11 // pred_region
        _
      $region24: #{stconv_forward.1} parent=11 // pred_fallthru
        _
      // Predicated region
      $region25: #{stconv_forward.1} parent=11 // pred_check
        %p391 = pneg %p131
      $region26: #{stconv_forward.1} parent=11 // pred_check_branch
        %393 = sbr.rel (%p391) target = $region28
      $region27: #{stconv_forward.1} parent=11 // pred_region
        _
      $region28: #{stconv_forward.1} parent=11 // pred_fallthru
        _
      // Predicated region
      $region29: #{stconv_forward.1} parent=11 // pred_check
        %p394 = pneg %p152
      $region30: #{stconv_forward.1} parent=11 // pred_check_branch
        %396 = sbr.rel (%p394) target = $region32
      $region31: #{stconv_forward.1} parent=11 // pred_region
        _
      $region32: #{stconv_forward.1} parent=11 // pred_fallthru
        _
      // Predicated region
      $region33: #{stconv_forward.1} parent=11 // pred_check
        %p397 = pneg %p173
      $region34: #{stconv_forward.1} parent=11 // pred_check_branch
        %399 = sbr.rel (%p397) target = $region36
      $region35: #{stconv_forward.1} parent=11 // pred_region
        _
      $region36: #{stconv_forward.1} parent=11 // pred_fallthru
        _
      // Predicated region
      $region37: #{stconv_forward.1} parent=11 // pred_check
        %p400 = pneg %p194
      $region38: #{stconv_forward.1} parent=11 // pred_check_branch
        %402 = sbr.rel (%p400) target = $region40
      $region39: #{stconv_forward.1} parent=11 // pred_region
        _
      $region40: #{stconv_forward.1} parent=11 // pred_fallthru
        _
      // Predicated region
      $region41: #{stconv_forward.1} parent=11 // pred_check
        %p403 = pneg %p215
      $region42: #{stconv_forward.1} parent=11 // pred_check_branch
        %405 = sbr.rel (%p403) target = $region44
      $region43: #{stconv_forward.1} parent=11 // pred_region
        _
      $region44: #{stconv_forward.1} parent=11 // pred_fallthru
        _
      // Predicated region
      $region45: #{stconv_forward.1} parent=11 // pred_check
        %p406 = pneg %p236
      $region46: #{stconv_forward.1} parent=11 // pred_check_branch
        %408 = sbr.rel (%p406) target = $region48
      $region47: #{stconv_forward.1} parent=11 // pred_region
        _
      $region48: #{stconv_forward.1} parent=11 // pred_fallthru
        _
      // Predicated region
      $region49: #{stconv_forward.1} parent=11 // pred_check
        %p409 = pneg %p257
      $region50: #{stconv_forward.1} parent=11 // pred_check_branch
        %411 = sbr.rel (%p409) target = $region52
      $region51: #{stconv_forward.1} parent=11 // pred_region
        _
      $region52: #{stconv_forward.1} parent=11 // pred_fallthru
        _
      // Predicated region
      $region53: #{stconv_forward.1} parent=11 // pred_check
        %p412 = pneg %p278
      $region54: #{stconv_forward.1} parent=11 // pred_check_branch
        %414 = sbr.rel (%p412) target = $region56
      $region55: #{stconv_forward.1} parent=11 // pred_region
        _
      $region56: #{stconv_forward.1} parent=11 // pred_fallthru
        _
      // Predicated region
      $region57: #{stconv_forward.1} parent=11 // pred_check
        %p415 = pneg %p299
      $region58: #{stconv_forward.1} parent=11 // pred_check_branch
        %417 = sbr.rel (%p415) target = $region60
      $region59: #{stconv_forward.1} parent=11 // pred_region
        _
      $region60: #{stconv_forward.1} parent=11 // pred_fallthru
        _
      // Predicated region
      $region61: #{stconv_forward.1} parent=11 // pred_check
        %p418 = pneg %p320
      $region62: #{stconv_forward.1} parent=11 // pred_check_branch
        %420 = sbr.rel (%p418) target = $region64
      $region63: #{stconv_forward.1} parent=11 // pred_region
        _
      $region64: #{stconv_forward.1} parent=11 // pred_fallthru
        _
      // Predicated region
      $region65: #{stconv_forward.1} parent=11 // pred_check
        %p421 = pneg %p341
      $region66: #{stconv_forward.1} parent=11 // pred_check_branch
        %423 = sbr.rel (%p421) target = $region68
      $region67: #{stconv_forward.1} parent=11 // pred_region
        _
      $region68: #{stconv_forward.1} parent=11 // pred_fallthru
        _
    $region12: #{stconv_forward.1} parent=5 // pred_fallthru
      _
    %p424 = scmp.lt.s32.totalorder %s21, 2
    // Predicated region
    $region69: #{stconv_forward.1} parent=5 // pred_check
      %p425 = pneg %p424
    $region70: #{stconv_forward.1} parent=5 // pred_check_branch
      %427 = sbr.rel (%p425) target = $region72
    $region71: #{stconv_forward.1} parent=5 // pred_region
      // Predicated region
      $region73: #{stconv_forward.1} parent=71 // pred_check
        %p428 = pneg %p41
      $region74: #{stconv_forward.1} parent=71 // pred_check_branch
        %430 = sbr.rel (%p428) target = $region76
      $region75: #{stconv_forward.1} parent=71 // pred_region
        %p431 = scmp.lt.s32.totalorder %s21, 1
        %s432 = scalar_select %p431, %s21, 1
        %s433 = smul.addr %s432, 12
        %s434 = smul.addr %s433, 8
        %s435 = scalar_lea.vmem %s0, %s434
      $region76: #{stconv_forward.1} parent=71 // pred_fallthru
        _
    $region72: #{stconv_forward.1} parent=5 // pred_fallthru
      _
    %p436 = scmp.le.s32.totalorder 1, %s21
    %p437 = scmp.lt.s32.totalorder %s21, 3
    %p438 = pnand %p436, %p437
    %p439 = pneg %p438
    // Predicated region
    $region77: #{stconv_forward.1} parent=5 // pred_check
      _
    $region78: #{stconv_forward.1} parent=5 // pred_check_branch
      %441 = sbr.rel (%p438) target = $region80
    $region79: #{stconv_forward.1} parent=5 // pred_region
      %s442 = ssub.s32 %s21, 1
      %p443 = scmp.lt.s32.totalorder %s26, 1
      %s444 = scalar_select %p443, %s26, 1
      %s445 = smul.addr %s444, 12
      %s446 = smul.addr %s445, 8
      %s447 = scalar_lea.vmem %s0, %s446
      %p448 = pneg %p47
      %p449 = pneg %p44
      %p450 = pneg %p68
      %p451 = pneg %p65
      %p452 = pneg %p89
      %p453 = pneg %p86
      %p454 = pneg %p110
      %p455 = pneg %p107
      %p456 = pneg %p131
      %p457 = pneg %p128
      %p458 = pneg %p152
      %p459 = pneg %p149
      %p460 = pneg %p173
      %p461 = pneg %p170
      %p462 = pneg %p194
      %p463 = pneg %p191
      %p464 = pneg %p215
      %p465 = pneg %p212
      %p466 = pneg %p236
      %p467 = pneg %p233
      %p468 = pneg %p257
      %p469 = pneg %p254
      %p470 = pneg %p278
      %p471 = pneg %p275
      %p472 = pneg %p299
      %p473 = pneg %p296
      %p474 = pneg %p320
      %p475 = pneg %p317
      %p476 = pneg %p341
      %p477 = pneg %p338
      %p478 = pneg %p367
      %p479 = pneg %p364
      %p480 = scmp.lt.s32.totalorder %s26, 1
      %s481 = scalar_select %p480, %s26, 1
      %s482 = smul.addr %s481, 12
      %s483 = smul.addr %s482, 8
      %s484 = scalar_lea.vmem %s15, %s483
      %p485 = scmp.lt.s32.totalorder %s26, 1
      %s486 = scalar_select %p485, %s26, 1
      %s487 = smul.addr %s486, 12
      %s488 = smul.addr %s487, 8
      %s489 = scalar_lea.vmem %s0, %s488
      %p490 = scmp.lt.s32.totalorder %s26, 1
      %s491 = scalar_select %p490, %s26, 1
      %s492 = smul.addr %s491, 12
      %s493 = smul.addr %s492, 8
      %s494 = scalar_lea.vmem %s15, %s493
      %v496 = vld [vmem:[%s489] sm:$0xff]
      %v497 = vld [vmem:[%s489 + $0x8] sm:$0xff]
      %v498 = vld [vmem:[%s489 + $0x10] sm:$0xff]
      %v499 = vld [vmem:[%s489 + $0x18] sm:$0xff]
      %v500 = vld [vmem:[%s489 + $0x20] sm:$0xff]
      %v501 = vld [vmem:[%s489 + $0x28] sm:$0xff]
      %v502 = vld [vmem:[%s489 + $0x30] sm:$0xff]
      %v503 = vld [vmem:[%s489 + $0x38] sm:$0xff]
      %v504 = vld [vmem:[%s489 + $0x40] sm:$0xff]
      %v505 = vld [vmem:[%s489 + $0x48] sm:$0xff]
      %v506 = vld [vmem:[%s489 + $0x50] sm:$0xff]
      %v507 = vld [vmem:[%s489 + $0x58] sm:$0xff]
      %v508 = vpack.c.bf16 %v499, %v496
      %v509 = vpack.c.bf16 %v500, %v497
      %v510 = vpack.c.bf16 %v501, %v498
      %v511 = vpack.c.bf16 %v505, %v502
      %v512 = vpack.c.bf16 %v506, %v503
      %v513 = vpack.c.bf16 %v507, %v504
      %v514 = vld [vmem:[%s1] sm:$0xff]
      %v515 = vld [vmem:[%s1 + $0x8] sm:$0xf]
      %v516 = vld [vmem:[%s1 + $0xc] sm:$0xff]
      %v517 = vld [vmem:[%s1 + $0x14] sm:$0xf]
      %v518 = vld [vmem:[%s1 + $0x18] sm:$0xff]
      %v519 = vld [vmem:[%s1 + $0x20] sm:$0xf]
      %v520 = vld [vmem:[%s1 + $0x24] sm:$0xff]
      %v521 = vld [vmem:[%s1 + $0x2c] sm:$0xf]
      %v522 = vld [vmem:[%s1 + $0x30] sm:$0xff]
      %v523 = vld [vmem:[%s1 + $0x38] sm:$0xf]
      %v524 = vld [vmem:[%s1 + $0x3c] sm:$0xff]
      %v525 = vld [vmem:[%s1 + $0x44] sm:$0xf]
      %v526 = vld [vmem:[%s1 + $0x48] sm:$0xff]
      %v527 = vld [vmem:[%s1 + $0x50] sm:$0xf]
      %v528 = vld [vmem:[%s1 + $0x54] sm:$0xff]
      %v529 = vld [vmem:[%s1 + $0x5c] sm:$0xf]
      %v530 = vld [vmem:[%s1 + $0x60] sm:$0xff]
      %v531 = vld [vmem:[%s1 + $0x68] sm:$0xf]
      %v532 = vld [vmem:[%s1 + $0x6c] sm:$0xff]
      %v533 = vld [vmem:[%s1 + $0x74] sm:$0xf]
      %v534 = vld [vmem:[%s1 + $0x78] sm:$0xff]
      %v535 = vld [vmem:[%s1 + $0x80] sm:$0xf]
      %v536 = vld [vmem:[%s1 + $0x84] sm:$0xff]
      %v537 = vld [vmem:[%s1 + $0x8c] sm:$0xf]
      %v538 = vld [vmem:[%s1 + $0x90] sm:$0xff]
      %v539 = vld [vmem:[%s1 + $0x98] sm:$0xf]
      %v540 = vld [vmem:[%s1 + $0x9c] sm:$0xff]
      %v541 = vld [vmem:[%s1 + $0xa4] sm:$0xf]
      %v542 = vld [vmem:[%s1 + $0xa8] sm:$0xff]
      %v543 = vld [vmem:[%s1 + $0xb0] sm:$0xf]
      %v544 = vld [vmem:[%s1 + $0xb4] sm:$0xff]
      %v545 = vld [vmem:[%s1 + $0xbc] sm:$0xf]
      %v546 = vld [vmem:[%s1 + $0xc0] sm:$0xff]
      %v547 = vld [vmem:[%s1 + $0xc8] sm:$0xf]
      %v548 = vld [vmem:[%s1 + $0xcc] sm:$0xff]
      %v549 = vld [vmem:[%s1 + $0xd4] sm:$0xf]
      %v550 = vld [vmem:[%s1 + $0xd8] sm:$0xff]
      %v551 = vld [vmem:[%s1 + $0xe0] sm:$0xf]
      %v552 = vld [vmem:[%s1 + $0xe4] sm:$0xff]
      %v553 = vld [vmem:[%s1 + $0xec] sm:$0xf]
      %v554 = vld [vmem:[%s1 + $0xf0] sm:$0xff]
      %v555 = vld [vmem:[%s1 + $0xf8] sm:$0xf]
      %v556 = vld [vmem:[%s1 + $0xfc] sm:$0xff]
      %v557 = vld [vmem:[%s1 + $0x104] sm:$0xf]
      %v558 = vld [vmem:[%s1 + $0x108] sm:$0xff]
      %v559 = vld [vmem:[%s1 + $0x110] sm:$0xf]
      %v560 = vld [vmem:[%s1 + $0x114] sm:$0xff]
      %v561 = vld [vmem:[%s1 + $0x11c] sm:$0xf]
      %v562 = vld [vmem:[%s1 + $0x120] sm:$0xff]
      %v563 = vld [vmem:[%s1 + $0x128] sm:$0xf]
      %v564 = vld [vmem:[%s1 + $0x12c] sm:$0xff]
      %v565 = vld [vmem:[%s1 + $0x134] sm:$0xf]
      %v566 = vld [vmem:[%s1 + $0x138] sm:$0xff]
      %v567 = vld [vmem:[%s1 + $0x140] sm:$0xf]
      %v568 = vld [vmem:[%s1 + $0x144] sm:$0xff]
      %v569 = vld [vmem:[%s1 + $0x14c] sm:$0xf]
      %v570 = vld [vmem:[%s1 + $0x150] sm:$0xff]
      %v571 = vld [vmem:[%s1 + $0x158] sm:$0xf]
      %v572 = vld [vmem:[%s1 + $0x15c] sm:$0xff]
      %v573 = vld [vmem:[%s1 + $0x164] sm:$0xf]
      %v574 = vld [vmem:[%s1 + $0x168] sm:$0xff]
      %v575 = vld [vmem:[%s1 + $0x170] sm:$0xf]
      %v576 = vld [vmem:[%s1 + $0x174] sm:$0xff]
      %v577 = vld [vmem:[%s1 + $0x17c] sm:$0xf]
      %v578 = vld [vmem:[%s1 + $0x180] sm:$0xff]
      %v579 = vld [vmem:[%s1 + $0x188] sm:$0xf]
      %v580 = vld [vmem:[%s1 + $0x18c] sm:$0xff]
      %v581 = vld [vmem:[%s1 + $0x194] sm:$0xf]
      %v582 = vld [vmem:[%s1 + $0x198] sm:$0xff]
      %v583 = vld [vmem:[%s1 + $0x1a0] sm:$0xf]
      %v584 = vld [vmem:[%s1 + $0x1a4] sm:$0xff]
      %v585 = vld [vmem:[%s1 + $0x1ac] sm:$0xf]
      %v586 = vld [vmem:[%s1 + $0x1b0] sm:$0xff]
      %v587 = vld [vmem:[%s1 + $0x1b8] sm:$0xf]
      %v588 = vld [vmem:[%s1 + $0x1bc] sm:$0xff]
      %v589 = vld [vmem:[%s1 + $0x1c4] sm:$0xf]
      %v590 = vld [vmem:[%s1 + $0x1c8] sm:$0xff]
      %v591 = vld [vmem:[%s1 + $0x1d0] sm:$0xf]
      %v592 = vld [vmem:[%s1 + $0x1d4] sm:$0xff]
      %v593 = vld [vmem:[%s1 + $0x1dc] sm:$0xf]
      %v594 = vld [vmem:[%s1 + $0x1e0] sm:$0xff]
      %v595 = vld [vmem:[%s1 + $0x1e8] sm:$0xf]
      %v596 = vld [vmem:[%s1 + $0x1ec] sm:$0xff]
      %v597 = vld [vmem:[%s1 + $0x1f4] sm:$0xf]
      %v598 = vld [vmem:[%s1 + $0x1f8] sm:$0xff]
      %v599 = vld [vmem:[%s1 + $0x200] sm:$0xf]
      %v600 = vld [vmem:[%s1 + $0x204] sm:$0xff]
      %v601 = vld [vmem:[%s1 + $0x20c] sm:$0xf]
      %v602 = vld [vmem:[%s1 + $0x210] sm:$0xff]
      %v603 = vld [vmem:[%s1 + $0x218] sm:$0xf]
      %v604 = vld [vmem:[%s1 + $0x21c] sm:$0xff]
      %v605 = vld [vmem:[%s1 + $0x224] sm:$0xf]
      %v606 = vld [vmem:[%s1 + $0x228] sm:$0xff]
      %v607 = vld [vmem:[%s1 + $0x230] sm:$0xf]
      %v608 = vld [vmem:[%s1 + $0x234] sm:$0xff]
      %v609 = vld [vmem:[%s1 + $0x23c] sm:$0xf]
      %v706 = vunpack.c.l.b16 %v514
      %v707 = vunpack.c.h.b16 %v514
      %v708 = vunpack.c.l.b16 %v515
      %v709 = vunpack.c.l.b16 %v516
      %v710 = vunpack.c.h.b16 %v516
      %v711 = vunpack.c.l.b16 %v517
      %v712 = vunpack.c.l.b16 %v518
      %v713 = vunpack.c.h.b16 %v518
      %v714 = vunpack.c.l.b16 %v519
      %v715 = vunpack.c.l.b16 %v520
      %v716 = vunpack.c.h.b16 %v520
      %v717 = vunpack.c.l.b16 %v521
      %v718 = vunpack.c.l.b16 %v522
      %v719 = vunpack.c.h.b16 %v522
      %v720 = vunpack.c.l.b16 %v523
      %v721 = vunpack.c.l.b16 %v524
      %v722 = vunpack.c.h.b16 %v524
      %v723 = vunpack.c.l.b16 %v525
      %v724 = vunpack.c.l.b16 %v526
      %v725 = vunpack.c.h.b16 %v526
      %v726 = vunpack.c.l.b16 %v527
      %v727 = vunpack.c.l.b16 %v528
      %v728 = vunpack.c.h.b16 %v528
      %v729 = vunpack.c.l.b16 %v529
      %v730 = vunpack.c.l.b16 %v530
      %v731 = vunpack.c.h.b16 %v530
      %v732 = vunpack.c.l.b16 %v531
      %v733 = vunpack.c.l.b16 %v532
      %v734 = vunpack.c.h.b16 %v532
      %v735 = vunpack.c.l.b16 %v533
      %v736 = vunpack.c.l.b16 %v534
      %v737 = vunpack.c.h.b16 %v534
      %v738 = vunpack.c.l.b16 %v535
      %v739 = vunpack.c.l.b16 %v536
      %v740 = vunpack.c.h.b16 %v536
      %v741 = vunpack.c.l.b16 %v537
      %v742 = vunpack.c.l.b16 %v538
      %v743 = vunpack.c.h.b16 %v538
      %v744 = vunpack.c.l.b16 %v539
      %v745 = vunpack.c.l.b16 %v540
      %v746 = vunpack.c.h.b16 %v540
      %v747 = vunpack.c.l.b16 %v541
      %v748 = vunpack.c.l.b16 %v542
      %v749 = vunpack.c.h.b16 %v542
      %v750 = vunpack.c.l.b16 %v543
      %v751 = vunpack.c.l.b16 %v544
      %v752 = vunpack.c.h.b16 %v544
      %v753 = vunpack.c.l.b16 %v545
      %v754 = vunpack.c.l.b16 %v546
      %v755 = vunpack.c.h.b16 %v546
      %v756 = vunpack.c.l.b16 %v547
      %v757 = vunpack.c.l.b16 %v548
      %v758 = vunpack.c.h.b16 %v548
      %v759 = vunpack.c.l.b16 %v549
      %v760 = vunpack.c.l.b16 %v550
      %v761 = vunpack.c.h.b16 %v550
      %v762 = vunpack.c.l.b16 %v551
      %v763 = vunpack.c.l.b16 %v552
      %v764 = vunpack.c.h.b16 %v552
      %v765 = vunpack.c.l.b16 %v553
      %v766 = vunpack.c.l.b16 %v554
      %v767 = vunpack.c.h.b16 %v554
      %v768 = vunpack.c.l.b16 %v555
      %v769 = vunpack.c.l.b16 %v556
      %v770 = vunpack.c.h.b16 %v556
      %v771 = vunpack.c.l.b16 %v557
      %v772 = vunpack.c.l.b16 %v558
      %v773 = vunpack.c.h.b16 %v558
      %v774 = vunpack.c.l.b16 %v559
      %v775 = vunpack.c.l.b16 %v560
      %v776 = vunpack.c.h.b16 %v560
      %v777 = vunpack.c.l.b16 %v561
      %v778 = vunpack.c.l.b16 %v562
      %v779 = vunpack.c.h.b16 %v562
      %v780 = vunpack.c.l.b16 %v563
      %v781 = vunpack.c.l.b16 %v564
      %v782 = vunpack.c.h.b16 %v564
      %v783 = vunpack.c.l.b16 %v565
      %v784 = vunpack.c.l.b16 %v566
      %v785 = vunpack.c.h.b16 %v566
      %v786 = vunpack.c.l.b16 %v567
      %v787 = vunpack.c.l.b16 %v568
      %v788 = vunpack.c.h.b16 %v568
      %v789 = vunpack.c.l.b16 %v569
      %v790 = vunpack.c.l.b16 %v570
      %v791 = vunpack.c.h.b16 %v570
      %v792 = vunpack.c.l.b16 %v571
      %v793 = vunpack.c.l.b16 %v572
      %v794 = vunpack.c.h.b16 %v572
      %v795 = vunpack.c.l.b16 %v573
      %v796 = vunpack.c.l.b16 %v574
      %v797 = vunpack.c.h.b16 %v574
      %v798 = vunpack.c.l.b16 %v575
      %v799 = vunpack.c.l.b16 %v576
      %v800 = vunpack.c.h.b16 %v576
      %v801 = vunpack.c.l.b16 %v577
      %v802 = vunpack.c.l.b16 %v578
      %v803 = vunpack.c.h.b16 %v578
      %v804 = vunpack.c.l.b16 %v579
      %v805 = vunpack.c.l.b16 %v580
      %v806 = vunpack.c.h.b16 %v580
      %v807 = vunpack.c.l.b16 %v581
      %v808 = vunpack.c.l.b16 %v582
      %v809 = vunpack.c.h.b16 %v582
      %v810 = vunpack.c.l.b16 %v583
      %v811 = vunpack.c.l.b16 %v584
      %v812 = vunpack.c.h.b16 %v584
      %v813 = vunpack.c.l.b16 %v585
      %v814 = vunpack.c.l.b16 %v586
      %v815 = vunpack.c.h.b16 %v586
      %v816 = vunpack.c.l.b16 %v587
      %v817 = vunpack.c.l.b16 %v588
      %v818 = vunpack.c.h.b16 %v588
      %v819 = vunpack.c.l.b16 %v589
      %v820 = vunpack.c.l.b16 %v590
      %v821 = vunpack.c.h.b16 %v590
      %v822 = vunpack.c.l.b16 %v591
      %v823 = vunpack.c.l.b16 %v592
      %v824 = vunpack.c.h.b16 %v592
      %v825 = vunpack.c.l.b16 %v593
      %v826 = vunpack.c.l.b16 %v594
      %v827 = vunpack.c.h.b16 %v594
      %v828 = vunpack.c.l.b16 %v595
      %v829 = vunpack.c.l.b16 %v596
      %v830 = vunpack.c.h.b16 %v596
      %v831 = vunpack.c.l.b16 %v597
      %v832 = vunpack.c.l.b16 %v598
      %v833 = vunpack.c.h.b16 %v598
      %v834 = vunpack.c.l.b16 %v599
      %v835 = vunpack.c.l.b16 %v600
      %v836 = vunpack.c.h.b16 %v600
      %v837 = vunpack.c.l.b16 %v601
      %v838 = vunpack.c.l.b16 %v602
      %v839 = vunpack.c.h.b16 %v602
      %v840 = vunpack.c.l.b16 %v603
      %v841 = vunpack.c.l.b16 %v604
      %v842 = vunpack.c.h.b16 %v604
      %v843 = vunpack.c.l.b16 %v605
      %v844 = vunpack.c.l.b16 %v606
      %v845 = vunpack.c.h.b16 %v606
      %v846 = vunpack.c.l.b16 %v607
      %v847 = vunpack.c.l.b16 %v608
      %v848 = vunpack.c.h.b16 %v608
      %v849 = vunpack.c.l.b16 %v609
      %v850 = vpack.c.b16 %v709, %v706
      %v851 = vpack.c.b16 %v710, %v707
      %v852 = vpack.c.b16 %v711, %v708
      %v853 = vpack.c.b16 %v715, %v712
      %v854 = vpack.c.b16 %v716, %v713
      %v855 = vpack.c.b16 %v717, %v714
      %v856 = vpack.c.b16 %v721, %v718
      %v857 = vpack.c.b16 %v722, %v719
      %v858 = vpack.c.b16 %v723, %v720
      %v859 = vpack.c.b16 %v727, %v724
      %v860 = vpack.c.b16 %v728, %v725
      %v861 = vpack.c.b16 %v729, %v726
      %v862 = vpack.c.b16 %v733, %v730
      %v863 = vpack.c.b16 %v734, %v731
      %v864 = vpack.c.b16 %v735, %v732
      %v865 = vpack.c.b16 %v739, %v736
      %v866 = vpack.c.b16 %v740, %v737
      %v867 = vpack.c.b16 %v741, %v738
      %v868 = vpack.c.b16 %v745, %v742
      %v869 = vpack.c.b16 %v746, %v743
      %v870 = vpack.c.b16 %v747, %v744
      %v871 = vpack.c.b16 %v751, %v748
      %v872 = vpack.c.b16 %v752, %v749
      %v873 = vpack.c.b16 %v753, %v750
      %v874 = vpack.c.b16 %v757, %v754
      %v875 = vpack.c.b16 %v758, %v755
      %v876 = vpack.c.b16 %v759, %v756
      %v877 = vpack.c.b16 %v763, %v760
      %v878 = vpack.c.b16 %v764, %v761
      %v879 = vpack.c.b16 %v765, %v762
      %v880 = vpack.c.b16 %v769, %v766
      %v881 = vpack.c.b16 %v770, %v767
      %v882 = vpack.c.b16 %v771, %v768
      %v883 = vpack.c.b16 %v775, %v772
      %v884 = vpack.c.b16 %v776, %v773
      %v885 = vpack.c.b16 %v777, %v774
      %v886 = vpack.c.b16 %v781, %v778
      %v887 = vpack.c.b16 %v782, %v779
      %v888 = vpack.c.b16 %v783, %v780
      %v889 = vpack.c.b16 %v787, %v784
      %v890 = vpack.c.b16 %v788, %v785
      %v891 = vpack.c.b16 %v789, %v786
      %v892 = vpack.c.b16 %v793, %v790
      %v893 = vpack.c.b16 %v794, %v791
      %v894 = vpack.c.b16 %v795, %v792
      %v895 = vpack.c.b16 %v799, %v796
      %v896 = vpack.c.b16 %v800, %v797
      %v897 = vpack.c.b16 %v801, %v798
      %v898 = vpack.c.b16 %v805, %v802
      %v899 = vpack.c.b16 %v806, %v803
      %v900 = vpack.c.b16 %v807, %v804
      %v901 = vpack.c.b16 %v811, %v808
      %v902 = vpack.c.b16 %v812, %v809
      %v903 = vpack.c.b16 %v813, %v810
      %v904 = vpack.c.b16 %v817, %v814
      %v905 = vpack.c.b16 %v818, %v815
      %v906 = vpack.c.b16 %v819, %v816
      %v907 = vpack.c.b16 %v823, %v820
      %v908 = vpack.c.b16 %v824, %v821
      %v909 = vpack.c.b16 %v825, %v822
      %v910 = vpack.c.b16 %v829, %v826
      %v911 = vpack.c.b16 %v830, %v827
      %v912 = vpack.c.b16 %v831, %v828
      %v913 = vpack.c.b16 %v835, %v832
      %v914 = vpack.c.b16 %v836, %v833
      %v915 = vpack.c.b16 %v837, %v834
      %v916 = vpack.c.b16 %v841, %v838
      %v917 = vpack.c.b16 %v842, %v839
      %v918 = vpack.c.b16 %v843, %v840
      %v919 = vpack.c.b16 %v847, %v844
      %v920 = vpack.c.b16 %v848, %v845
      %v921 = vpack.c.b16 %v849, %v846
      %994 = vmatpush.bf16.msra.mxu0 %v871
      %995 = vmatpush.bf16.msra.mxu0 %v868
      %996 = vmatpush.bf16.msra.mxu0 %v865
      %997 = vmatpush.bf16.msra.mxu0 %v862
      %998 = vmatpush.bf16.msra.mxu0 %v859
      %999 = vmatpush.bf16.msra.mxu0 %v856
      %1000 = vmatpush.bf16.msra.mxu0 %v853
      %1001 = vmatpush.bf16.msra.mxu0 %v850
      %1002 = vmatmul.bf16.gmra.mxu0 %v508
      %v1003 = vpop.f32.mrf.mxu0
      %v1004 = vadd.f32 0.0, %v1003
      %v1005 = vpop.f32.mrf.mxu0
      %v1006 = vadd.f32 0.0, %v1005
      %1007 = vmatmul.bf16.gmra.mxu0 %v511
      %v1008 = vpop.f32.mrf.mxu0
      %v1009 = vadd.f32 0.0, %v1008
      %v1010 = vpop.f32.mrf.mxu0
      %v1011 = vadd.f32 0.0, %v1010
      %1012 = vdwg.mxu0
      %1013 = vmatpush.bf16.msra.mxu0 %v895
      %1014 = vmatpush.bf16.msra.mxu0 %v892
      %1015 = vmatpush.bf16.msra.mxu0 %v889
      %1016 = vmatpush.bf16.msra.mxu0 %v886
      %1017 = vmatpush.bf16.msra.mxu0 %v883
      %1018 = vmatpush.bf16.msra.mxu0 %v880
      %1019 = vmatpush.bf16.msra.mxu0 %v877
      %1020 = vmatpush.bf16.msra.mxu0 %v874
      %1021 = vmatmul.bf16.gmra.mxu0 %v509
      %v1022 = vpop.f32.mrf.mxu0
      %v1023 = vadd.f32 %v1004, %v1022
      %v1024 = vpop.f32.mrf.mxu0
      %v1025 = vadd.f32 %v1006, %v1024
      %1026 = vmatmul.bf16.gmra.mxu0 %v512
      %v1027 = vpop.f32.mrf.mxu0
      %v1028 = vadd.f32 %v1009, %v1027
      %v1029 = vpop.f32.mrf.mxu0
      %v1030 = vadd.f32 %v1011, %v1029
      %1031 = vdwg.mxu0
      %1032 = vmatpush.bf16.msra.mxu0 %v919
      %1033 = vmatpush.bf16.msra.mxu0 %v916
      %1034 = vmatpush.bf16.msra.mxu0 %v913
      %1035 = vmatpush.bf16.msra.mxu0 %v910
      %1036 = vmatpush.bf16.msra.mxu0 %v907
      %1037 = vmatpush.bf16.msra.mxu0 %v904
      %1038 = vmatpush.bf16.msra.mxu0 %v901
      %1039 = vmatpush.bf16.msra.mxu0 %v898
      %1040 = vmatmul.bf16.gmra.mxu0 %v510
      %v1041 = vpop.f32.mrf.mxu0
      %v1042 = vadd.f32 %v1023, %v1041
      %v1043 = vpop.f32.mrf.mxu0
      %v1044 = vadd.f32 %v1025, %v1043
      %1045 = vmatmul.bf16.gmra.mxu0 %v513
      %v1046 = vpop.f32.mrf.mxu0
      %v1047 = vadd.f32 %v1028, %v1046
      %v1048 = vpop.f32.mrf.mxu0
      %v1049 = vadd.f32 %v1030, %v1048
      %1050 = vdwg.mxu0
      %1051 = vmatpush.bf16.msra.mxu0 %v872
      %1052 = vmatpush.bf16.msra.mxu0 %v869
      %1053 = vmatpush.bf16.msra.mxu0 %v866
      %1054 = vmatpush.bf16.msra.mxu0 %v863
      %1055 = vmatpush.bf16.msra.mxu0 %v860
      %1056 = vmatpush.bf16.msra.mxu0 %v857
      %1057 = vmatpush.bf16.msra.mxu0 %v854
      %1058 = vmatpush.bf16.msra.mxu0 %v851
      %1059 = vmatmul.bf16.gmra.mxu0 %v508
      %v1060 = vpop.f32.mrf.mxu0
      %v1061 = vadd.f32 0.0, %v1060
      %v1062 = vpop.f32.mrf.mxu0
      %v1063 = vadd.f32 0.0, %v1062
      %1064 = vmatmul.bf16.gmra.mxu0 %v511
      %v1065 = vpop.f32.mrf.mxu0
      %v1066 = vadd.f32 0.0, %v1065
      %v1067 = vpop.f32.mrf.mxu0
      %v1068 = vadd.f32 0.0, %v1067
      %1069 = vdwg.mxu0
      %1070 = vmatpush.bf16.msra.mxu0 %v896
      %1071 = vmatpush.bf16.msra.mxu0 %v893
      %1072 = vmatpush.bf16.msra.mxu0 %v890
      %1073 = vmatpush.bf16.msra.mxu0 %v887
      %1074 = vmatpush.bf16.msra.mxu0 %v884
      %1075 = vmatpush.bf16.msra.mxu0 %v881
      %1076 = vmatpush.bf16.msra.mxu0 %v878
      %1077 = vmatpush.bf16.msra.mxu0 %v875
      %1078 = vmatmul.bf16.gmra.mxu0 %v509
      %v1079 = vpop.f32.mrf.mxu0
      %v1080 = vadd.f32 %v1061, %v1079
      %v1081 = vpop.f32.mrf.mxu0
      %v1082 = vadd.f32 %v1063, %v1081
      %1083 = vmatmul.bf16.gmra.mxu0 %v512
      %v1084 = vpop.f32.mrf.mxu0
      %v1085 = vadd.f32 %v1066, %v1084
      %v1086 = vpop.f32.mrf.mxu0
      %v1087 = vadd.f32 %v1068, %v1086
      %1088 = vdwg.mxu0
      %1089 = vmatpush.bf16.msra.mxu0 %v920
      %1090 = vmatpush.bf16.msra.mxu0 %v917
      %1091 = vmatpush.bf16.msra.mxu0 %v914
      %1092 = vmatpush.bf16.msra.mxu0 %v911
      %1093 = vmatpush.bf16.msra.mxu0 %v908
      %1094 = vmatpush.bf16.msra.mxu0 %v905
      %1095 = vmatpush.bf16.msra.mxu0 %v902
      %1096 = vmatpush.bf16.msra.mxu0 %v899
      %1097 = vmatmul.bf16.gmra.mxu0 %v510
      %v1098 = vpop.f32.mrf.mxu0
      %v1099 = vadd.f32 %v1080, %v1098
      %v1100 = vpop.f32.mrf.mxu0
      %v1101 = vadd.f32 %v1082, %v1100
      %1102 = vmatmul.bf16.gmra.mxu0 %v513
      %v1103 = vpop.f32.mrf.mxu0
      %v1104 = vadd.f32 %v1085, %v1103
      %v1105 = vpop.f32.mrf.mxu0
      %v1106 = vadd.f32 %v1087, %v1105
      %1107 = vdwg.mxu0
      %1108 = vmatpush.bf16.msra.mxu0 %v873
      %1109 = vmatpush.bf16.msra.mxu0 %v870
      %1110 = vmatpush.bf16.msra.mxu0 %v867
      %1111 = vmatpush.bf16.msra.mxu0 %v864
      %1112 = vmatpush.bf16.msra.mxu0 %v861
      %1113 = vmatpush.bf16.msra.mxu0 %v858
      %1114 = vmatpush.bf16.msra.mxu0 %v855
      %1115 = vmatpush.bf16.msra.mxu0 %v852
      %1116 = vmatmul.bf16.gmra.mxu0 %v508
      %v1117 = vpop.f32.mrf.mxu0
      %v1118 = vadd.f32 0.0, %v1117
      %v1119 = vpop.f32.mrf.mxu0
      %v1120 = vadd.f32 0.0, %v1119
      %1121 = vmatmul.bf16.gmra.mxu0 %v511
      %v1122 = vpop.f32.mrf.mxu0
      %v1123 = vadd.f32 0.0, %v1122
      %v1124 = vpop.f32.mrf.mxu0
      %v1125 = vadd.f32 0.0, %v1124
      %1126 = vdwg.mxu0
      %1127 = vmatpush.bf16.msra.mxu0 %v897
      %1128 = vmatpush.bf16.msra.mxu0 %v894
      %1129 = vmatpush.bf16.msra.mxu0 %v891
      %1130 = vmatpush.bf16.msra.mxu0 %v888
      %1131 = vmatpush.bf16.msra.mxu0 %v885
      %1132 = vmatpush.bf16.msra.mxu0 %v882
      %1133 = vmatpush.bf16.msra.mxu0 %v879
      %1134 = vmatpush.bf16.msra.mxu0 %v876
      %1135 = vmatmul.bf16.gmra.mxu0 %v509
      %v1136 = vpop.f32.mrf.mxu0
      %v1137 = vadd.f32 %v1118, %v1136
      %v1138 = vpop.f32.mrf.mxu0
      %v1139 = vadd.f32 %v1120, %v1138
      %1140 = vmatmul.bf16.gmra.mxu0 %v512
      %v1141 = vpop.f32.mrf.mxu0
      %v1142 = vadd.f32 %v1123, %v1141
      %v1143 = vpop.f32.mrf.mxu0
      %v1144 = vadd.f32 %v1125, %v1143
      %1145 = vdwg.mxu0
      %1146 = vmatpush.bf16.msra.mxu0 %v921
      %1147 = vmatpush.bf16.msra.mxu0 %v918
      %1148 = vmatpush.bf16.msra.mxu0 %v915
      %1149 = vmatpush.bf16.msra.mxu0 %v912
      %1150 = vmatpush.bf16.msra.mxu0 %v909
      %1151 = vmatpush.bf16.msra.mxu0 %v906
      %1152 = vmatpush.bf16.msra.mxu0 %v903
      %1153 = vmatpush.bf16.msra.mxu0 %v900
      %1154 = vmatmul.bf16.gmra.mxu0 %v510
      %v1155 = vpop.f32.mrf.mxu0
      %v1156 = vadd.f32 %v1137, %v1155
      %v1157 = vpop.f32.mrf.mxu0
      %v1158 = vadd.f32 %v1139, %v1157
      %1159 = vmatmul.bf16.gmra.mxu0 %v513
      %v1160 = vpop.f32.mrf.mxu0
      %v1161 = vadd.f32 %v1142, %v1160
      %v1162 = vpop.f32.mrf.mxu0
      %v1163 = vadd.f32 %v1144, %v1162
      %1164 = vdwg.mxu0
      %v1165 = vpack.c.bf16 %v1044, %v1042
      %v1166 = vpack.c.bf16 %v1101, %v1099
      %v1167 = vpack.c.bf16 %v1158, %v1156
      %v1168 = vpack.c.bf16 %v1049, %v1047
      %v1169 = vpack.c.bf16 %v1106, %v1104
      %v1170 = vpack.c.bf16 %v1163, %v1161
      %v1171 = vld [vmem:[%s2] sm:$0xff]
      %v1172 = vld [vmem:[%s2 + $0x8] sm:$0xf]
      %v1173 = vld [vmem:[%s2 + $0xc] sm:$0xff]
      %v1174 = vld [vmem:[%s2 + $0x14] sm:$0xf]
      %v1175 = vld [vmem:[%s2 + $0x18] sm:$0xff]
      %v1176 = vld [vmem:[%s2 + $0x20] sm:$0xf]
      %v1177 = vld [vmem:[%s2 + $0x24] sm:$0xff]
      %v1178 = vld [vmem:[%s2 + $0x2c] sm:$0xf]
      %v1179 = vld [vmem:[%s2 + $0x30] sm:$0xff]
      %v1180 = vld [vmem:[%s2 + $0x38] sm:$0xf]
      %v1181 = vld [vmem:[%s2 + $0x3c] sm:$0xff]
      %v1182 = vld [vmem:[%s2 + $0x44] sm:$0xf]
      %v1183 = vld [vmem:[%s2 + $0x48] sm:$0xff]
      %v1184 = vld [vmem:[%s2 + $0x50] sm:$0xf]
      %v1185 = vld [vmem:[%s2 + $0x54] sm:$0xff]
      %v1186 = vld [vmem:[%s2 + $0x5c] sm:$0xf]
      %v1187 = vld [vmem:[%s2 + $0x60] sm:$0xff]
      %v1188 = vld [vmem:[%s2 + $0x68] sm:$0xf]
      %v1189 = vld [vmem:[%s2 + $0x6c] sm:$0xff]
      %v1190 = vld [vmem:[%s2 + $0x74] sm:$0xf]
      %v1191 = vld [vmem:[%s2 + $0x78] sm:$0xff]
      %v1192 = vld [vmem:[%s2 + $0x80] sm:$0xf]
      %v1193 = vld [vmem:[%s2 + $0x84] sm:$0xff]
      %v1194 = vld [vmem:[%s2 + $0x8c] sm:$0xf]
      %v1195 = vld [vmem:[%s2 + $0x90] sm:$0xff]
      %v1196 = vld [vmem:[%s2 + $0x98] sm:$0xf]
      %v1197 = vld [vmem:[%s2 + $0x9c] sm:$0xff]
      %v1198 = vld [vmem:[%s2 + $0xa4] sm:$0xf]
      %v1199 = vld [vmem:[%s2 + $0xa8] sm:$0xff]
      %v1200 = vld [vmem:[%s2 + $0xb0] sm:$0xf]
      %v1201 = vld [vmem:[%s2 + $0xb4] sm:$0xff]
      %v1202 = vld [vmem:[%s2 + $0xbc] sm:$0xf]
      %v1203 = vld [vmem:[%s2 + $0xc0] sm:$0xff]
      %v1204 = vld [vmem:[%s2 + $0xc8] sm:$0xf]
      %v1205 = vld [vmem:[%s2 + $0xcc] sm:$0xff]
      %v1206 = vld [vmem:[%s2 + $0xd4] sm:$0xf]
      %v1207 = vld [vmem:[%s2 + $0xd8] sm:$0xff]
      %v1208 = vld [vmem:[%s2 + $0xe0] sm:$0xf]
      %v1209 = vld [vmem:[%s2 + $0xe4] sm:$0xff]
      %v1210 = vld [vmem:[%s2 + $0xec] sm:$0xf]
      %v1211 = vld [vmem:[%s2 + $0xf0] sm:$0xff]
      %v1212 = vld [vmem:[%s2 + $0xf8] sm:$0xf]
      %v1213 = vld [vmem:[%s2 + $0xfc] sm:$0xff]
      %v1214 = vld [vmem:[%s2 + $0x104] sm:$0xf]
      %v1215 = vld [vmem:[%s2 + $0x108] sm:$0xff]
      %v1216 = vld [vmem:[%s2 + $0x110] sm:$0xf]
      %v1217 = vld [vmem:[%s2 + $0x114] sm:$0xff]
      %v1218 = vld [vmem:[%s2 + $0x11c] sm:$0xf]
      %v1219 = vld [vmem:[%s2 + $0x120] sm:$0xff]
      %v1220 = vld [vmem:[%s2 + $0x128] sm:$0xf]
      %v1221 = vld [vmem:[%s2 + $0x12c] sm:$0xff]
      %v1222 = vld [vmem:[%s2 + $0x134] sm:$0xf]
      %v1223 = vld [vmem:[%s2 + $0x138] sm:$0xff]
      %v1224 = vld [vmem:[%s2 + $0x140] sm:$0xf]
      %v1225 = vld [vmem:[%s2 + $0x144] sm:$0xff]
      %v1226 = vld [vmem:[%s2 + $0x14c] sm:$0xf]
      %v1227 = vld [vmem:[%s2 + $0x150] sm:$0xff]
      %v1228 = vld [vmem:[%s2 + $0x158] sm:$0xf]
      %v1229 = vld [vmem:[%s2 + $0x15c] sm:$0xff]
      %v1230 = vld [vmem:[%s2 + $0x164] sm:$0xf]
      %v1231 = vld [vmem:[%s2 + $0x168] sm:$0xff]
      %v1232 = vld [vmem:[%s2 + $0x170] sm:$0xf]
      %v1233 = vld [vmem:[%s2 + $0x174] sm:$0xff]
      %v1234 = vld [vmem:[%s2 + $0x17c] sm:$0xf]
      %v1235 = vld [vmem:[%s2 + $0x180] sm:$0xff]
      %v1236 = vld [vmem:[%s2 + $0x188] sm:$0xf]
      %v1237 = vld [vmem:[%s2 + $0x18c] sm:$0xff]
      %v1238 = vld [vmem:[%s2 + $0x194] sm:$0xf]
      %v1239 = vld [vmem:[%s2 + $0x198] sm:$0xff]
      %v1240 = vld [vmem:[%s2 + $0x1a0] sm:$0xf]
      %v1241 = vld [vmem:[%s2 + $0x1a4] sm:$0xff]
      %v1242 = vld [vmem:[%s2 + $0x1ac] sm:$0xf]
      %v1243 = vld [vmem:[%s2 + $0x1b0] sm:$0xff]
      %v1244 = vld [vmem:[%s2 + $0x1b8] sm:$0xf]
      %v1245 = vld [vmem:[%s2 + $0x1bc] sm:$0xff]
      %v1246 = vld [vmem:[%s2 + $0x1c4] sm:$0xf]
      %v1247 = vld [vmem:[%s2 + $0x1c8] sm:$0xff]
      %v1248 = vld [vmem:[%s2 + $0x1d0] sm:$0xf]
      %v1249 = vld [vmem:[%s2 + $0x1d4] sm:$0xff]
      %v1250 = vld [vmem:[%s2 + $0x1dc] sm:$0xf]
      %v1251 = vld [vmem:[%s2 + $0x1e0] sm:$0xff]
      %v1252 = vld [vmem:[%s2 + $0x1e8] sm:$0xf]
      %v1253 = vld [vmem:[%s2 + $0x1ec] sm:$0xff]
      %v1254 = vld [vmem:[%s2 + $0x1f4] sm:$0xf]
      %v1255 = vld [vmem:[%s2 + $0x1f8] sm:$0xff]
      %v1256 = vld [vmem:[%s2 + $0x200] sm:$0xf]
      %v1257 = vld [vmem:[%s2 + $0x204] sm:$0xff]
      %v1258 = vld [vmem:[%s2 + $0x20c] sm:$0xf]
      %v1259 = vld [vmem:[%s2 + $0x210] sm:$0xff]
      %v1260 = vld [vmem:[%s2 + $0x218] sm:$0xf]
      %v1261 = vld [vmem:[%s2 + $0x21c] sm:$0xff]
      %v1262 = vld [vmem:[%s2 + $0x224] sm:$0xf]
      %v1263 = vld [vmem:[%s2 + $0x228] sm:$0xff]
      %v1264 = vld [vmem:[%s2 + $0x230] sm:$0xf]
      %v1265 = vld [vmem:[%s2 + $0x234] sm:$0xff]
      %v1266 = vld [vmem:[%s2 + $0x23c] sm:$0xf]
      %v1363 = vunpack.c.l.b16 %v1171
      %v1364 = vunpack.c.h.b16 %v1171
      %v1365 = vunpack.c.l.b16 %v1172
      %v1366 = vunpack.c.l.b16 %v1173
      %v1367 = vunpack.c.h.b16 %v1173
      %v1368 = vunpack.c.l.b16 %v1174
      %v1369 = vunpack.c.l.b16 %v1175
      %v1370 = vunpack.c.h.b16 %v1175
      %v1371 = vunpack.c.l.b16 %v1176
      %v1372 = vunpack.c.l.b16 %v1177
      %v1373 = vunpack.c.h.b16 %v1177
      %v1374 = vunpack.c.l.b16 %v1178
      %v1375 = vunpack.c.l.b16 %v1179
      %v1376 = vunpack.c.h.b16 %v1179
      %v1377 = vunpack.c.l.b16 %v1180
      %v1378 = vunpack.c.l.b16 %v1181
      %v1379 = vunpack.c.h.b16 %v1181
      %v1380 = vunpack.c.l.b16 %v1182
      %v1381 = vunpack.c.l.b16 %v1183
      %v1382 = vunpack.c.h.b16 %v1183
      %v1383 = vunpack.c.l.b16 %v1184
      %v1384 = vunpack.c.l.b16 %v1185
      %v1385 = vunpack.c.h.b16 %v1185
      %v1386 = vunpack.c.l.b16 %v1186
      %v1387 = vunpack.c.l.b16 %v1187
      %v1388 = vunpack.c.h.b16 %v1187
      %v1389 = vunpack.c.l.b16 %v1188
      %v1390 = vunpack.c.l.b16 %v1189
      %v1391 = vunpack.c.h.b16 %v1189
      %v1392 = vunpack.c.l.b16 %v1190
      %v1393 = vunpack.c.l.b16 %v1191
      %v1394 = vunpack.c.h.b16 %v1191
      %v1395 = vunpack.c.l.b16 %v1192
      %v1396 = vunpack.c.l.b16 %v1193
      %v1397 = vunpack.c.h.b16 %v1193
      %v1398 = vunpack.c.l.b16 %v1194
      %v1399 = vunpack.c.l.b16 %v1195
      %v1400 = vunpack.c.h.b16 %v1195
      %v1401 = vunpack.c.l.b16 %v1196
      %v1402 = vunpack.c.l.b16 %v1197
      %v1403 = vunpack.c.h.b16 %v1197
      %v1404 = vunpack.c.l.b16 %v1198
      %v1405 = vunpack.c.l.b16 %v1199
      %v1406 = vunpack.c.h.b16 %v1199
      %v1407 = vunpack.c.l.b16 %v1200
      %v1408 = vunpack.c.l.b16 %v1201
      %v1409 = vunpack.c.h.b16 %v1201
      %v1410 = vunpack.c.l.b16 %v1202
      %v1411 = vunpack.c.l.b16 %v1203
      %v1412 = vunpack.c.h.b16 %v1203
      %v1413 = vunpack.c.l.b16 %v1204
      %v1414 = vunpack.c.l.b16 %v1205
      %v1415 = vunpack.c.h.b16 %v1205
      %v1416 = vunpack.c.l.b16 %v1206
      %v1417 = vunpack.c.l.b16 %v1207
      %v1418 = vunpack.c.h.b16 %v1207
      %v1419 = vunpack.c.l.b16 %v1208
      %v1420 = vunpack.c.l.b16 %v1209
      %v1421 = vunpack.c.h.b16 %v1209
      %v1422 = vunpack.c.l.b16 %v1210
      %v1423 = vunpack.c.l.b16 %v1211
      %v1424 = vunpack.c.h.b16 %v1211
      %v1425 = vunpack.c.l.b16 %v1212
      %v1426 = vunpack.c.l.b16 %v1213
      %v1427 = vunpack.c.h.b16 %v1213
      %v1428 = vunpack.c.l.b16 %v1214
      %v1429 = vunpack.c.l.b16 %v1215
      %v1430 = vunpack.c.h.b16 %v1215
      %v1431 = vunpack.c.l.b16 %v1216
      %v1432 = vunpack.c.l.b16 %v1217
      %v1433 = vunpack.c.h.b16 %v1217
      %v1434 = vunpack.c.l.b16 %v1218
      %v1435 = vunpack.c.l.b16 %v1219
      %v1436 = vunpack.c.h.b16 %v1219
      %v1437 = vunpack.c.l.b16 %v1220
      %v1438 = vunpack.c.l.b16 %v1221
      %v1439 = vunpack.c.h.b16 %v1221
      %v1440 = vunpack.c.l.b16 %v1222
      %v1441 = vunpack.c.l.b16 %v1223
      %v1442 = vunpack.c.h.b16 %v1223
      %v1443 = vunpack.c.l.b16 %v1224
      %v1444 = vunpack.c.l.b16 %v1225
      %v1445 = vunpack.c.h.b16 %v1225
      %v1446 = vunpack.c.l.b16 %v1226
      %v1447 = vunpack.c.l.b16 %v1227
      %v1448 = vunpack.c.h.b16 %v1227
      %v1449 = vunpack.c.l.b16 %v1228
      %v1450 = vunpack.c.l.b16 %v1229
      %v1451 = vunpack.c.h.b16 %v1229
      %v1452 = vunpack.c.l.b16 %v1230
      %v1453 = vunpack.c.l.b16 %v1231
      %v1454 = vunpack.c.h.b16 %v1231
      %v1455 = vunpack.c.l.b16 %v1232
      %v1456 = vunpack.c.l.b16 %v1233
      %v1457 = vunpack.c.h.b16 %v1233
      %v1458 = vunpack.c.l.b16 %v1234
      %v1459 = vunpack.c.l.b16 %v1235
      %v1460 = vunpack.c.h.b16 %v1235
      %v1461 = vunpack.c.l.b16 %v1236
      %v1462 = vunpack.c.l.b16 %v1237
      %v1463 = vunpack.c.h.b16 %v1237
      %v1464 = vunpack.c.l.b16 %v1238
      %v1465 = vunpack.c.l.b16 %v1239
      %v1466 = vunpack.c.h.b16 %v1239
      %v1467 = vunpack.c.l.b16 %v1240
      %v1468 = vunpack.c.l.b16 %v1241
      %v1469 = vunpack.c.h.b16 %v1241
      %v1470 = vunpack.c.l.b16 %v1242
      %v1471 = vunpack.c.l.b16 %v1243
      %v1472 = vunpack.c.h.b16 %v1243
      %v1473 = vunpack.c.l.b16 %v1244
      %v1474 = vunpack.c.l.b16 %v1245
      %v1475 = vunpack.c.h.b16 %v1245
      %v1476 = vunpack.c.l.b16 %v1246
      %v1477 = vunpack.c.l.b16 %v1247
      %v1478 = vunpack.c.h.b16 %v1247
      %v1479 = vunpack.c.l.b16 %v1248
      %v1480 = vunpack.c.l.b16 %v1249
      %v1481 = vunpack.c.h.b16 %v1249
      %v1482 = vunpack.c.l.b16 %v1250
      %v1483 = vunpack.c.l.b16 %v1251
      %v1484 = vunpack.c.h.b16 %v1251
      %v1485 = vunpack.c.l.b16 %v1252
      %v1486 = vunpack.c.l.b16 %v1253
      %v1487 = vunpack.c.h.b16 %v1253
      %v1488 = vunpack.c.l.b16 %v1254
      %v1489 = vunpack.c.l.b16 %v1255
      %v1490 = vunpack.c.h.b16 %v1255
      %v1491 = vunpack.c.l.b16 %v1256
      %v1492 = vunpack.c.l.b16 %v1257
      %v1493 = vunpack.c.h.b16 %v1257
      %v1494 = vunpack.c.l.b16 %v1258
      %v1495 = vunpack.c.l.b16 %v1259
      %v1496 = vunpack.c.h.b16 %v1259
      %v1497 = vunpack.c.l.b16 %v1260
      %v1498 = vunpack.c.l.b16 %v1261
      %v1499 = vunpack.c.h.b16 %v1261
      %v1500 = vunpack.c.l.b16 %v1262
      %v1501 = vunpack.c.l.b16 %v1263
      %v1502 = vunpack.c.h.b16 %v1263
      %v1503 = vunpack.c.l.b16 %v1264
      %v1504 = vunpack.c.l.b16 %v1265
      %v1505 = vunpack.c.h.b16 %v1265
      %v1506 = vunpack.c.l.b16 %v1266
      %v1507 = vpack.c.b16 %v1366, %v1363
      %v1508 = vpack.c.b16 %v1367, %v1364
      %v1509 = vpack.c.b16 %v1368, %v1365
      %v1510 = vpack.c.b16 %v1372, %v1369
      %v1511 = vpack.c.b16 %v1373, %v1370
      %v1512 = vpack.c.b16 %v1374, %v1371
      %v1513 = vpack.c.b16 %v1378, %v1375
      %v1514 = vpack.c.b16 %v1379, %v1376
      %v1515 = vpack.c.b16 %v1380, %v1377
      %v1516 = vpack.c.b16 %v1384, %v1381
      %v1517 = vpack.c.b16 %v1385, %v1382
      %v1518 = vpack.c.b16 %v1386, %v1383
      %v1519 = vpack.c.b16 %v1390, %v1387
      %v1520 = vpack.c.b16 %v1391, %v1388
      %v1521 = vpack.c.b16 %v1392, %v1389
      %v1522 = vpack.c.b16 %v1396, %v1393
      %v1523 = vpack.c.b16 %v1397, %v1394
      %v1524 = vpack.c.b16 %v1398, %v1395
      %v1525 = vpack.c.b16 %v1402, %v1399
      %v1526 = vpack.c.b16 %v1403, %v1400
      %v1527 = vpack.c.b16 %v1404, %v1401
      %v1528 = vpack.c.b16 %v1408, %v1405
      %v1529 = vpack.c.b16 %v1409, %v1406
      %v1530 = vpack.c.b16 %v1410, %v1407
      %v1531 = vpack.c.b16 %v1414, %v1411
      %v1532 = vpack.c.b16 %v1415, %v1412
      %v1533 = vpack.c.b16 %v1416, %v1413
      %v1534 = vpack.c.b16 %v1420, %v1417
      %v1535 = vpack.c.b16 %v1421, %v1418
      %v1536 = vpack.c.b16 %v1422, %v1419
      %v1537 = vpack.c.b16 %v1426, %v1423
      %v1538 = vpack.c.b16 %v1427, %v1424
      %v1539 = vpack.c.b16 %v1428, %v1425
      %v1540 = vpack.c.b16 %v1432, %v1429
      %v1541 = vpack.c.b16 %v1433, %v1430
      %v1542 = vpack.c.b16 %v1434, %v1431
      %v1543 = vpack.c.b16 %v1438, %v1435
      %v1544 = vpack.c.b16 %v1439, %v1436
      %v1545 = vpack.c.b16 %v1440, %v1437
      %v1546 = vpack.c.b16 %v1444, %v1441
      %v1547 = vpack.c.b16 %v1445, %v1442
      %v1548 = vpack.c.b16 %v1446, %v1443
      %v1549 = vpack.c.b16 %v1450, %v1447
      %v1550 = vpack.c.b16 %v1451, %v1448
      %v1551 = vpack.c.b16 %v1452, %v1449
      %v1552 = vpack.c.b16 %v1456, %v1453
      %v1553 = vpack.c.b16 %v1457, %v1454
      %v1554 = vpack.c.b16 %v1458, %v1455
      %v1555 = vpack.c.b16 %v1462, %v1459
      %v1556 = vpack.c.b16 %v1463, %v1460
      %v1557 = vpack.c.b16 %v1464, %v1461
      %v1558 = vpack.c.b16 %v1468, %v1465
      %v1559 = vpack.c.b16 %v1469, %v1466
      %v1560 = vpack.c.b16 %v1470, %v1467
      %v1561 = vpack.c.b16 %v1474, %v1471
      %v1562 = vpack.c.b16 %v1475, %v1472
      %v1563 = vpack.c.b16 %v1476, %v1473
      %v1564 = vpack.c.b16 %v1480, %v1477
      %v1565 = vpack.c.b16 %v1481, %v1478
      %v1566 = vpack.c.b16 %v1482, %v1479
      %v1567 = vpack.c.b16 %v1486, %v1483
      %v1568 = vpack.c.b16 %v1487, %v1484
      %v1569 = vpack.c.b16 %v1488, %v1485
      %v1570 = vpack.c.b16 %v1492, %v1489
      %v1571 = vpack.c.b16 %v1493, %v1490
      %v1572 = vpack.c.b16 %v1494, %v1491
      %v1573 = vpack.c.b16 %v1498, %v1495
      %v1574 = vpack.c.b16 %v1499, %v1496
      %v1575 = vpack.c.b16 %v1500, %v1497
      %v1576 = vpack.c.b16 %v1504, %v1501
      %v1577 = vpack.c.b16 %v1505, %v1502
      %v1578 = vpack.c.b16 %v1506, %v1503
      %1651 = vmatpush.bf16.msra.mxu0 %v1528
      %1652 = vmatpush.bf16.msra.mxu0 %v1525
      %1653 = vmatpush.bf16.msra.mxu0 %v1522
      %1654 = vmatpush.bf16.msra.mxu0 %v1519
      %1655 = vmatpush.bf16.msra.mxu0 %v1516
      %1656 = vmatpush.bf16.msra.mxu0 %v1513
      %1657 = vmatpush.bf16.msra.mxu0 %v1510
      %1658 = vmatpush.bf16.msra.mxu0 %v1507
      %1659 = vmatmul.bf16.gmra.mxu0 %v508
      %v1660 = vpop.f32.mrf.mxu0
      %v1661 = vadd.f32 0.0, %v1660
      %v1662 = vpop.f32.mrf.mxu0
      %v1663 = vadd.f32 0.0, %v1662
      %1664 = vmatmul.bf16.gmra.mxu0 %v511
      %v1665 = vpop.f32.mrf.mxu0
      %v1666 = vadd.f32 0.0, %v1665
      %v1667 = vpop.f32.mrf.mxu0
      %v1668 = vadd.f32 0.0, %v1667
      %1669 = vdwg.mxu0
      %1670 = vmatpush.bf16.msra.mxu0 %v1552
      %1671 = vmatpush.bf16.msra.mxu0 %v1549
      %1672 = vmatpush.bf16.msra.mxu0 %v1546
      %1673 = vmatpush.bf16.msra.mxu0 %v1543
      %1674 = vmatpush.bf16.msra.mxu0 %v1540
      %1675 = vmatpush.bf16.msra.mxu0 %v1537
      %1676 = vmatpush.bf16.msra.mxu0 %v1534
      %1677 = vmatpush.bf16.msra.mxu0 %v1531
      %1678 = vmatmul.bf16.gmra.mxu0 %v509
      %v1679 = vpop.f32.mrf.mxu0
      %v1680 = vadd.f32 %v1661, %v1679
      %v1681 = vpop.f32.mrf.mxu0
      %v1682 = vadd.f32 %v1663, %v1681
      %1683 = vmatmul.bf16.gmra.mxu0 %v512
      %v1684 = vpop.f32.mrf.mxu0
      %v1685 = vadd.f32 %v1666, %v1684
      %v1686 = vpop.f32.mrf.mxu0
      %v1687 = vadd.f32 %v1668, %v1686
      %1688 = vdwg.mxu0
      %1689 = vmatpush.bf16.msra.mxu0 %v1576
      %1690 = vmatpush.bf16.msra.mxu0 %v1573
      %1691 = vmatpush.bf16.msra.mxu0 %v1570
      %1692 = vmatpush.bf16.msra.mxu0 %v1567
      %1693 = vmatpush.bf16.msra.mxu0 %v1564
      %1694 = vmatpush.bf16.msra.mxu0 %v1561
      %1695 = vmatpush.bf16.msra.mxu0 %v1558
      %1696 = vmatpush.bf16.msra.mxu0 %v1555
      %1697 = vmatmul.bf16.gmra.mxu0 %v510
      %v1698 = vpop.f32.mrf.mxu0
      %v1699 = vadd.f32 %v1680, %v1698
      %v1700 = vpop.f32.mrf.mxu0
      %v1701 = vadd.f32 %v1682, %v1700
      %1702 = vmatmul.bf16.gmra.mxu0 %v513
      %v1703 = vpop.f32.mrf.mxu0
      %v1704 = vadd.f32 %v1685, %v1703
      %v1705 = vpop.f32.mrf.mxu0
      %v1706 = vadd.f32 %v1687, %v1705
      %1707 = vdwg.mxu0
      %1708 = vmatpush.bf16.msra.mxu0 %v1529
      %1709 = vmatpush.bf16.msra.mxu0 %v1526
      %1710 = vmatpush.bf16.msra.mxu0 %v1523
      %1711 = vmatpush.bf16.msra.mxu0 %v1520
      %1712 = vmatpush.bf16.msra.mxu0 %v1517
      %1713 = vmatpush.bf16.msra.mxu0 %v1514
      %1714 = vmatpush.bf16.msra.mxu0 %v1511
      %1715 = vmatpush.bf16.msra.mxu0 %v1508
      %1716 = vmatmul.bf16.gmra.mxu0 %v508
      %v1717 = vpop.f32.mrf.mxu0
      %v1718 = vadd.f32 0.0, %v1717
      %v1719 = vpop.f32.mrf.mxu0
      %v1720 = vadd.f32 0.0, %v1719
      %1721 = vmatmul.bf16.gmra.mxu0 %v511
      %v1722 = vpop.f32.mrf.mxu0
      %v1723 = vadd.f32 0.0, %v1722
      %v1724 = vpop.f32.mrf.mxu0
      %v1725 = vadd.f32 0.0, %v1724
      %1726 = vdwg.mxu0
      %1727 = vmatpush.bf16.msra.mxu0 %v1553
      %1728 = vmatpush.bf16.msra.mxu0 %v1550
      %1729 = vmatpush.bf16.msra.mxu0 %v1547
      %1730 = vmatpush.bf16.msra.mxu0 %v1544
      %1731 = vmatpush.bf16.msra.mxu0 %v1541
      %1732 = vmatpush.bf16.msra.mxu0 %v1538
      %1733 = vmatpush.bf16.msra.mxu0 %v1535
      %1734 = vmatpush.bf16.msra.mxu0 %v1532
      %1735 = vmatmul.bf16.gmra.mxu0 %v509
      %v1736 = vpop.f32.mrf.mxu0
      %v1737 = vadd.f32 %v1718, %v1736
      %v1738 = vpop.f32.mrf.mxu0
      %v1739 = vadd.f32 %v1720, %v1738
      %1740 = vmatmul.bf16.gmra.mxu0 %v512
      %v1741 = vpop.f32.mrf.mxu0
      %v1742 = vadd.f32 %v1723, %v1741
      %v1743 = vpop.f32.mrf.mxu0
      %v1744 = vadd.f32 %v1725, %v1743
      %1745 = vdwg.mxu0
      %1746 = vmatpush.bf16.msra.mxu0 %v1577
      %1747 = vmatpush.bf16.msra.mxu0 %v1574
      %1748 = vmatpush.bf16.msra.mxu0 %v1571
      %1749 = vmatpush.bf16.msra.mxu0 %v1568
      %1750 = vmatpush.bf16.msra.mxu0 %v1565
      %1751 = vmatpush.bf16.msra.mxu0 %v1562
      %1752 = vmatpush.bf16.msra.mxu0 %v1559
      %1753 = vmatpush.bf16.msra.mxu0 %v1556
      %1754 = vmatmul.bf16.gmra.mxu0 %v510
      %v1755 = vpop.f32.mrf.mxu0
      %v1756 = vadd.f32 %v1737, %v1755
      %v1757 = vpop.f32.mrf.mxu0
      %v1758 = vadd.f32 %v1739, %v1757
      %1759 = vmatmul.bf16.gmra.mxu0 %v513
      %v1760 = vpop.f32.mrf.mxu0
      %v1761 = vadd.f32 %v1742, %v1760
      %v1762 = vpop.f32.mrf.mxu0
      %v1763 = vadd.f32 %v1744, %v1762
      %1764 = vdwg.mxu0
      %1765 = vmatpush.bf16.msra.mxu0 %v1530
      %1766 = vmatpush.bf16.msra.mxu0 %v1527
      %1767 = vmatpush.bf16.msra.mxu0 %v1524
      %1768 = vmatpush.bf16.msra.mxu0 %v1521
      %1769 = vmatpush.bf16.msra.mxu0 %v1518
      %1770 = vmatpush.bf16.msra.mxu0 %v1515
      %1771 = vmatpush.bf16.msra.mxu0 %v1512
      %1772 = vmatpush.bf16.msra.mxu0 %v1509
      %1773 = vmatmul.bf16.gmra.mxu0 %v508
      %v1774 = vpop.f32.mrf.mxu0
      %v1775 = vadd.f32 0.0, %v1774
      %v1776 = vpop.f32.mrf.mxu0
      %v1777 = vadd.f32 0.0, %v1776
      %1778 = vmatmul.bf16.gmra.mxu0 %v511
      %v1779 = vpop.f32.mrf.mxu0
      %v1780 = vadd.f32 0.0, %v1779
      %v1781 = vpop.f32.mrf.mxu0
      %v1782 = vadd.f32 0.0, %v1781
      %1783 = vdwg.mxu0
      %1784 = vmatpush.bf16.msra.mxu0 %v1554
      %1785 = vmatpush.bf16.msra.mxu0 %v1551
      %1786 = vmatpush.bf16.msra.mxu0 %v1548
      %1787 = vmatpush.bf16.msra.mxu0 %v1545
      %1788 = vmatpush.bf16.msra.mxu0 %v1542
      %1789 = vmatpush.bf16.msra.mxu0 %v1539
      %1790 = vmatpush.bf16.msra.mxu0 %v1536
      %1791 = vmatpush.bf16.msra.mxu0 %v1533
      %1792 = vmatmul.bf16.gmra.mxu0 %v509
      %v1793 = vpop.f32.mrf.mxu0
      %v1794 = vadd.f32 %v1775, %v1793
      %v1795 = vpop.f32.mrf.mxu0
      %v1796 = vadd.f32 %v1777, %v1795
      %1797 = vmatmul.bf16.gmra.mxu0 %v512
      %v1798 = vpop.f32.mrf.mxu0
      %v1799 = vadd.f32 %v1780, %v1798
      %v1800 = vpop.f32.mrf.mxu0
      %v1801 = vadd.f32 %v1782, %v1800
      %1802 = vdwg.mxu0
      %1803 = vmatpush.bf16.msra.mxu0 %v1578
      %1804 = vmatpush.bf16.msra.mxu0 %v1575
      %1805 = vmatpush.bf16.msra.mxu0 %v1572
      %1806 = vmatpush.bf16.msra.mxu0 %v1569
      %1807 = vmatpush.bf16.msra.mxu0 %v1566
      %1808 = vmatpush.bf16.msra.mxu0 %v1563
      %1809 = vmatpush.bf16.msra.mxu0 %v1560
      %1810 = vmatpush.bf16.msra.mxu0 %v1557
      %1811 = vmatmul.bf16.gmra.mxu0 %v510
      %v1812 = vpop.f32.mrf.mxu0
      %v1813 = vadd.f32 %v1794, %v1812
      %v1814 = vpop.f32.mrf.mxu0
      %v1815 = vadd.f32 %v1796, %v1814
      %1816 = vmatmul.bf16.gmra.mxu0 %v513
      %v1817 = vpop.f32.mrf.mxu0
      %v1818 = vadd.f32 %v1799, %v1817
      %v1819 = vpop.f32.mrf.mxu0
      %v1820 = vadd.f32 %v1801, %v1819
      %1821 = vdwg.mxu0
      %v1822 = vpack.c.bf16 %v1701, %v1699
      %v1823 = vpack.c.bf16 %v1758, %v1756
      %v1824 = vpack.c.bf16 %v1815, %v1813
      %v1825 = vpack.c.bf16 %v1706, %v1704
      %v1826 = vpack.c.bf16 %v1763, %v1761
      %v1827 = vpack.c.bf16 %v1820, %v1818
      %v1828 = vld [vmem:[%s3] sm:$0xf]
      %v1829 = vld [vmem:[%s3 + $0x4] sm:$0xf]
      %v1830 = vld [vmem:[%s3 + $0x8] sm:$0xf]
      %v1831 = vld [vmem:[%s3 + $0xc] sm:$0xf]
      %v1832 = vld [vmem:[%s4] sm:$0xf]
      %v1833 = vld [vmem:[%s4 + $0x4] sm:$0xf]
      %v1834 = vld [vmem:[%s4 + $0x8] sm:$0xf]
      %v1835 = vld [vmem:[%s4 + $0xc] sm:$0xf]
      %v1840 = vunpack.c.l.b16 %v1832
      %v1841 = vunpack.c.l.b16 %v1833
      %v1842 = vunpack.c.l.b16 %v1834
      %v1843 = vunpack.c.l.b16 %v1835
      %v1844 = vpack.c.b16 %v1841, %v1840
      %v1845 = vpack.c.b16 %v1843, %v1842
      %vm1846 = vcmask 261120
      %v1848 = vsel %vm1846, %v1844, 0
      %v1851 = vsel %vm1846, %v1845, 0
      %1853 = vmatpush.bf16.msra.mxu0 0
      %1854 = vmatpush.bf16.msra.mxu0 0
      %1855 = vmatpush.bf16.msra.mxu0 0
      %1856 = vmatpush.bf16.msra.mxu0 0
      %1857 = vmatpush.bf16.msra.mxu0 0
      %1858 = vmatpush.bf16.msra.mxu0 0
      %1859 = vmatpush.bf16.msra.mxu0 %v511
      %1860 = vmatpush.bf16.msra.mxu0 %v508
      %1861 = vmatmul.bf16.gmra.mxu0 %v1848
      %v1862 = vpop.f32.mrf.mxu0
      %v1863 = vadd.f32 0.0, %v1862
      %v1864 = vpop.f32.mrf.mxu0
      %v1865 = vadd.f32 0.0, %v1864
      %1866 = vmatmul.bf16.gmra.mxu0 %v1851
      %v1867 = vpop.f32.mrf.mxu0
      %v1868 = vadd.f32 0.0, %v1867
      %v1869 = vpop.f32.mrf.mxu0
      %v1870 = vadd.f32 0.0, %v1869
      %1871 = vdwg.mxu0
      %1872 = vmatpush.bf16.msra.mxu0 0
      %1873 = vmatpush.bf16.msra.mxu0 0
      %1874 = vmatpush.bf16.msra.mxu0 0
      %1875 = vmatpush.bf16.msra.mxu0 0
      %1876 = vmatpush.bf16.msra.mxu0 0
      %1877 = vmatpush.bf16.msra.mxu0 0
      %1878 = vmatpush.bf16.msra.mxu0 %v512
      %1879 = vmatpush.bf16.msra.mxu0 %v509
      %1880 = vmatmul.bf16.gmra.mxu0 %v1848
      %v1881 = vpop.f32.mrf.mxu0
      %v1882 = vadd.f32 0.0, %v1881
      %v1883 = vpop.f32.mrf.mxu0
      %v1884 = vadd.f32 0.0, %v1883
      %1885 = vmatmul.bf16.gmra.mxu0 %v1851
      %v1886 = vpop.f32.mrf.mxu0
      %v1887 = vadd.f32 0.0, %v1886
      %v1888 = vpop.f32.mrf.mxu0
      %v1889 = vadd.f32 0.0, %v1888
      %1890 = vdwg.mxu0
      %1891 = vmatpush.bf16.msra.mxu0 0
      %1892 = vmatpush.bf16.msra.mxu0 0
      %1893 = vmatpush.bf16.msra.mxu0 0
      %1894 = vmatpush.bf16.msra.mxu0 0
      %1895 = vmatpush.bf16.msra.mxu0 0
      %1896 = vmatpush.bf16.msra.mxu0 0
      %1897 = vmatpush.bf16.msra.mxu0 %v513
      %1898 = vmatpush.bf16.msra.mxu0 %v510
      %1899 = vmatmul.bf16.gmra.mxu0 %v1848
      %v1900 = vpop.f32.mrf.mxu0
      %v1901 = vadd.f32 0.0, %v1900
      %v1902 = vpop.f32.mrf.mxu0
      %v1903 = vadd.f32 0.0, %v1902
      %1904 = vmatmul.bf16.gmra.mxu0 %v1851
      %v1905 = vpop.f32.mrf.mxu0
      %v1906 = vadd.f32 0.0, %v1905
      %v1907 = vpop.f32.mrf.mxu0
      %v1908 = vadd.f32 0.0, %v1907
      %1909 = vdwg.mxu0
      %v1914 = vunpack.c.l.b16 %v1828
      %v1915 = vunpack.c.l.b16 %v1829
      %v1916 = vunpack.c.l.b16 %v1830
      %v1917 = vunpack.c.l.b16 %v1831
      %v1918 = vpack.c.b16 %v1915, %v1914
      %v1919 = vpack.c.b16 %v1917, %v1916
      %v1921 = vsel %vm1846, %v1918, 0
      %v1924 = vsel %vm1846, %v1919, 0
      %1926 = vmatpush.bf16.msra.mxu0 0
      %1927 = vmatpush.bf16.msra.mxu0 0
      %1928 = vmatpush.bf16.msra.mxu0 0
      %1929 = vmatpush.bf16.msra.mxu0 0
      %1930 = vmatpush.bf16.msra.mxu0 0
      %1931 = vmatpush.bf16.msra.mxu0 0
      %1932 = vmatpush.bf16.msra.mxu0 %v1168
      %1933 = vmatpush.bf16.msra.mxu0 %v1165
      %1934 = vmatmul.bf16.gmra.mxu0 %v1921
      %v1935 = vpop.f32.mrf.mxu0
      %v1936 = vadd.f32 %v1863, %v1935
      %v1937 = vpop.f32.mrf.mxu0
      %v1938 = vadd.f32 %v1865, %v1937
      %1939 = vmatmul.bf16.gmra.mxu0 %v1924
      %v1940 = vpop.f32.mrf.mxu0
      %v1941 = vadd.f32 %v1868, %v1940
      %v1942 = vpop.f32.mrf.mxu0
      %v1943 = vadd.f32 %v1870, %v1942
      %1944 = vdwg.mxu0
      %1945 = vmatpush.bf16.msra.mxu0 0
      %1946 = vmatpush.bf16.msra.mxu0 0
      %1947 = vmatpush.bf16.msra.mxu0 0
      %1948 = vmatpush.bf16.msra.mxu0 0
      %1949 = vmatpush.bf16.msra.mxu0 0
      %1950 = vmatpush.bf16.msra.mxu0 0
      %1951 = vmatpush.bf16.msra.mxu0 %v1169
      %1952 = vmatpush.bf16.msra.mxu0 %v1166
      %1953 = vmatmul.bf16.gmra.mxu0 %v1921
      %v1954 = vpop.f32.mrf.mxu0
      %v1955 = vadd.f32 %v1882, %v1954
      %v1956 = vpop.f32.mrf.mxu0
      %v1957 = vadd.f32 %v1884, %v1956
      %1958 = vmatmul.bf16.gmra.mxu0 %v1924
      %v1959 = vpop.f32.mrf.mxu0
      %v1960 = vadd.f32 %v1887, %v1959
      %v1961 = vpop.f32.mrf.mxu0
      %v1962 = vadd.f32 %v1889, %v1961
      %1963 = vdwg.mxu0
      %1964 = vmatpush.bf16.msra.mxu0 0
      %1965 = vmatpush.bf16.msra.mxu0 0
      %1966 = vmatpush.bf16.msra.mxu0 0
      %1967 = vmatpush.bf16.msra.mxu0 0
      %1968 = vmatpush.bf16.msra.mxu0 0
      %1969 = vmatpush.bf16.msra.mxu0 0
      %1970 = vmatpush.bf16.msra.mxu0 %v1170
      %1971 = vmatpush.bf16.msra.mxu0 %v1167
      %1972 = vmatmul.bf16.gmra.mxu0 %v1921
      %v1973 = vpop.f32.mrf.mxu0
      %v1974 = vadd.f32 %v1901, %v1973
      %v1975 = vpop.f32.mrf.mxu0
      %v1976 = vadd.f32 %v1903, %v1975
      %1977 = vmatmul.bf16.gmra.mxu0 %v1924
      %v1978 = vpop.f32.mrf.mxu0
      %v1979 = vadd.f32 %v1906, %v1978
      %v1980 = vpop.f32.mrf.mxu0
      %v1981 = vadd.f32 %v1908, %v1980
      %1982 = vdwg.mxu0
      %v1983 = vld [vmem:[%s5] sm:$0xf]
      %v1984 = vld [vmem:[%s5 + $0x4] sm:$0xf]
      %v1985 = vld [vmem:[%s5 + $0x8] sm:$0xf]
      %v1986 = vld [vmem:[%s5 + $0xc] sm:$0xf]
      %v1991 = vunpack.c.l.b16 %v1983
      %v1992 = vunpack.c.l.b16 %v1984
      %v1993 = vunpack.c.l.b16 %v1985
      %v1994 = vunpack.c.l.b16 %v1986
      %v1995 = vpack.c.b16 %v1992, %v1991
      %v1996 = vpack.c.b16 %v1994, %v1993
      %v1998 = vsel %vm1846, %v1995, 0
      %v2001 = vsel %vm1846, %v1996, 0
      %2003 = vmatpush.bf16.msra.mxu0 0
      %2004 = vmatpush.bf16.msra.mxu0 0
      %2005 = vmatpush.bf16.msra.mxu0 0
      %2006 = vmatpush.bf16.msra.mxu0 0
      %2007 = vmatpush.bf16.msra.mxu0 0
      %2008 = vmatpush.bf16.msra.mxu0 0
      %2009 = vmatpush.bf16.msra.mxu0 %v1825
      %2010 = vmatpush.bf16.msra.mxu0 %v1822
      %2011 = vmatmul.bf16.gmra.mxu0 %v1998
      %v2012 = vpop.f32.mrf.mxu0
      %v2013 = vadd.f32 0.0, %v2012
      %v2014 = vpop.f32.mrf.mxu0
      %v2015 = vadd.f32 0.0, %v2014
      %2016 = vmatmul.bf16.gmra.mxu0 %v2001
      %v2017 = vpop.f32.mrf.mxu0
      %v2018 = vadd.f32 0.0, %v2017
      %v2019 = vpop.f32.mrf.mxu0
      %v2020 = vadd.f32 0.0, %v2019
      %2021 = vdwg.mxu0
      %2022 = vmatpush.bf16.msra.mxu0 0
      %2023 = vmatpush.bf16.msra.mxu0 0
      %2024 = vmatpush.bf16.msra.mxu0 0
      %2025 = vmatpush.bf16.msra.mxu0 0
      %2026 = vmatpush.bf16.msra.mxu0 0
      %2027 = vmatpush.bf16.msra.mxu0 0
      %2028 = vmatpush.bf16.msra.mxu0 %v1826
      %2029 = vmatpush.bf16.msra.mxu0 %v1823
      %2030 = vmatmul.bf16.gmra.mxu0 %v1998
      %v2031 = vpop.f32.mrf.mxu0
      %v2032 = vadd.f32 0.0, %v2031
      %v2033 = vpop.f32.mrf.mxu0
      %v2034 = vadd.f32 0.0, %v2033
      %2035 = vmatmul.bf16.gmra.mxu0 %v2001
      %v2036 = vpop.f32.mrf.mxu0
      %v2037 = vadd.f32 0.0, %v2036
      %v2038 = vpop.f32.mrf.mxu0
      %v2039 = vadd.f32 0.0, %v2038
      %2040 = vdwg.mxu0
      %2041 = vmatpush.bf16.msra.mxu0 0
      %2042 = vmatpush.bf16.msra.mxu0 0
      %2043 = vmatpush.bf16.msra.mxu0 0
      %2044 = vmatpush.bf16.msra.mxu0 0
      %2045 = vmatpush.bf16.msra.mxu0 0
      %2046 = vmatpush.bf16.msra.mxu0 0
      %2047 = vmatpush.bf16.msra.mxu0 %v1827
      %2048 = vmatpush.bf16.msra.mxu0 %v1824
      %2049 = vmatmul.bf16.gmra.mxu0 %v1998
      %v2050 = vpop.f32.mrf.mxu0
      %v2051 = vadd.f32 0.0, %v2050
      %v2052 = vpop.f32.mrf.mxu0
      %v2053 = vadd.f32 0.0, %v2052
      %2054 = vmatmul.bf16.gmra.mxu0 %v2001
      %v2055 = vpop.f32.mrf.mxu0
      %v2056 = vadd.f32 0.0, %v2055
      %v2057 = vpop.f32.mrf.mxu0
      %v2058 = vadd.f32 0.0, %v2057
      %2059 = vdwg.mxu0
      %v2060 = vadd.f32 %v1936, %v2013
      %v2061 = vadd.f32 %v1955, %v2032
      %v2062 = vadd.f32 %v1974, %v2051
      %v2063 = vadd.f32 %v1938, %v2015
      %v2064 = vadd.f32 %v1957, %v2034
      %v2065 = vadd.f32 %v1976, %v2053
      %v2066 = vadd.f32 %v1941, %v2018
      %v2067 = vadd.f32 %v1960, %v2037
      %v2068 = vadd.f32 %v1979, %v2056
      %v2069 = vadd.f32 %v1943, %v2020
      %v2070 = vadd.f32 %v1962, %v2039
      %v2071 = vadd.f32 %v1981, %v2058
      %v2072 = vld [vmem:[%s6] sm:$0xff]
      %v2073 = vld [vmem:[%s6 + $0x8] sm:$0xff]
      %v2074 = vld [vmem:[%s6 + $0x10] sm:$0xff]
      %v2075 = vld [vmem:[%s6 + $0x18] sm:$0xff]
      %2077 = vset.pattern.permute.xlu0 0
      %2078 = vperm.xlu0 %2077, %v2072
      %v2079 = vpop.permute.xlu0 %2078
      %2082 = vset.pattern.permute.xlu0 0
      %2083 = vperm.xlu0 %2082, %v2073
      %v2084 = vpop.permute.xlu0 %2083
      %2087 = vset.pattern.permute.xlu0 0
      %2088 = vperm.xlu0 %2087, %v2074
      %v2089 = vpop.permute.xlu0 %2088
      %2092 = vset.pattern.permute.xlu0 0
      %2093 = vperm.xlu0 %2092, %v2075
      %v2094 = vpop.permute.xlu0 %2093
      %v2096 = vmul.f32 %v2079, %v2060
      %v2097 = vmul.f32 %v2079, %v2061
      %v2098 = vmul.f32 %v2079, %v2062
      %v2099 = vmul.f32 %v2084, %v2063
      %v2100 = vmul.f32 %v2084, %v2064
      %v2101 = vmul.f32 %v2084, %v2065
      %v2102 = vmul.f32 %v2089, %v2066
      %v2103 = vmul.f32 %v2089, %v2067
      %v2104 = vmul.f32 %v2089, %v2068
      %v2105 = vmul.f32 %v2094, %v2069
      %v2106 = vmul.f32 %v2094, %v2070
      %v2107 = vmul.f32 %v2094, %v2071
      %v2108 = vld [vmem:[%s7] sm:$0xff]
      %v2109 = vld [vmem:[%s7 + $0x8] sm:$0xff]
      %v2110 = vld [vmem:[%s7 + $0x10] sm:$0xff]
      %v2111 = vld [vmem:[%s7 + $0x18] sm:$0xff]
      %2113 = vset.pattern.permute.xlu0 0
      %2114 = vperm.xlu0 %2113, %v2108
      %v2115 = vpop.permute.xlu0 %2114
      %2118 = vset.pattern.permute.xlu0 0
      %2119 = vperm.xlu0 %2118, %v2109
      %v2120 = vpop.permute.xlu0 %2119
      %2123 = vset.pattern.permute.xlu0 0
      %2124 = vperm.xlu0 %2123, %v2110
      %v2125 = vpop.permute.xlu0 %2124
      %2128 = vset.pattern.permute.xlu0 0
      %2129 = vperm.xlu0 %2128, %v2111
      %v2130 = vpop.permute.xlu0 %2129
      %v2132 = vadd.f32 %v2096, %v2115
      %v2133 = vadd.f32 %v2097, %v2115
      %v2134 = vadd.f32 %v2098, %v2115
      %v2135 = vadd.f32 %v2099, %v2120
      %v2136 = vadd.f32 %v2100, %v2120
      %v2137 = vadd.f32 %v2101, %v2120
      %v2138 = vadd.f32 %v2102, %v2125
      %v2139 = vadd.f32 %v2103, %v2125
      %v2140 = vadd.f32 %v2104, %v2125
      %v2141 = vadd.f32 %v2105, %v2130
      %v2142 = vadd.f32 %v2106, %v2130
      %v2143 = vadd.f32 %v2107, %v2130
      %v2144 = vmax.f32 %v2132, 0.0
      %v2145 = vmax.f32 %v2133, 0.0
      %v2146 = vmax.f32 %v2134, 0.0
      %v2147 = vmax.f32 %v2135, 0.0
      %v2148 = vmax.f32 %v2136, 0.0
      %v2149 = vmax.f32 %v2137, 0.0
      %v2150 = vmax.f32 %v2138, 0.0
      %v2151 = vmax.f32 %v2139, 0.0
      %v2152 = vmax.f32 %v2140, 0.0
      %v2153 = vmax.f32 %v2141, 0.0
      %v2154 = vmax.f32 %v2142, 0.0
      %v2155 = vmax.f32 %v2143, 0.0
      %v2156 = vadd.f32 %v2144, %v2145
      %v2157 = vadd.f32 %v2156, %v2146
      %2158 = vadd.xlane.f32.xlu0 %v2157
      %v2159 = vpop.xlane.xlu0 %2158
      %v2160 = vadd.f32 %v2147, %v2148
      %v2161 = vadd.f32 %v2160, %v2149
      %2162 = vadd.xlane.f32.xlu0 %v2161
      %v2163 = vpop.xlane.xlu0 %2162
      %v2164 = vadd.f32 %v2150, %v2151
      %v2165 = vadd.f32 %v2164, %v2152
      %2166 = vadd.xlane.f32.xlu0 %v2165
      %v2167 = vpop.xlane.xlu0 %2166
      %v2168 = vadd.f32 %v2153, %v2154
      %v2169 = vadd.f32 %v2168, %v2155
      %2170 = vadd.xlane.f32.xlu0 %v2169
      %v2171 = vpop.xlane.xlu0 %2170
      %v2172 = vmul.f32 %v2159, 0.0026041667
      %v2173 = vmul.f32 %v2163, 0.0026041667
      %v2174 = vmul.f32 %v2167, 0.0026041667
      %v2175 = vmul.f32 %v2171, 0.0026041667
      %v2176 = vmax.f32 %v2144, %v2145
      %v2177 = vmax.f32 %v2176, %v2146
      %2178 = vmax.xlane.f32.xlu0 %v2177
      %v2179 = vpop.xlane.xlu0 %2178
      %v2180 = vmax.f32 %v2147, %v2148
      %v2181 = vmax.f32 %v2180, %v2149
      %2182 = vmax.xlane.f32.xlu0 %v2181
      %v2183 = vpop.xlane.xlu0 %2182
      %v2184 = vmax.f32 %v2150, %v2151
      %v2185 = vmax.f32 %v2184, %v2152
      %2186 = vmax.xlane.f32.xlu0 %v2185
      %v2187 = vpop.xlane.xlu0 %2186
      %v2188 = vmax.f32 %v2153, %v2154
      %v2189 = vmax.f32 %v2188, %v2155
      %2190 = vmax.xlane.f32.xlu0 %v2189
      %v2191 = vpop.xlane.xlu0 %2190
      %v2192 = vld [vmem:[%s8] sm:$0xff]
      %v2193 = vld [vmem:[%s9] sm:$0xff]
      %vm2194 = vcmask 523264
      %v2196 = vsel %vm2194, %v2192, 0
      %2198 = vmatpush.msra.mxu0 0.0
      %2199 = vmatpush.msra.mxu0 0.0
      %2200 = vmatpush.msra.mxu0 0.0
      %2201 = vmatpush.msra.mxu0 0.0
      %2202 = vmatpush.msra.mxu0 0.0
      %2203 = vmatpush.msra.mxu0 0.0
      %2204 = vmatpush.msra.mxu0 0.0
      %2205 = vmatpush.msra.mxu0 0.0
      %2206 = vmatpush.msra.mxu0 %v2191
      %2207 = vmatpush.msra.mxu0 %v2187
      %2208 = vmatpush.msra.mxu0 %v2183
      %2209 = vmatpush.msra.mxu0 %v2179
      %2210 = vmatpush.msra.mxu0 %v2175
      %2211 = vmatpush.msra.mxu0 %v2174
      %2212 = vmatpush.msra.mxu0 %v2173
      %2213 = vmatpush.msra.mxu0 %v2172
      %2214 = vmatmul.f32.gmra.mxu0 %v2196
      %v2215 = vpop.f32.mrf.mxu0
      %v2216 = vadd.f32 %v2193, %v2215
      %2217 = vdwg.mxu0
      %v2218 = vld [vmem:[%s10] sm:$0xff]
      %v2219 = vld [vmem:[%s10 + $0x8] sm:$0xff]
      %v2220 = vld [vmem:[%s10 + $0x10] sm:$0xff]
      %v2221 = vld [vmem:[%s10 + $0x18] sm:$0xff]
      %v2222 = vld [vmem:[%s10 + $0x20] sm:$0xff]
      %v2223 = vld [vmem:[%s10 + $0x28] sm:$0xff]
      %v2224 = vld [vmem:[%s10 + $0x30] sm:$0xff]
      %v2225 = vld [vmem:[%s10 + $0x38] sm:$0xff]
      %v2226 = vld [vmem:[%s11] sm:$0xff]
      %v2227 = vld [vmem:[%s11 + $0x8] sm:$0xff]
      %v2228 = vld [vmem:[%s11 + $0x10] sm:$0xff]
      %v2229 = vld [vmem:[%s11 + $0x18] sm:$0xff]
      %v2230 = vld [vmem:[%s11 + $0x20] sm:$0xff]
      %v2231 = vld [vmem:[%s11 + $0x28] sm:$0xff]
      %v2232 = vld [vmem:[%s11 + $0x30] sm:$0xff]
      %v2233 = vld [vmem:[%s11 + $0x38] sm:$0xff]
      %vm2234 = vcmask 64512
      %v2236 = vsel %vm2234, %v2218, 0
      %v2239 = vsel %vm2234, %v2219, 0
      %v2242 = vsel %vm2234, %v2220, 0
      %v2245 = vsel %vm2234, %v2221, 0
      %v2248 = vsel %vm2234, %v2222, 0
      %v2251 = vsel %vm2234, %v2223, 0
      %v2254 = vsel %vm2234, %v2224, 0
      %v2257 = vsel %vm2234, %v2225, 0
      %2259 = vmatpush.msra.mxu0 0.0
      %2260 = vmatpush.msra.mxu0 0.0
      %2261 = vmatpush.msra.mxu0 0.0
      %2262 = vmatpush.msra.mxu0 0.0
      %2263 = vmatpush.msra.mxu0 0.0
      %2264 = vmatpush.msra.mxu0 0.0
      %2265 = vmatpush.msra.mxu0 0.0
      %2266 = vmatpush.msra.mxu0 0.0
      %2267 = vmatpush.msra.mxu0 0.0
      %2268 = vmatpush.msra.mxu0 0.0
      %2269 = vmatpush.msra.mxu0 0.0
      %2270 = vmatpush.msra.mxu0 0.0
      %2271 = vmatpush.msra.mxu0 0.0
      %2272 = vmatpush.msra.mxu0 0.0
      %2273 = vmatpush.msra.mxu0 0.0
      %2274 = vmatpush.msra.mxu0 %v2216
      %2275 = vmatmul.f32.gmra.mxu0 %v2236
      %v2276 = vpop.f32.mrf.mxu0
      %v2277 = vadd.f32 %v2226, %v2276
      %2278 = vmatmul.f32.gmra.mxu0 %v2239
      %v2279 = vpop.f32.mrf.mxu0
      %v2280 = vadd.f32 %v2227, %v2279
      %2281 = vmatmul.f32.gmra.mxu0 %v2242
      %v2282 = vpop.f32.mrf.mxu0
      %v2283 = vadd.f32 %v2228, %v2282
      %2284 = vmatmul.f32.gmra.mxu0 %v2245
      %v2285 = vpop.f32.mrf.mxu0
      %v2286 = vadd.f32 %v2229, %v2285
      %2287 = vmatmul.f32.gmra.mxu0 %v2248
      %v2288 = vpop.f32.mrf.mxu0
      %v2289 = vadd.f32 %v2230, %v2288
      %2290 = vmatmul.f32.gmra.mxu0 %v2251
      %v2291 = vpop.f32.mrf.mxu0
      %v2292 = vadd.f32 %v2231, %v2291
      %2293 = vmatmul.f32.gmra.mxu0 %v2254
      %v2294 = vpop.f32.mrf.mxu0
      %v2295 = vadd.f32 %v2232, %v2294
      %2296 = vmatmul.f32.gmra.mxu0 %v2257
      %v2297 = vpop.f32.mrf.mxu0
      %v2298 = vadd.f32 %v2233, %v2297
      %2299 = vdwg.mxu0
      %v2300 = vadd.f32 %v2277, %v2289
      %v2301 = vadd.f32 %v2280, %v2292
      %v2302 = vadd.f32 %v2283, %v2295
      %v2303 = vadd.f32 %v2286, %v2298
      %v2304 = vxor.u32 %v2300, 2147483648
      %v2305 = vxor.u32 %v2301, 2147483648
      %v2306 = vxor.u32 %v2302, 2147483648
      %v2307 = vxor.u32 %v2303, 2147483648
      %v2308 = vmul.f32 %v2304, 1.442695
      %v2309 = vpow.pop %v2308
      %v2310 = vmul.f32 %v2305, 1.442695
      %v2311 = vpow.pop %v2310
      %v2312 = vmul.f32 %v2306, 1.442695
      %v2313 = vpow.pop %v2312
      %v2314 = vmul.f32 %v2307, 1.442695
      %v2315 = vpow.pop %v2314
      %v2316 = vadd.f32 %v2309, 1.0
      %v2317 = vadd.f32 %v2311, 1.0
      %v2318 = vadd.f32 %v2313, 1.0
      %v2319 = vadd.f32 %v2315, 1.0
      %v2320 = vrcp.pop %v2316
      %v2321 = vmul.f32 %v2316, %v2320
      %v2322 = vsub.f32 1.0, %v2321
      %v2323 = vmul.f32 %v2320, %v2322
      %v2324 = vadd.f32 %v2320, %v2323
      %vm2325 = vweird.f32 %v2316
      %vm2326 = vweird.f32 %v2320
      %vm2327 = vmor %vm2325, %vm2326
      %v2328 = vsel %vm2327, %v2320, %v2324
      %v2329 = vand.u32 2147483647, %v2316
      %vm2330 = vcmp.eq.f32.partialorder %v2329, 8.507059e+37
      %v2331 = vand.u32 %v2316, 2147483648
      %v2332 = vor.u32 1.1754944e-38, %v2331
      %v2333 = vsel %vm2330, %v2332, %v2328
      %v2334 = vmul.f32 1.0, %v2333
      %v2335 = vrcp.pop %v2317
      %v2336 = vmul.f32 %v2317, %v2335
      %v2337 = vsub.f32 1.0, %v2336
      %v2338 = vmul.f32 %v2335, %v2337
      %v2339 = vadd.f32 %v2335, %v2338
      %vm2340 = vweird.f32 %v2317
      %vm2341 = vweird.f32 %v2335
      %vm2342 = vmor %vm2340, %vm2341
      %v2343 = vsel %vm2342, %v2335, %v2339
      %v2344 = vand.u32 2147483647, %v2317
      %vm2345 = vcmp.eq.f32.partialorder %v2344, 8.507059e+37
      %v2346 = vand.u32 %v2317, 2147483648
      %v2347 = vor.u32 1.1754944e-38, %v2346
      %v2348 = vsel %vm2345, %v2347, %v2343
      %v2349 = vmul.f32 1.0, %v2348
      %v2350 = vrcp.pop %v2318
      %v2351 = vmul.f32 %v2318, %v2350
      %v2352 = vsub.f32 1.0, %v2351
      %v2353 = vmul.f32 %v2350, %v2352
      %v2354 = vadd.f32 %v2350, %v2353
      %vm2355 = vweird.f32 %v2318
      %vm2356 = vweird.f32 %v2350
      %vm2357 = vmor %vm2355, %vm2356
      %v2358 = vsel %vm2357, %v2350, %v2354
      %v2359 = vand.u32 2147483647, %v2318
      %vm2360 = vcmp.eq.f32.partialorder %v2359, 8.507059e+37
      %v2361 = vand.u32 %v2318, 2147483648
      %v2362 = vor.u32 1.1754944e-38, %v2361
      %v2363 = vsel %vm2360, %v2362, %v2358
      %v2364 = vmul.f32 1.0, %v2363
      %v2365 = vrcp.pop %v2319
      %v2366 = vmul.f32 %v2319, %v2365
      %v2367 = vsub.f32 1.0, %v2366
      %v2368 = vmul.f32 %v2365, %v2367
      %v2369 = vadd.f32 %v2365, %v2368
      %vm2370 = vweird.f32 %v2319
      %vm2371 = vweird.f32 %v2365
      %vm2372 = vmor %vm2370, %vm2371
      %v2373 = vsel %vm2372, %v2365, %v2369
      %v2374 = vand.u32 2147483647, %v2319
      %vm2375 = vcmp.eq.f32.partialorder %v2374, 8.507059e+37
      %v2376 = vand.u32 %v2319, 2147483648
      %v2377 = vor.u32 1.1754944e-38, %v2376
      %v2378 = vsel %vm2375, %v2377, %v2373
      %v2379 = vmul.f32 1.0, %v2378
      %2381 = vset.pattern.permute.xlu0 0
      %2382 = vperm.xlu0 %2381, %v2334
      %v2383 = vpop.permute.xlu0 %2382
      %2386 = vset.pattern.permute.xlu0 0
      %2387 = vperm.xlu0 %2386, %v2349
      %v2388 = vpop.permute.xlu0 %2387
      %2391 = vset.pattern.permute.xlu0 0
      %2392 = vperm.xlu0 %2391, %v2364
      %v2393 = vpop.permute.xlu0 %2392
      %2396 = vset.pattern.permute.xlu0 0
      %2397 = vperm.xlu0 %2396, %v2379
      %v2398 = vpop.permute.xlu0 %2397
      %v2400 = vmul.f32 %v2144, %v2383
      %v2401 = vmul.f32 %v2145, %v2383
      %v2402 = vmul.f32 %v2146, %v2383
      %v2403 = vmul.f32 %v2147, %v2388
      %v2404 = vmul.f32 %v2148, %v2388
      %v2405 = vmul.f32 %v2149, %v2388
      %v2406 = vmul.f32 %v2150, %v2393
      %v2407 = vmul.f32 %v2151, %v2393
      %v2408 = vmul.f32 %v2152, %v2393
      %v2409 = vmul.f32 %v2153, %v2398
      %v2410 = vmul.f32 %v2154, %v2398
      %v2411 = vmul.f32 %v2155, %v2398
      %v2412 = vadd.f32 %v2400, %v2403
      %v2413 = vadd.f32 %v2412, %v2406
      %v2414 = vadd.f32 %v2413, %v2409
      %v2415 = vrot.slane %v2414, 4
      %v2416 = vadd.f32 %v2414, %v2415
      %v2417 = vrot.slane %v2416, 2
      %v2418 = vadd.f32 %v2416, %v2417
      %v2419 = vrot.slane %v2418, 1
      %v2420 = vadd.f32 %v2418, %v2419
      %v2421 = vadd.f32 %v2401, %v2404
      %v2422 = vadd.f32 %v2421, %v2407
      %v2423 = vadd.f32 %v2422, %v2410
      %v2424 = vrot.slane %v2423, 4
      %v2425 = vadd.f32 %v2423, %v2424
      %v2426 = vrot.slane %v2425, 2
      %v2427 = vadd.f32 %v2425, %v2426
      %v2428 = vrot.slane %v2427, 1
      %v2429 = vadd.f32 %v2427, %v2428
      %v2430 = vadd.f32 %v2402, %v2405
      %v2431 = vadd.f32 %v2430, %v2408
      %v2432 = vadd.f32 %v2431, %v2411
      %v2433 = vrot.slane %v2432, 4
      %v2434 = vadd.f32 %v2432, %v2433
      %v2435 = vrot.slane %v2434, 2
      %v2436 = vadd.f32 %v2434, %v2435
      %v2437 = vrot.slane %v2436, 1
      %v2438 = vadd.f32 %v2436, %v2437
      %v2439 = vmul.f32 %v2420, 0.03125
      %v2440 = vmul.f32 %v2429, 0.03125
      %v2441 = vmul.f32 %v2438, 0.03125
      %v2442 = vpack.c.bf16 %v2439, %v2439
      %v2443 = vpack.c.bf16 %v2440, %v2440
      %v2444 = vpack.c.bf16 %v2441, %v2441
      %v2445 = vmax.f32 %v2400, %v2406
      %v2446 = vmax.f32 %v2403, %v2409
      %v2447 = vmax.f32 %v2445, %v2446
      %v2448 = vrot.slane %v2447, 4
      %v2449 = vmax.f32 %v2447, %v2448
      %v2450 = vrot.slane %v2449, 2
      %v2451 = vmax.f32 %v2449, %v2450
      %v2452 = vrot.slane %v2451, 1
      %v2453 = vmax.f32 %v2451, %v2452
      %v2454 = vmax.f32 %v2401, %v2407
      %v2455 = vmax.f32 %v2404, %v2410
      %v2456 = vmax.f32 %v2454, %v2455
      %v2457 = vrot.slane %v2456, 4
      %v2458 = vmax.f32 %v2456, %v2457
      %v2459 = vrot.slane %v2458, 2
      %v2460 = vmax.f32 %v2458, %v2459
      %v2461 = vrot.slane %v2460, 1
      %v2462 = vmax.f32 %v2460, %v2461
      %v2463 = vmax.f32 %v2402, %v2408
      %v2464 = vmax.f32 %v2405, %v2411
      %v2465 = vmax.f32 %v2463, %v2464
      %v2466 = vrot.slane %v2465, 4
      %v2467 = vmax.f32 %v2465, %v2466
      %v2468 = vrot.slane %v2467, 2
      %v2469 = vmax.f32 %v2467, %v2468
      %v2470 = vrot.slane %v2469, 1
      %v2471 = vmax.f32 %v2469, %v2470
      %v2472 = vpack.c.bf16 %v2453, %v2453
      %v2473 = vpack.c.bf16 %v2462, %v2462
      %v2474 = vpack.c.bf16 %v2471, %v2471
      %v2475 = vld [vmem:[%s12] sm:$0xff]
      %v2476 = vld [vmem:[%s12 + $0x8] sm:$0xf]
      %v2477 = vld [vmem:[%s12 + $0xc] sm:$0xff]
      %v2478 = vld [vmem:[%s12 + $0x14] sm:$0xf]
      %v2479 = vld [vmem:[%s12 + $0x18] sm:$0xff]
      %v2480 = vld [vmem:[%s12 + $0x20] sm:$0xf]
      %v2481 = vld [vmem:[%s12 + $0x24] sm:$0xff]
      %v2482 = vld [vmem:[%s12 + $0x2c] sm:$0xf]
      %v2483 = vld [vmem:[%s12 + $0x30] sm:$0xff]
      %v2484 = vld [vmem:[%s12 + $0x38] sm:$0xf]
      %v2485 = vld [vmem:[%s12 + $0x3c] sm:$0xff]
      %v2486 = vld [vmem:[%s12 + $0x44] sm:$0xf]
      %v2487 = vld [vmem:[%s12 + $0x48] sm:$0xff]
      %v2488 = vld [vmem:[%s12 + $0x50] sm:$0xf]
      %v2489 = vld [vmem:[%s12 + $0x54] sm:$0xff]
      %v2490 = vld [vmem:[%s12 + $0x5c] sm:$0xf]
      %v2491 = vld [vmem:[%s12 + $0x60] sm:$0xff]
      %v2492 = vld [vmem:[%s12 + $0x68] sm:$0xf]
      %v2493 = vld [vmem:[%s12 + $0x6c] sm:$0xff]
      %v2494 = vld [vmem:[%s12 + $0x74] sm:$0xf]
      %v2495 = vld [vmem:[%s12 + $0x78] sm:$0xff]
      %v2496 = vld [vmem:[%s12 + $0x80] sm:$0xf]
      %v2497 = vld [vmem:[%s12 + $0x84] sm:$0xff]
      %v2498 = vld [vmem:[%s12 + $0x8c] sm:$0xf]
      %v2499 = vld [vmem:[%s12 + $0x90] sm:$0xff]
      %v2500 = vld [vmem:[%s12 + $0x98] sm:$0xf]
      %v2501 = vld [vmem:[%s12 + $0x9c] sm:$0xff]
      %v2502 = vld [vmem:[%s12 + $0xa4] sm:$0xf]
      %v2503 = vld [vmem:[%s12 + $0xa8] sm:$0xff]
      %v2504 = vld [vmem:[%s12 + $0xb0] sm:$0xf]
      %v2505 = vld [vmem:[%s12 + $0xb4] sm:$0xff]
      %v2506 = vld [vmem:[%s12 + $0xbc] sm:$0xf]
      %v2507 = vld [vmem:[%s12 + $0xc0] sm:$0xff]
      %v2508 = vld [vmem:[%s12 + $0xc8] sm:$0xf]
      %v2509 = vld [vmem:[%s12 + $0xcc] sm:$0xff]
      %v2510 = vld [vmem:[%s12 + $0xd4] sm:$0xf]
      %v2511 = vld [vmem:[%s12 + $0xd8] sm:$0xff]
      %v2512 = vld [vmem:[%s12 + $0xe0] sm:$0xf]
      %v2513 = vld [vmem:[%s12 + $0xe4] sm:$0xff]
      %v2514 = vld [vmem:[%s12 + $0xec] sm:$0xf]
      %v2515 = vld [vmem:[%s12 + $0xf0] sm:$0xff]
      %v2516 = vld [vmem:[%s12 + $0xf8] sm:$0xf]
      %v2517 = vld [vmem:[%s12 + $0xfc] sm:$0xff]
      %v2518 = vld [vmem:[%s12 + $0x104] sm:$0xf]
      %v2519 = vld [vmem:[%s12 + $0x108] sm:$0xff]
      %v2520 = vld [vmem:[%s12 + $0x110] sm:$0xf]
      %v2521 = vld [vmem:[%s12 + $0x114] sm:$0xff]
      %v2522 = vld [vmem:[%s12 + $0x11c] sm:$0xf]
      %v2523 = vld [vmem:[%s12 + $0x120] sm:$0xff]
      %v2524 = vld [vmem:[%s12 + $0x128] sm:$0xf]
      %v2525 = vld [vmem:[%s12 + $0x12c] sm:$0xff]
      %v2526 = vld [vmem:[%s12 + $0x134] sm:$0xf]
      %v2527 = vld [vmem:[%s12 + $0x138] sm:$0xff]
      %v2528 = vld [vmem:[%s12 + $0x140] sm:$0xf]
      %v2529 = vld [vmem:[%s12 + $0x144] sm:$0xff]
      %v2530 = vld [vmem:[%s12 + $0x14c] sm:$0xf]
      %v2531 = vld [vmem:[%s12 + $0x150] sm:$0xff]
      %v2532 = vld [vmem:[%s12 + $0x158] sm:$0xf]
      %v2533 = vld [vmem:[%s12 + $0x15c] sm:$0xff]
      %v2534 = vld [vmem:[%s12 + $0x164] sm:$0xf]
      %v2535 = vld [vmem:[%s12 + $0x168] sm:$0xff]
      %v2536 = vld [vmem:[%s12 + $0x170] sm:$0xf]
      %v2537 = vld [vmem:[%s12 + $0x174] sm:$0xff]
      %v2538 = vld [vmem:[%s12 + $0x17c] sm:$0xf]
      %v2539 = vld [vmem:[%s12 + $0x180] sm:$0xff]
      %v2540 = vld [vmem:[%s12 + $0x188] sm:$0xf]
      %v2541 = vld [vmem:[%s12 + $0x18c] sm:$0xff]
      %v2542 = vld [vmem:[%s12 + $0x194] sm:$0xf]
      %v2543 = vld [vmem:[%s12 + $0x198] sm:$0xff]
      %v2544 = vld [vmem:[%s12 + $0x1a0] sm:$0xf]
      %v2545 = vld [vmem:[%s12 + $0x1a4] sm:$0xff]
      %v2546 = vld [vmem:[%s12 + $0x1ac] sm:$0xf]
      %v2547 = vld [vmem:[%s12 + $0x1b0] sm:$0xff]
      %v2548 = vld [vmem:[%s12 + $0x1b8] sm:$0xf]
      %v2549 = vld [vmem:[%s12 + $0x1bc] sm:$0xff]
      %v2550 = vld [vmem:[%s12 + $0x1c4] sm:$0xf]
      %v2551 = vld [vmem:[%s12 + $0x1c8] sm:$0xff]
      %v2552 = vld [vmem:[%s12 + $0x1d0] sm:$0xf]
      %v2553 = vld [vmem:[%s12 + $0x1d4] sm:$0xff]
      %v2554 = vld [vmem:[%s12 + $0x1dc] sm:$0xf]
      %v2555 = vld [vmem:[%s12 + $0x1e0] sm:$0xff]
      %v2556 = vld [vmem:[%s12 + $0x1e8] sm:$0xf]
      %v2557 = vld [vmem:[%s12 + $0x1ec] sm:$0xff]
      %v2558 = vld [vmem:[%s12 + $0x1f4] sm:$0xf]
      %v2559 = vld [vmem:[%s12 + $0x1f8] sm:$0xff]
      %v2560 = vld [vmem:[%s12 + $0x200] sm:$0xf]
      %v2561 = vld [vmem:[%s12 + $0x204] sm:$0xff]
      %v2562 = vld [vmem:[%s12 + $0x20c] sm:$0xf]
      %v2563 = vld [vmem:[%s12 + $0x210] sm:$0xff]
      %v2564 = vld [vmem:[%s12 + $0x218] sm:$0xf]
      %v2565 = vld [vmem:[%s12 + $0x21c] sm:$0xff]
      %v2566 = vld [vmem:[%s12 + $0x224] sm:$0xf]
      %v2567 = vld [vmem:[%s12 + $0x228] sm:$0xff]
      %v2568 = vld [vmem:[%s12 + $0x230] sm:$0xf]
      %v2569 = vld [vmem:[%s12 + $0x234] sm:$0xff]
      %v2570 = vld [vmem:[%s12 + $0x23c] sm:$0xf]
      %v2571 = vld [vmem:[%s13] sm:$0xff]
      %v2572 = vld [vmem:[%s13 + $0x8] sm:$0xf]
      %v2573 = vld [vmem:[%s13 + $0xc] sm:$0xff]
      %v2574 = vld [vmem:[%s13 + $0x14] sm:$0xf]
      %v2575 = vld [vmem:[%s13 + $0x18] sm:$0xff]
      %v2576 = vld [vmem:[%s13 + $0x20] sm:$0xf]
      %v2577 = vld [vmem:[%s13 + $0x24] sm:$0xff]
      %v2578 = vld [vmem:[%s13 + $0x2c] sm:$0xf]
      %v2579 = vld [vmem:[%s13 + $0x30] sm:$0xff]
      %v2580 = vld [vmem:[%s13 + $0x38] sm:$0xf]
      %v2581 = vld [vmem:[%s13 + $0x3c] sm:$0xff]
      %v2582 = vld [vmem:[%s13 + $0x44] sm:$0xf]
      %v2583 = vld [vmem:[%s13 + $0x48] sm:$0xff]
      %v2584 = vld [vmem:[%s13 + $0x50] sm:$0xf]
      %v2585 = vld [vmem:[%s13 + $0x54] sm:$0xff]
      %v2586 = vld [vmem:[%s13 + $0x5c] sm:$0xf]
      %v2587 = vld [vmem:[%s13 + $0x60] sm:$0xff]
      %v2588 = vld [vmem:[%s13 + $0x68] sm:$0xf]
      %v2589 = vld [vmem:[%s13 + $0x6c] sm:$0xff]
      %v2590 = vld [vmem:[%s13 + $0x74] sm:$0xf]
      %v2591 = vld [vmem:[%s13 + $0x78] sm:$0xff]
      %v2592 = vld [vmem:[%s13 + $0x80] sm:$0xf]
      %v2593 = vld [vmem:[%s13 + $0x84] sm:$0xff]
      %v2594 = vld [vmem:[%s13 + $0x8c] sm:$0xf]
      %v2595 = vld [vmem:[%s13 + $0x90] sm:$0xff]
      %v2596 = vld [vmem:[%s13 + $0x98] sm:$0xf]
      %v2597 = vld [vmem:[%s13 + $0x9c] sm:$0xff]
      %v2598 = vld [vmem:[%s13 + $0xa4] sm:$0xf]
      %v2599 = vld [vmem:[%s13 + $0xa8] sm:$0xff]
      %v2600 = vld [vmem:[%s13 + $0xb0] sm:$0xf]
      %v2601 = vld [vmem:[%s13 + $0xb4] sm:$0xff]
      %v2602 = vld [vmem:[%s13 + $0xbc] sm:$0xf]
      %v2603 = vld [vmem:[%s13 + $0xc0] sm:$0xff]
      %v2604 = vld [vmem:[%s13 + $0xc8] sm:$0xf]
      %v2605 = vld [vmem:[%s13 + $0xcc] sm:$0xff]
      %v2606 = vld [vmem:[%s13 + $0xd4] sm:$0xf]
      %v2607 = vld [vmem:[%s13 + $0xd8] sm:$0xff]
      %v2608 = vld [vmem:[%s13 + $0xe0] sm:$0xf]
      %v2609 = vld [vmem:[%s13 + $0xe4] sm:$0xff]
      %v2610 = vld [vmem:[%s13 + $0xec] sm:$0xf]
      %v2611 = vld [vmem:[%s13 + $0xf0] sm:$0xff]
      %v2612 = vld [vmem:[%s13 + $0xf8] sm:$0xf]
      %v2613 = vld [vmem:[%s13 + $0xfc] sm:$0xff]
      %v2614 = vld [vmem:[%s13 + $0x104] sm:$0xf]
      %v2615 = vld [vmem:[%s13 + $0x108] sm:$0xff]
      %v2616 = vld [vmem:[%s13 + $0x110] sm:$0xf]
      %v2617 = vld [vmem:[%s13 + $0x114] sm:$0xff]
      %v2618 = vld [vmem:[%s13 + $0x11c] sm:$0xf]
      %v2619 = vld [vmem:[%s13 + $0x120] sm:$0xff]
      %v2620 = vld [vmem:[%s13 + $0x128] sm:$0xf]
      %v2621 = vld [vmem:[%s13 + $0x12c] sm:$0xff]
      %v2622 = vld [vmem:[%s13 + $0x134] sm:$0xf]
      %v2623 = vld [vmem:[%s13 + $0x138] sm:$0xff]
      %v2624 = vld [vmem:[%s13 + $0x140] sm:$0xf]
      %v2625 = vld [vmem:[%s13 + $0x144] sm:$0xff]
      %v2626 = vld [vmem:[%s13 + $0x14c] sm:$0xf]
      %v2627 = vld [vmem:[%s13 + $0x150] sm:$0xff]
      %v2628 = vld [vmem:[%s13 + $0x158] sm:$0xf]
      %v2629 = vld [vmem:[%s13 + $0x15c] sm:$0xff]
      %v2630 = vld [vmem:[%s13 + $0x164] sm:$0xf]
      %v2631 = vld [vmem:[%s13 + $0x168] sm:$0xff]
      %v2632 = vld [vmem:[%s13 + $0x170] sm:$0xf]
      %v2633 = vld [vmem:[%s13 + $0x174] sm:$0xff]
      %v2634 = vld [vmem:[%s13 + $0x17c] sm:$0xf]
      %v2635 = vld [vmem:[%s13 + $0x180] sm:$0xff]
      %v2636 = vld [vmem:[%s13 + $0x188] sm:$0xf]
      %v2637 = vld [vmem:[%s13 + $0x18c] sm:$0xff]
      %v2638 = vld [vmem:[%s13 + $0x194] sm:$0xf]
      %v2639 = vld [vmem:[%s13 + $0x198] sm:$0xff]
      %v2640 = vld [vmem:[%s13 + $0x1a0] sm:$0xf]
      %v2641 = vld [vmem:[%s13 + $0x1a4] sm:$0xff]
      %v2642 = vld [vmem:[%s13 + $0x1ac] sm:$0xf]
      %v2643 = vld [vmem:[%s13 + $0x1b0] sm:$0xff]
      %v2644 = vld [vmem:[%s13 + $0x1b8] sm:$0xf]
      %v2645 = vld [vmem:[%s13 + $0x1bc] sm:$0xff]
      %v2646 = vld [vmem:[%s13 + $0x1c4] sm:$0xf]
      %v2647 = vld [vmem:[%s13 + $0x1c8] sm:$0xff]
      %v2648 = vld [vmem:[%s13 + $0x1d0] sm:$0xf]
      %v2649 = vld [vmem:[%s13 + $0x1d4] sm:$0xff]
      %v2650 = vld [vmem:[%s13 + $0x1dc] sm:$0xf]
      %v2651 = vld [vmem:[%s13 + $0x1e0] sm:$0xff]
      %v2652 = vld [vmem:[%s13 + $0x1e8] sm:$0xf]
      %v2653 = vld [vmem:[%s13 + $0x1ec] sm:$0xff]
      %v2654 = vld [vmem:[%s13 + $0x1f4] sm:$0xf]
      %v2655 = vld [vmem:[%s13 + $0x1f8] sm:$0xff]
      %v2656 = vld [vmem:[%s13 + $0x200] sm:$0xf]
      %v2657 = vld [vmem:[%s13 + $0x204] sm:$0xff]
      %v2658 = vld [vmem:[%s13 + $0x20c] sm:$0xf]
      %v2659 = vld [vmem:[%s13 + $0x210] sm:$0xff]
      %v2660 = vld [vmem:[%s13 + $0x218] sm:$0xf]
      %v2661 = vld [vmem:[%s13 + $0x21c] sm:$0xff]
      %v2662 = vld [vmem:[%s13 + $0x224] sm:$0xf]
      %v2663 = vld [vmem:[%s13 + $0x228] sm:$0xff]
      %v2664 = vld [vmem:[%s13 + $0x230] sm:$0xf]
      %v2665 = vld [vmem:[%s13 + $0x234] sm:$0xff]
      %v2666 = vld [vmem:[%s13 + $0x23c] sm:$0xf]
      %v2763 = vunpack.c.l.b16 %v2571
      %v2764 = vunpack.c.h.b16 %v2571
      %v2765 = vunpack.c.l.b16 %v2572
      %v2766 = vunpack.c.l.b16 %v2573
      %v2767 = vunpack.c.h.b16 %v2573
      %v2768 = vunpack.c.l.b16 %v2574
      %v2769 = vunpack.c.l.b16 %v2575
      %v2770 = vunpack.c.h.b16 %v2575
      %v2771 = vunpack.c.l.b16 %v2576
      %v2772 = vunpack.c.l.b16 %v2577
      %v2773 = vunpack.c.h.b16 %v2577
      %v2774 = vunpack.c.l.b16 %v2578
      %v2775 = vunpack.c.l.b16 %v2579
      %v2776 = vunpack.c.h.b16 %v2579
      %v2777 = vunpack.c.l.b16 %v2580
      %v2778 = vunpack.c.l.b16 %v2581
      %v2779 = vunpack.c.h.b16 %v2581
      %v2780 = vunpack.c.l.b16 %v2582
      %v2781 = vunpack.c.l.b16 %v2583
      %v2782 = vunpack.c.h.b16 %v2583
      %v2783 = vunpack.c.l.b16 %v2584
      %v2784 = vunpack.c.l.b16 %v2585
      %v2785 = vunpack.c.h.b16 %v2585
      %v2786 = vunpack.c.l.b16 %v2586
      %v2787 = vunpack.c.l.b16 %v2587
      %v2788 = vunpack.c.h.b16 %v2587
      %v2789 = vunpack.c.l.b16 %v2588
      %v2790 = vunpack.c.l.b16 %v2589
      %v2791 = vunpack.c.h.b16 %v2589
      %v2792 = vunpack.c.l.b16 %v2590
      %v2793 = vunpack.c.l.b16 %v2591
      %v2794 = vunpack.c.h.b16 %v2591
      %v2795 = vunpack.c.l.b16 %v2592
      %v2796 = vunpack.c.l.b16 %v2593
      %v2797 = vunpack.c.h.b16 %v2593
      %v2798 = vunpack.c.l.b16 %v2594
      %v2799 = vunpack.c.l.b16 %v2595
      %v2800 = vunpack.c.h.b16 %v2595
      %v2801 = vunpack.c.l.b16 %v2596
      %v2802 = vunpack.c.l.b16 %v2597
      %v2803 = vunpack.c.h.b16 %v2597
      %v2804 = vunpack.c.l.b16 %v2598
      %v2805 = vunpack.c.l.b16 %v2599
      %v2806 = vunpack.c.h.b16 %v2599
      %v2807 = vunpack.c.l.b16 %v2600
      %v2808 = vunpack.c.l.b16 %v2601
      %v2809 = vunpack.c.h.b16 %v2601
      %v2810 = vunpack.c.l.b16 %v2602
      %v2811 = vunpack.c.l.b16 %v2603
      %v2812 = vunpack.c.h.b16 %v2603
      %v2813 = vunpack.c.l.b16 %v2604
      %v2814 = vunpack.c.l.b16 %v2605
      %v2815 = vunpack.c.h.b16 %v2605
      %v2816 = vunpack.c.l.b16 %v2606
      %v2817 = vunpack.c.l.b16 %v2607
      %v2818 = vunpack.c.h.b16 %v2607
      %v2819 = vunpack.c.l.b16 %v2608
      %v2820 = vunpack.c.l.b16 %v2609
      %v2821 = vunpack.c.h.b16 %v2609
      %v2822 = vunpack.c.l.b16 %v2610
      %v2823 = vunpack.c.l.b16 %v2611
      %v2824 = vunpack.c.h.b16 %v2611
      %v2825 = vunpack.c.l.b16 %v2612
      %v2826 = vunpack.c.l.b16 %v2613
      %v2827 = vunpack.c.h.b16 %v2613
      %v2828 = vunpack.c.l.b16 %v2614
      %v2829 = vunpack.c.l.b16 %v2615
      %v2830 = vunpack.c.h.b16 %v2615
      %v2831 = vunpack.c.l.b16 %v2616
      %v2832 = vunpack.c.l.b16 %v2617
      %v2833 = vunpack.c.h.b16 %v2617
      %v2834 = vunpack.c.l.b16 %v2618
      %v2835 = vunpack.c.l.b16 %v2619
      %v2836 = vunpack.c.h.b16 %v2619
      %v2837 = vunpack.c.l.b16 %v2620
      %v2838 = vunpack.c.l.b16 %v2621
      %v2839 = vunpack.c.h.b16 %v2621
      %v2840 = vunpack.c.l.b16 %v2622
      %v2841 = vunpack.c.l.b16 %v2623
      %v2842 = vunpack.c.h.b16 %v2623
      %v2843 = vunpack.c.l.b16 %v2624
      %v2844 = vunpack.c.l.b16 %v2625
      %v2845 = vunpack.c.h.b16 %v2625
      %v2846 = vunpack.c.l.b16 %v2626
      %v2847 = vunpack.c.l.b16 %v2627
      %v2848 = vunpack.c.h.b16 %v2627
      %v2849 = vunpack.c.l.b16 %v2628
      %v2850 = vunpack.c.l.b16 %v2629
      %v2851 = vunpack.c.h.b16 %v2629
      %v2852 = vunpack.c.l.b16 %v2630
      %v2853 = vunpack.c.l.b16 %v2631
      %v2854 = vunpack.c.h.b16 %v2631
      %v2855 = vunpack.c.l.b16 %v2632
      %v2856 = vunpack.c.l.b16 %v2633
      %v2857 = vunpack.c.h.b16 %v2633
      %v2858 = vunpack.c.l.b16 %v2634
      %v2859 = vunpack.c.l.b16 %v2635
      %v2860 = vunpack.c.h.b16 %v2635
      %v2861 = vunpack.c.l.b16 %v2636
      %v2862 = vunpack.c.l.b16 %v2637
      %v2863 = vunpack.c.h.b16 %v2637
      %v2864 = vunpack.c.l.b16 %v2638
      %v2865 = vunpack.c.l.b16 %v2639
      %v2866 = vunpack.c.h.b16 %v2639
      %v2867 = vunpack.c.l.b16 %v2640
      %v2868 = vunpack.c.l.b16 %v2641
      %v2869 = vunpack.c.h.b16 %v2641
      %v2870 = vunpack.c.l.b16 %v2642
      %v2871 = vunpack.c.l.b16 %v2643
      %v2872 = vunpack.c.h.b16 %v2643
      %v2873 = vunpack.c.l.b16 %v2644
      %v2874 = vunpack.c.l.b16 %v2645
      %v2875 = vunpack.c.h.b16 %v2645
      %v2876 = vunpack.c.l.b16 %v2646
      %v2877 = vunpack.c.l.b16 %v2647
      %v2878 = vunpack.c.h.b16 %v2647
      %v2879 = vunpack.c.l.b16 %v2648
      %v2880 = vunpack.c.l.b16 %v2649
      %v2881 = vunpack.c.h.b16 %v2649
      %v2882 = vunpack.c.l.b16 %v2650
      %v2883 = vunpack.c.l.b16 %v2651
      %v2884 = vunpack.c.h.b16 %v2651
      %v2885 = vunpack.c.l.b16 %v2652
      %v2886 = vunpack.c.l.b16 %v2653
      %v2887 = vunpack.c.h.b16 %v2653
      %v2888 = vunpack.c.l.b16 %v2654
      %v2889 = vunpack.c.l.b16 %v2655
      %v2890 = vunpack.c.h.b16 %v2655
      %v2891 = vunpack.c.l.b16 %v2656
      %v2892 = vunpack.c.l.b16 %v2657
      %v2893 = vunpack.c.h.b16 %v2657
      %v2894 = vunpack.c.l.b16 %v2658
      %v2895 = vunpack.c.l.b16 %v2659
      %v2896 = vunpack.c.h.b16 %v2659
      %v2897 = vunpack.c.l.b16 %v2660
      %v2898 = vunpack.c.l.b16 %v2661
      %v2899 = vunpack.c.h.b16 %v2661
      %v2900 = vunpack.c.l.b16 %v2662
      %v2901 = vunpack.c.l.b16 %v2663
      %v2902 = vunpack.c.h.b16 %v2663
      %v2903 = vunpack.c.l.b16 %v2664
      %v2904 = vunpack.c.l.b16 %v2665
      %v2905 = vunpack.c.h.b16 %v2665
      %v2906 = vunpack.c.l.b16 %v2666
      %v2907 = vpack.c.b16 %v2766, %v2763
      %v2908 = vpack.c.b16 %v2767, %v2764
      %v2909 = vpack.c.b16 %v2768, %v2765
      %v2910 = vpack.c.b16 %v2772, %v2769
      %v2911 = vpack.c.b16 %v2773, %v2770
      %v2912 = vpack.c.b16 %v2774, %v2771
      %v2913 = vpack.c.b16 %v2778, %v2775
      %v2914 = vpack.c.b16 %v2779, %v2776
      %v2915 = vpack.c.b16 %v2780, %v2777
      %v2916 = vpack.c.b16 %v2784, %v2781
      %v2917 = vpack.c.b16 %v2785, %v2782
      %v2918 = vpack.c.b16 %v2786, %v2783
      %v2919 = vpack.c.b16 %v2790, %v2787
      %v2920 = vpack.c.b16 %v2791, %v2788
      %v2921 = vpack.c.b16 %v2792, %v2789
      %v2922 = vpack.c.b16 %v2796, %v2793
      %v2923 = vpack.c.b16 %v2797, %v2794
      %v2924 = vpack.c.b16 %v2798, %v2795
      %v2925 = vpack.c.b16 %v2802, %v2799
      %v2926 = vpack.c.b16 %v2803, %v2800
      %v2927 = vpack.c.b16 %v2804, %v2801
      %v2928 = vpack.c.b16 %v2808, %v2805
      %v2929 = vpack.c.b16 %v2809, %v2806
      %v2930 = vpack.c.b16 %v2810, %v2807
      %v2931 = vpack.c.b16 %v2814, %v2811
      %v2932 = vpack.c.b16 %v2815, %v2812
      %v2933 = vpack.c.b16 %v2816, %v2813
      %v2934 = vpack.c.b16 %v2820, %v2817
      %v2935 = vpack.c.b16 %v2821, %v2818
      %v2936 = vpack.c.b16 %v2822, %v2819
      %v2937 = vpack.c.b16 %v2826, %v2823
      %v2938 = vpack.c.b16 %v2827, %v2824
      %v2939 = vpack.c.b16 %v2828, %v2825
      %v2940 = vpack.c.b16 %v2832, %v2829
      %v2941 = vpack.c.b16 %v2833, %v2830
      %v2942 = vpack.c.b16 %v2834, %v2831
      %v2943 = vpack.c.b16 %v2838, %v2835
      %v2944 = vpack.c.b16 %v2839, %v2836
      %v2945 = vpack.c.b16 %v2840, %v2837
      %v2946 = vpack.c.b16 %v2844, %v2841
      %v2947 = vpack.c.b16 %v2845, %v2842
      %v2948 = vpack.c.b16 %v2846, %v2843
      %v2949 = vpack.c.b16 %v2850, %v2847
      %v2950 = vpack.c.b16 %v2851, %v2848
      %v2951 = vpack.c.b16 %v2852, %v2849
      %v2952 = vpack.c.b16 %v2856, %v2853
      %v2953 = vpack.c.b16 %v2857, %v2854
      %v2954 = vpack.c.b16 %v2858, %v2855
      %v2955 = vpack.c.b16 %v2862, %v2859
      %v2956 = vpack.c.b16 %v2863, %v2860
      %v2957 = vpack.c.b16 %v2864, %v2861
      %v2958 = vpack.c.b16 %v2868, %v2865
      %v2959 = vpack.c.b16 %v2869, %v2866
      %v2960 = vpack.c.b16 %v2870, %v2867
      %v2961 = vpack.c.b16 %v2874, %v2871
      %v2962 = vpack.c.b16 %v2875, %v2872
      %v2963 = vpack.c.b16 %v2876, %v2873
      %v2964 = vpack.c.b16 %v2880, %v2877
      %v2965 = vpack.c.b16 %v2881, %v2878
      %v2966 = vpack.c.b16 %v2882, %v2879
      %v2967 = vpack.c.b16 %v2886, %v2883
      %v2968 = vpack.c.b16 %v2887, %v2884
      %v2969 = vpack.c.b16 %v2888, %v2885
      %v2970 = vpack.c.b16 %v2892, %v2889
      %v2971 = vpack.c.b16 %v2893, %v2890
      %v2972 = vpack.c.b16 %v2894, %v2891
      %v2973 = vpack.c.b16 %v2898, %v2895
      %v2974 = vpack.c.b16 %v2899, %v2896
      %v2975 = vpack.c.b16 %v2900, %v2897
      %v2976 = vpack.c.b16 %v2904, %v2901
      %v2977 = vpack.c.b16 %v2905, %v2902
      %v2978 = vpack.c.b16 %v2906, %v2903
      %3051 = vmatpush.bf16.msra.mxu0 %v2928
      %3052 = vmatpush.bf16.msra.mxu0 %v2925
      %3053 = vmatpush.bf16.msra.mxu0 %v2922
      %3054 = vmatpush.bf16.msra.mxu0 %v2919
      %3055 = vmatpush.bf16.msra.mxu0 %v2916
      %3056 = vmatpush.bf16.msra.mxu0 %v2913
      %3057 = vmatpush.bf16.msra.mxu0 %v2910
      %3058 = vmatpush.bf16.msra.mxu0 %v2907
      %3059 = vmatmul.bf16.gmra.mxu0 %v2472
      %v3060 = vpop.f32.mrf.mxu0
      %v3061 = vadd.f32 0.0, %v3060
      %v3062 = vpop.f32.mrf.mxu0
      %3063 = vdwg.mxu0
      %3064 = vmatpush.bf16.msra.mxu0 %v2952
      %3065 = vmatpush.bf16.msra.mxu0 %v2949
      %3066 = vmatpush.bf16.msra.mxu0 %v2946
      %3067 = vmatpush.bf16.msra.mxu0 %v2943
      %3068 = vmatpush.bf16.msra.mxu0 %v2940
      %3069 = vmatpush.bf16.msra.mxu0 %v2937
      %3070 = vmatpush.bf16.msra.mxu0 %v2934
      %3071 = vmatpush.bf16.msra.mxu0 %v2931
      %3072 = vmatmul.bf16.gmra.mxu0 %v2473
      %v3073 = vpop.f32.mrf.mxu0
      %v3074 = vadd.f32 %v3061, %v3073
      %v3075 = vpop.f32.mrf.mxu0
      %3076 = vdwg.mxu0
      %3077 = vmatpush.bf16.msra.mxu0 %v2976
      %3078 = vmatpush.bf16.msra.mxu0 %v2973
      %3079 = vmatpush.bf16.msra.mxu0 %v2970
      %3080 = vmatpush.bf16.msra.mxu0 %v2967
      %3081 = vmatpush.bf16.msra.mxu0 %v2964
      %3082 = vmatpush.bf16.msra.mxu0 %v2961
      %3083 = vmatpush.bf16.msra.mxu0 %v2958
      %3084 = vmatpush.bf16.msra.mxu0 %v2955
      %3085 = vmatmul.bf16.gmra.mxu0 %v2474
      %v3086 = vpop.f32.mrf.mxu0
      %v3087 = vadd.f32 %v3074, %v3086
      %v3088 = vpop.f32.mrf.mxu0
      %3089 = vdwg.mxu0
      %3090 = vmatpush.bf16.msra.mxu0 %v2929
      %3091 = vmatpush.bf16.msra.mxu0 %v2926
      %3092 = vmatpush.bf16.msra.mxu0 %v2923
      %3093 = vmatpush.bf16.msra.mxu0 %v2920
      %3094 = vmatpush.bf16.msra.mxu0 %v2917
      %3095 = vmatpush.bf16.msra.mxu0 %v2914
      %3096 = vmatpush.bf16.msra.mxu0 %v2911
      %3097 = vmatpush.bf16.msra.mxu0 %v2908
      %3098 = vmatmul.bf16.gmra.mxu0 %v2472
      %v3099 = vpop.f32.mrf.mxu0
      %v3100 = vadd.f32 0.0, %v3099
      %v3101 = vpop.f32.mrf.mxu0
      %3102 = vdwg.mxu0
      %3103 = vmatpush.bf16.msra.mxu0 %v2953
      %3104 = vmatpush.bf16.msra.mxu0 %v2950
      %3105 = vmatpush.bf16.msra.mxu0 %v2947
      %3106 = vmatpush.bf16.msra.mxu0 %v2944
      %3107 = vmatpush.bf16.msra.mxu0 %v2941
      %3108 = vmatpush.bf16.msra.mxu0 %v2938
      %3109 = vmatpush.bf16.msra.mxu0 %v2935
      %3110 = vmatpush.bf16.msra.mxu0 %v2932
      %3111 = vmatmul.bf16.gmra.mxu0 %v2473
      %v3112 = vpop.f32.mrf.mxu0
      %v3113 = vadd.f32 %v3100, %v3112
      %v3114 = vpop.f32.mrf.mxu0
      %3115 = vdwg.mxu0
      %3116 = vmatpush.bf16.msra.mxu0 %v2977
      %3117 = vmatpush.bf16.msra.mxu0 %v2974
      %3118 = vmatpush.bf16.msra.mxu0 %v2971
      %3119 = vmatpush.bf16.msra.mxu0 %v2968
      %3120 = vmatpush.bf16.msra.mxu0 %v2965
      %3121 = vmatpush.bf16.msra.mxu0 %v2962
      %3122 = vmatpush.bf16.msra.mxu0 %v2959
      %3123 = vmatpush.bf16.msra.mxu0 %v2956
      %3124 = vmatmul.bf16.gmra.mxu0 %v2474
      %v3125 = vpop.f32.mrf.mxu0
      %v3126 = vadd.f32 %v3113, %v3125
      %v3127 = vpop.f32.mrf.mxu0
      %3128 = vdwg.mxu0
      %3129 = vmatpush.bf16.msra.mxu0 %v2930
      %3130 = vmatpush.bf16.msra.mxu0 %v2927
      %3131 = vmatpush.bf16.msra.mxu0 %v2924
      %3132 = vmatpush.bf16.msra.mxu0 %v2921
      %3133 = vmatpush.bf16.msra.mxu0 %v2918
      %3134 = vmatpush.bf16.msra.mxu0 %v2915
      %3135 = vmatpush.bf16.msra.mxu0 %v2912
      %3136 = vmatpush.bf16.msra.mxu0 %v2909
      %3137 = vmatmul.bf16.gmra.mxu0 %v2472
      %v3138 = vpop.f32.mrf.mxu0
      %v3139 = vadd.f32 0.0, %v3138
      %v3140 = vpop.f32.mrf.mxu0
      %3141 = vdwg.mxu0
      %3142 = vmatpush.bf16.msra.mxu0 %v2954
      %3143 = vmatpush.bf16.msra.mxu0 %v2951
      %3144 = vmatpush.bf16.msra.mxu0 %v2948
      %3145 = vmatpush.bf16.msra.mxu0 %v2945
      %3146 = vmatpush.bf16.msra.mxu0 %v2942
      %3147 = vmatpush.bf16.msra.mxu0 %v2939
      %3148 = vmatpush.bf16.msra.mxu0 %v2936
      %3149 = vmatpush.bf16.msra.mxu0 %v2933
      %3150 = vmatmul.bf16.gmra.mxu0 %v2473
      %v3151 = vpop.f32.mrf.mxu0
      %v3152 = vadd.f32 %v3139, %v3151
      %v3153 = vpop.f32.mrf.mxu0
      %3154 = vdwg.mxu0
      %3155 = vmatpush.bf16.msra.mxu0 %v2978
      %3156 = vmatpush.bf16.msra.mxu0 %v2975
      %3157 = vmatpush.bf16.msra.mxu0 %v2972
      %3158 = vmatpush.bf16.msra.mxu0 %v2969
      %3159 = vmatpush.bf16.msra.mxu0 %v2966
      %3160 = vmatpush.bf16.msra.mxu0 %v2963
      %3161 = vmatpush.bf16.msra.mxu0 %v2960
      %3162 = vmatpush.bf16.msra.mxu0 %v2957
      %3163 = vmatmul.bf16.gmra.mxu0 %v2474
      %v3164 = vpop.f32.mrf.mxu0
      %v3165 = vadd.f32 %v3152, %v3164
      %v3166 = vpop.f32.mrf.mxu0
      %3167 = vdwg.mxu0
      %v3264 = vunpack.c.l.b16 %v2475
      %v3265 = vunpack.c.h.b16 %v2475
      %v3266 = vunpack.c.l.b16 %v2476
      %v3267 = vunpack.c.l.b16 %v2477
      %v3268 = vunpack.c.h.b16 %v2477
      %v3269 = vunpack.c.l.b16 %v2478
      %v3270 = vunpack.c.l.b16 %v2479
      %v3271 = vunpack.c.h.b16 %v2479
      %v3272 = vunpack.c.l.b16 %v2480
      %v3273 = vunpack.c.l.b16 %v2481
      %v3274 = vunpack.c.h.b16 %v2481
      %v3275 = vunpack.c.l.b16 %v2482
      %v3276 = vunpack.c.l.b16 %v2483
      %v3277 = vunpack.c.h.b16 %v2483
      %v3278 = vunpack.c.l.b16 %v2484
      %v3279 = vunpack.c.l.b16 %v2485
      %v3280 = vunpack.c.h.b16 %v2485
      %v3281 = vunpack.c.l.b16 %v2486
      %v3282 = vunpack.c.l.b16 %v2487
      %v3283 = vunpack.c.h.b16 %v2487
      %v3284 = vunpack.c.l.b16 %v2488
      %v3285 = vunpack.c.l.b16 %v2489
      %v3286 = vunpack.c.h.b16 %v2489
      %v3287 = vunpack.c.l.b16 %v2490
      %v3288 = vunpack.c.l.b16 %v2491
      %v3289 = vunpack.c.h.b16 %v2491
      %v3290 = vunpack.c.l.b16 %v2492
      %v3291 = vunpack.c.l.b16 %v2493
      %v3292 = vunpack.c.h.b16 %v2493
      %v3293 = vunpack.c.l.b16 %v2494
      %v3294 = vunpack.c.l.b16 %v2495
      %v3295 = vunpack.c.h.b16 %v2495
      %v3296 = vunpack.c.l.b16 %v2496
      %v3297 = vunpack.c.l.b16 %v2497
      %v3298 = vunpack.c.h.b16 %v2497
      %v3299 = vunpack.c.l.b16 %v2498
      %v3300 = vunpack.c.l.b16 %v2499
      %v3301 = vunpack.c.h.b16 %v2499
      %v3302 = vunpack.c.l.b16 %v2500
      %v3303 = vunpack.c.l.b16 %v2501
      %v3304 = vunpack.c.h.b16 %v2501
      %v3305 = vunpack.c.l.b16 %v2502
      %v3306 = vunpack.c.l.b16 %v2503
      %v3307 = vunpack.c.h.b16 %v2503
      %v3308 = vunpack.c.l.b16 %v2504
      %v3309 = vunpack.c.l.b16 %v2505
      %v3310 = vunpack.c.h.b16 %v2505
      %v3311 = vunpack.c.l.b16 %v2506
      %v3312 = vunpack.c.l.b16 %v2507
      %v3313 = vunpack.c.h.b16 %v2507
      %v3314 = vunpack.c.l.b16 %v2508
      %v3315 = vunpack.c.l.b16 %v2509
      %v3316 = vunpack.c.h.b16 %v2509
      %v3317 = vunpack.c.l.b16 %v2510
      %v3318 = vunpack.c.l.b16 %v2511
      %v3319 = vunpack.c.h.b16 %v2511
      %v3320 = vunpack.c.l.b16 %v2512
      %v3321 = vunpack.c.l.b16 %v2513
      %v3322 = vunpack.c.h.b16 %v2513
      %v3323 = vunpack.c.l.b16 %v2514
      %v3324 = vunpack.c.l.b16 %v2515
      %v3325 = vunpack.c.h.b16 %v2515
      %v3326 = vunpack.c.l.b16 %v2516
      %v3327 = vunpack.c.l.b16 %v2517
      %v3328 = vunpack.c.h.b16 %v2517
      %v3329 = vunpack.c.l.b16 %v2518
      %v3330 = vunpack.c.l.b16 %v2519
      %v3331 = vunpack.c.h.b16 %v2519
      %v3332 = vunpack.c.l.b16 %v2520
      %v3333 = vunpack.c.l.b16 %v2521
      %v3334 = vunpack.c.h.b16 %v2521
      %v3335 = vunpack.c.l.b16 %v2522
      %v3336 = vunpack.c.l.b16 %v2523
      %v3337 = vunpack.c.h.b16 %v2523
      %v3338 = vunpack.c.l.b16 %v2524
      %v3339 = vunpack.c.l.b16 %v2525
      %v3340 = vunpack.c.h.b16 %v2525
      %v3341 = vunpack.c.l.b16 %v2526
      %v3342 = vunpack.c.l.b16 %v2527
      %v3343 = vunpack.c.h.b16 %v2527
      %v3344 = vunpack.c.l.b16 %v2528
      %v3345 = vunpack.c.l.b16 %v2529
      %v3346 = vunpack.c.h.b16 %v2529
      %v3347 = vunpack.c.l.b16 %v2530
      %v3348 = vunpack.c.l.b16 %v2531
      %v3349 = vunpack.c.h.b16 %v2531
      %v3350 = vunpack.c.l.b16 %v2532
      %v3351 = vunpack.c.l.b16 %v2533
      %v3352 = vunpack.c.h.b16 %v2533
      %v3353 = vunpack.c.l.b16 %v2534
      %v3354 = vunpack.c.l.b16 %v2535
      %v3355 = vunpack.c.h.b16 %v2535
      %v3356 = vunpack.c.l.b16 %v2536
      %v3357 = vunpack.c.l.b16 %v2537
      %v3358 = vunpack.c.h.b16 %v2537
      %v3359 = vunpack.c.l.b16 %v2538
      %v3360 = vunpack.c.l.b16 %v2539
      %v3361 = vunpack.c.h.b16 %v2539
      %v3362 = vunpack.c.l.b16 %v2540
      %v3363 = vunpack.c.l.b16 %v2541
      %v3364 = vunpack.c.h.b16 %v2541
      %v3365 = vunpack.c.l.b16 %v2542
      %v3366 = vunpack.c.l.b16 %v2543
      %v3367 = vunpack.c.h.b16 %v2543
      %v3368 = vunpack.c.l.b16 %v2544
      %v3369 = vunpack.c.l.b16 %v2545
      %v3370 = vunpack.c.h.b16 %v2545
      %v3371 = vunpack.c.l.b16 %v2546
      %v3372 = vunpack.c.l.b16 %v2547
      %v3373 = vunpack.c.h.b16 %v2547
      %v3374 = vunpack.c.l.b16 %v2548
      %v3375 = vunpack.c.l.b16 %v2549
      %v3376 = vunpack.c.h.b16 %v2549
      %v3377 = vunpack.c.l.b16 %v2550
      %v3378 = vunpack.c.l.b16 %v2551
      %v3379 = vunpack.c.h.b16 %v2551
      %v3380 = vunpack.c.l.b16 %v2552
      %v3381 = vunpack.c.l.b16 %v2553
      %v3382 = vunpack.c.h.b16 %v2553
      %v3383 = vunpack.c.l.b16 %v2554
      %v3384 = vunpack.c.l.b16 %v2555
      %v3385 = vunpack.c.h.b16 %v2555
      %v3386 = vunpack.c.l.b16 %v2556
      %v3387 = vunpack.c.l.b16 %v2557
      %v3388 = vunpack.c.h.b16 %v2557
      %v3389 = vunpack.c.l.b16 %v2558
      %v3390 = vunpack.c.l.b16 %v2559
      %v3391 = vunpack.c.h.b16 %v2559
      %v3392 = vunpack.c.l.b16 %v2560
      %v3393 = vunpack.c.l.b16 %v2561
      %v3394 = vunpack.c.h.b16 %v2561
      %v3395 = vunpack.c.l.b16 %v2562
      %v3396 = vunpack.c.l.b16 %v2563
      %v3397 = vunpack.c.h.b16 %v2563
      %v3398 = vunpack.c.l.b16 %v2564
      %v3399 = vunpack.c.l.b16 %v2565
      %v3400 = vunpack.c.h.b16 %v2565
      %v3401 = vunpack.c.l.b16 %v2566
      %v3402 = vunpack.c.l.b16 %v2567
      %v3403 = vunpack.c.h.b16 %v2567
      %v3404 = vunpack.c.l.b16 %v2568
      %v3405 = vunpack.c.l.b16 %v2569
      %v3406 = vunpack.c.h.b16 %v2569
      %v3407 = vunpack.c.l.b16 %v2570
      %v3408 = vpack.c.b16 %v3267, %v3264
      %v3409 = vpack.c.b16 %v3268, %v3265
      %v3410 = vpack.c.b16 %v3269, %v3266
      %v3411 = vpack.c.b16 %v3273, %v3270
      %v3412 = vpack.c.b16 %v3274, %v3271
      %v3413 = vpack.c.b16 %v3275, %v3272
      %v3414 = vpack.c.b16 %v3279, %v3276
      %v3415 = vpack.c.b16 %v3280, %v3277
      %v3416 = vpack.c.b16 %v3281, %v3278
      %v3417 = vpack.c.b16 %v3285, %v3282
      %v3418 = vpack.c.b16 %v3286, %v3283
      %v3419 = vpack.c.b16 %v3287, %v3284
      %v3420 = vpack.c.b16 %v3291, %v3288
      %v3421 = vpack.c.b16 %v3292, %v3289
      %v3422 = vpack.c.b16 %v3293, %v3290
      %v3423 = vpack.c.b16 %v3297, %v3294
      %v3424 = vpack.c.b16 %v3298, %v3295
      %v3425 = vpack.c.b16 %v3299, %v3296
      %v3426 = vpack.c.b16 %v3303, %v3300
      %v3427 = vpack.c.b16 %v3304, %v3301
      %v3428 = vpack.c.b16 %v3305, %v3302
      %v3429 = vpack.c.b16 %v3309, %v3306
      %v3430 = vpack.c.b16 %v3310, %v3307
      %v3431 = vpack.c.b16 %v3311, %v3308
      %v3432 = vpack.c.b16 %v3315, %v3312
      %v3433 = vpack.c.b16 %v3316, %v3313
      %v3434 = vpack.c.b16 %v3317, %v3314
      %v3435 = vpack.c.b16 %v3321, %v3318
      %v3436 = vpack.c.b16 %v3322, %v3319
      %v3437 = vpack.c.b16 %v3323, %v3320
      %v3438 = vpack.c.b16 %v3327, %v3324
      %v3439 = vpack.c.b16 %v3328, %v3325
      %v3440 = vpack.c.b16 %v3329, %v3326
      %v3441 = vpack.c.b16 %v3333, %v3330
      %v3442 = vpack.c.b16 %v3334, %v3331
      %v3443 = vpack.c.b16 %v3335, %v3332
      %v3444 = vpack.c.b16 %v3339, %v3336
      %v3445 = vpack.c.b16 %v3340, %v3337
      %v3446 = vpack.c.b16 %v3341, %v3338
      %v3447 = vpack.c.b16 %v3345, %v3342
      %v3448 = vpack.c.b16 %v3346, %v3343
      %v3449 = vpack.c.b16 %v3347, %v3344
      %v3450 = vpack.c.b16 %v3351, %v3348
      %v3451 = vpack.c.b16 %v3352, %v3349
      %v3452 = vpack.c.b16 %v3353, %v3350
      %v3453 = vpack.c.b16 %v3357, %v3354
      %v3454 = vpack.c.b16 %v3358, %v3355
      %v3455 = vpack.c.b16 %v3359, %v3356
      %v3456 = vpack.c.b16 %v3363, %v3360
      %v3457 = vpack.c.b16 %v3364, %v3361
      %v3458 = vpack.c.b16 %v3365, %v3362
      %v3459 = vpack.c.b16 %v3369, %v3366
      %v3460 = vpack.c.b16 %v3370, %v3367
      %v3461 = vpack.c.b16 %v3371, %v3368
      %v3462 = vpack.c.b16 %v3375, %v3372
      %v3463 = vpack.c.b16 %v3376, %v3373
      %v3464 = vpack.c.b16 %v3377, %v3374
      %v3465 = vpack.c.b16 %v3381, %v3378
      %v3466 = vpack.c.b16 %v3382, %v3379
      %v3467 = vpack.c.b16 %v3383, %v3380
      %v3468 = vpack.c.b16 %v3387, %v3384
      %v3469 = vpack.c.b16 %v3388, %v3385
      %v3470 = vpack.c.b16 %v3389, %v3386
      %v3471 = vpack.c.b16 %v3393, %v3390
      %v3472 = vpack.c.b16 %v3394, %v3391
      %v3473 = vpack.c.b16 %v3395, %v3392
      %v3474 = vpack.c.b16 %v3399, %v3396
      %v3475 = vpack.c.b16 %v3400, %v3397
      %v3476 = vpack.c.b16 %v3401, %v3398
      %v3477 = vpack.c.b16 %v3405, %v3402
      %v3478 = vpack.c.b16 %v3406, %v3403
      %v3479 = vpack.c.b16 %v3407, %v3404
      %3552 = vmatpush.bf16.msra.mxu0 %v3429
      %3553 = vmatpush.bf16.msra.mxu0 %v3426
      %3554 = vmatpush.bf16.msra.mxu0 %v3423
      %3555 = vmatpush.bf16.msra.mxu0 %v3420
      %3556 = vmatpush.bf16.msra.mxu0 %v3417
      %3557 = vmatpush.bf16.msra.mxu0 %v3414
      %3558 = vmatpush.bf16.msra.mxu0 %v3411
      %3559 = vmatpush.bf16.msra.mxu0 %v3408
      %3560 = vmatmul.bf16.gmra.mxu0 %v2442
      %v3561 = vpop.f32.mrf.mxu0
      %v3562 = vadd.f32 %v3087, %v3561
      %v3563 = vpop.f32.mrf.mxu0
      %3564 = vdwg.mxu0
      %3565 = vmatpush.bf16.msra.mxu0 %v3453
      %3566 = vmatpush.bf16.msra.mxu0 %v3450
      %3567 = vmatpush.bf16.msra.mxu0 %v3447
      %3568 = vmatpush.bf16.msra.mxu0 %v3444
      %3569 = vmatpush.bf16.msra.mxu0 %v3441
      %3570 = vmatpush.bf16.msra.mxu0 %v3438
      %3571 = vmatpush.bf16.msra.mxu0 %v3435
      %3572 = vmatpush.bf16.msra.mxu0 %v3432
      %3573 = vmatmul.bf16.gmra.mxu0 %v2443
      %v3574 = vpop.f32.mrf.mxu0
      %v3575 = vadd.f32 %v3562, %v3574
      %v3576 = vpop.f32.mrf.mxu0
      %3577 = vdwg.mxu0
      %3578 = vmatpush.bf16.msra.mxu0 %v3477
      %3579 = vmatpush.bf16.msra.mxu0 %v3474
      %3580 = vmatpush.bf16.msra.mxu0 %v3471
      %3581 = vmatpush.bf16.msra.mxu0 %v3468
      %3582 = vmatpush.bf16.msra.mxu0 %v3465
      %3583 = vmatpush.bf16.msra.mxu0 %v3462
      %3584 = vmatpush.bf16.msra.mxu0 %v3459
      %3585 = vmatpush.bf16.msra.mxu0 %v3456
      %3586 = vmatmul.bf16.gmra.mxu0 %v2444
      %v3587 = vpop.f32.mrf.mxu0
      %v3588 = vadd.f32 %v3575, %v3587
      %v3589 = vpop.f32.mrf.mxu0
      %3590 = vdwg.mxu0
      %3591 = vmatpush.bf16.msra.mxu0 %v3430
      %3592 = vmatpush.bf16.msra.mxu0 %v3427
      %3593 = vmatpush.bf16.msra.mxu0 %v3424
      %3594 = vmatpush.bf16.msra.mxu0 %v3421
      %3595 = vmatpush.bf16.msra.mxu0 %v3418
      %3596 = vmatpush.bf16.msra.mxu0 %v3415
      %3597 = vmatpush.bf16.msra.mxu0 %v3412
      %3598 = vmatpush.bf16.msra.mxu0 %v3409
      %3599 = vmatmul.bf16.gmra.mxu0 %v2442
      %v3600 = vpop.f32.mrf.mxu0
      %v3601 = vadd.f32 %v3126, %v3600
      %v3602 = vpop.f32.mrf.mxu0
      %3603 = vdwg.mxu0
      %3604 = vmatpush.bf16.msra.mxu0 %v3454
      %3605 = vmatpush.bf16.msra.mxu0 %v3451
      %3606 = vmatpush.bf16.msra.mxu0 %v3448
      %3607 = vmatpush.bf16.msra.mxu0 %v3445
      %3608 = vmatpush.bf16.msra.mxu0 %v3442
      %3609 = vmatpush.bf16.msra.mxu0 %v3439
      %3610 = vmatpush.bf16.msra.mxu0 %v3436
      %3611 = vmatpush.bf16.msra.mxu0 %v3433
      %3612 = vmatmul.bf16.gmra.mxu0 %v2443
      %v3613 = vpop.f32.mrf.mxu0
      %v3614 = vadd.f32 %v3601, %v3613
      %v3615 = vpop.f32.mrf.mxu0
      %3616 = vdwg.mxu0
      %3617 = vmatpush.bf16.msra.mxu0 %v3478
      %3618 = vmatpush.bf16.msra.mxu0 %v3475
      %3619 = vmatpush.bf16.msra.mxu0 %v3472
      %3620 = vmatpush.bf16.msra.mxu0 %v3469
      %3621 = vmatpush.bf16.msra.mxu0 %v3466
      %3622 = vmatpush.bf16.msra.mxu0 %v3463
      %3623 = vmatpush.bf16.msra.mxu0 %v3460
      %3624 = vmatpush.bf16.msra.mxu0 %v3457
      %3625 = vmatmul.bf16.gmra.mxu0 %v2444
      %v3626 = vpop.f32.mrf.mxu0
      %v3627 = vadd.f32 %v3614, %v3626
      %v3628 = vpop.f32.mrf.mxu0
      %3629 = vdwg.mxu0
      %3630 = vmatpush.bf16.msra.mxu0 %v3431
      %3631 = vmatpush.bf16.msra.mxu0 %v3428
      %3632 = vmatpush.bf16.msra.mxu0 %v3425
      %3633 = vmatpush.bf16.msra.mxu0 %v3422
      %3634 = vmatpush.bf16.msra.mxu0 %v3419
      %3635 = vmatpush.bf16.msra.mxu0 %v3416
      %3636 = vmatpush.bf16.msra.mxu0 %v3413
      %3637 = vmatpush.bf16.msra.mxu0 %v3410
      %3638 = vmatmul.bf16.gmra.mxu0 %v2442
      %v3639 = vpop.f32.mrf.mxu0
      %v3640 = vadd.f32 %v3165, %v3639
      %v3641 = vpop.f32.mrf.mxu0
      %3642 = vdwg.mxu0
      %3643 = vmatpush.bf16.msra.mxu0 %v3455
      %3644 = vmatpush.bf16.msra.mxu0 %v3452
      %3645 = vmatpush.bf16.msra.mxu0 %v3449
      %3646 = vmatpush.bf16.msra.mxu0 %v3446
      %3647 = vmatpush.bf16.msra.mxu0 %v3443
      %3648 = vmatpush.bf16.msra.mxu0 %v3440
      %3649 = vmatpush.bf16.msra.mxu0 %v3437
      %3650 = vmatpush.bf16.msra.mxu0 %v3434
      %3651 = vmatmul.bf16.gmra.mxu0 %v2443
      %v3652 = vpop.f32.mrf.mxu0
      %v3653 = vadd.f32 %v3640, %v3652
      %v3654 = vpop.f32.mrf.mxu0
      %3655 = vdwg.mxu0
      %3656 = vmatpush.bf16.msra.mxu0 %v3479
      %3657 = vmatpush.bf16.msra.mxu0 %v3476
      %3658 = vmatpush.bf16.msra.mxu0 %v3473
      %3659 = vmatpush.bf16.msra.mxu0 %v3470
      %3660 = vmatpush.bf16.msra.mxu0 %v3467
      %3661 = vmatpush.bf16.msra.mxu0 %v3464
      %3662 = vmatpush.bf16.msra.mxu0 %v3461
      %3663 = vmatpush.bf16.msra.mxu0 %v3458
      %3664 = vmatmul.bf16.gmra.mxu0 %v2444
      %v3665 = vpop.f32.mrf.mxu0
      %v3666 = vadd.f32 %v3653, %v3665
      %v3667 = vpop.f32.mrf.mxu0
      %3668 = vdwg.mxu0
      %v3669 = vld [vmem:[%s14] sm:$0x7]
      %v3671 = vperm.slane %v3669, 0
      %v3672 = vperm.slane %v3669, 1
      %v3673 = vperm.slane %v3669, 2
      %v3677 = vadd.f32 %v3588, %v3671
      %v3678 = vadd.f32 %v3627, %v3672
      %v3679 = vadd.f32 %v3666, %v3673
      %v3680 = vxor.u32 %v3677, 2147483648
      %v3681 = vxor.u32 %v3678, 2147483648
      %v3682 = vxor.u32 %v3679, 2147483648
      %v3683 = vmul.f32 %v3680, 1.442695
      %v3684 = vpow.pop %v3683
      %v3685 = vmul.f32 %v3681, 1.442695
      %v3686 = vpow.pop %v3685
      %v3687 = vmul.f32 %v3682, 1.442695
      %v3688 = vpow.pop %v3687
      %v3689 = vadd.f32 %v3684, 1.0
      %v3690 = vadd.f32 %v3686, 1.0
      %v3691 = vadd.f32 %v3688, 1.0
      %v3692 = vrcp.pop %v3689
      %v3693 = vmul.f32 %v3689, %v3692
      %v3694 = vsub.f32 1.0, %v3693
      %v3695 = vmul.f32 %v3692, %v3694
      %v3696 = vadd.f32 %v3692, %v3695
      %vm3697 = vweird.f32 %v3689
      %vm3698 = vweird.f32 %v3692
      %vm3699 = vmor %vm3697, %vm3698
      %v3700 = vsel %vm3699, %v3692, %v3696
      %v3701 = vand.u32 2147483647, %v3689
      %vm3702 = vcmp.eq.f32.partialorder %v3701, 8.507059e+37
      %v3703 = vand.u32 %v3689, 2147483648
      %v3704 = vor.u32 1.1754944e-38, %v3703
      %v3705 = vsel %vm3702, %v3704, %v3700
      %v3706 = vmul.f32 1.0, %v3705
      %v3707 = vrcp.pop %v3690
      %v3708 = vmul.f32 %v3690, %v3707
      %v3709 = vsub.f32 1.0, %v3708
      %v3710 = vmul.f32 %v3707, %v3709
      %v3711 = vadd.f32 %v3707, %v3710
      %vm3712 = vweird.f32 %v3690
      %vm3713 = vweird.f32 %v3707
      %vm3714 = vmor %vm3712, %vm3713
      %v3715 = vsel %vm3714, %v3707, %v3711
      %v3716 = vand.u32 2147483647, %v3690
      %vm3717 = vcmp.eq.f32.partialorder %v3716, 8.507059e+37
      %v3718 = vand.u32 %v3690, 2147483648
      %v3719 = vor.u32 1.1754944e-38, %v3718
      %v3720 = vsel %vm3717, %v3719, %v3715
      %v3721 = vmul.f32 1.0, %v3720
      %v3722 = vrcp.pop %v3691
      %v3723 = vmul.f32 %v3691, %v3722
      %v3724 = vsub.f32 1.0, %v3723
      %v3725 = vmul.f32 %v3722, %v3724
      %v3726 = vadd.f32 %v3722, %v3725
      %vm3727 = vweird.f32 %v3691
      %vm3728 = vweird.f32 %v3722
      %vm3729 = vmor %vm3727, %vm3728
      %v3730 = vsel %vm3729, %v3722, %v3726
      %v3731 = vand.u32 2147483647, %v3691
      %vm3732 = vcmp.eq.f32.partialorder %v3731, 8.507059e+37
      %v3733 = vand.u32 %v3691, 2147483648
      %v3734 = vor.u32 1.1754944e-38, %v3733
      %v3735 = vsel %vm3732, %v3734, %v3730
      %v3736 = vmul.f32 1.0, %v3735
      %v3737 = vperm.slane %v3706, 0
      %v3738 = vperm.slane %v3721, 0
      %v3739 = vperm.slane %v3736, 0
      %v3740 = vmul.f32 %v2400, %v3737
      %v3741 = vmul.f32 %v2401, %v3738
      %v3742 = vmul.f32 %v2402, %v3739
      %v3743 = vmul.f32 %v2403, %v3737
      %v3744 = vmul.f32 %v2404, %v3738
      %v3745 = vmul.f32 %v2405, %v3739
      %v3746 = vmul.f32 %v2406, %v3737
      %v3747 = vmul.f32 %v2407, %v3738
      %v3748 = vmul.f32 %v2408, %v3739
      %v3749 = vmul.f32 %v2409, %v3737
      %v3750 = vmul.f32 %v2410, %v3738
      %v3751 = vmul.f32 %v2411, %v3739
      %v3752 = vadd.f32 %v3740, %v496
      %v3753 = vadd.f32 %v3741, %v497
      %v3754 = vadd.f32 %v3742, %v498
      %v3755 = vadd.f32 %v3743, %v499
      %v3756 = vadd.f32 %v3744, %v500
      %v3757 = vadd.f32 %v3745, %v501
      %v3758 = vadd.f32 %v3746, %v502
      %v3759 = vadd.f32 %v3747, %v503
      %v3760 = vadd.f32 %v3748, %v504
      %v3761 = vadd.f32 %v3749, %v505
      %v3762 = vadd.f32 %v3750, %v506
      %v3763 = vadd.f32 %v3751, %v507
      %3764 = vst [vmem:[%s494] sm:$0xff] %v3752
      %3765 = vst [vmem:[%s494 + $0x8] sm:$0xff] %v3753
      %3766 = vst [vmem:[%s494 + $0x10] sm:$0xff] %v3754
      %3767 = vst [vmem:[%s494 + $0x18] sm:$0xff] %v3755
      %3768 = vst [vmem:[%s494 + $0x20] sm:$0xff] %v3756
      %3769 = vst [vmem:[%s494 + $0x28] sm:$0xff] %v3757
      %3770 = vst [vmem:[%s494 + $0x30] sm:$0xff] %v3758
      %3771 = vst [vmem:[%s494 + $0x38] sm:$0xff] %v3759
      %3772 = vst [vmem:[%s494 + $0x40] sm:$0xff] %v3760
      %3773 = vst [vmem:[%s494 + $0x48] sm:$0xff] %v3761
      %3774 = vst [vmem:[%s494 + $0x50] sm:$0xff] %v3762
      %3775 = vst [vmem:[%s494 + $0x58] sm:$0xff] %v3763
      %p3776 = scmp.lt.s32.totalorder %s26, 1
      %s3777 = scalar_select %p3776, %s26, 1
      %s3778 = smul.addr %s3777, 12
      %s3779 = smul.addr %s3778, 8
      %s3780 = scalar_lea.vmem %s15, %s3779
      // Predicated region
      $region81: #{stconv_forward.1} parent=79 // pred_check
        %p3781 = pneg %p364
      $region82: #{stconv_forward.1} parent=79 // pred_check_branch
        %3783 = sbr.rel (%p3781) target = $region84
      $region83: #{stconv_forward.1} parent=79 // pred_region
        _
      $region84: #{stconv_forward.1} parent=79 // pred_fallthru
        _
    $region80: #{stconv_forward.1} parent=5 // pred_fallthru
      _
    %p3784 = scmp.le.s32.totalorder 2, %s21
    // Predicated region
    $region85: #{stconv_forward.1} parent=5 // pred_check
      %p3785 = pneg %p3784
    $region86: #{stconv_forward.1} parent=5 // pred_check_branch
      %3787 = sbr.rel (%p3785) target = $region88
    $region87: #{stconv_forward.1} parent=5 // pred_region
      %s3788 = ssub.s32 %s21, 2
      // Predicated region
      $region89: #{stconv_forward.1} parent=87 // pred_check
        %p3789 = pneg %p370
      $region90: #{stconv_forward.1} parent=87 // pred_check_branch
        %3791 = sbr.rel (%p3789) target = $region92
      $region91: #{stconv_forward.1} parent=87 // pred_region
        %p3792 = scmp.lt.s32.totalorder %s27, 1
        %s3793 = scalar_select %p3792, %s27, 1
        %s3794 = smul.addr %s3793, 12
        %s3795 = smul.addr %s3794, 8
        %s3796 = scalar_lea.vmem %s15, %s3795
      $region92: #{stconv_forward.1} parent=87 // pred_fallthru
        _
    $region88: #{stconv_forward.1} parent=5 // pred_fallthru
      _
  $region6: #{stconv_forward.1} parent=0 // loop_footer
    %s25 = sadd.s32 1, %s21
  $region7: #{stconv_forward.1} parent=0 // loop_footer_branch
    %20 = sbr.rel target = $region3
  $region8: #{stconv_forward.1} parent=0 // loop_exit
    _

</llo_original>
